<compile_context>
chip_gen: v5e
topology: v5e:2x2
jax: 0.10.0
libtpu: 0.0.40
codegen_flags: <defaults>
</compile_context>

<pallas_src>
import functools

import jax
import jax.numpy as jnp
from jax.experimental import pallas as pl
from jax.experimental.pallas import tpu as pltpu

_LANE = 128


def _round_up(v, m):
    return ((v + m - 1) // m) * m


def _pad2(a, rows, cols):
    return jnp.pad(a, ((0, rows - a.shape[0]), (0, cols - a.shape[1])))


# ----------------------------------------------------------------------------- #
# Pallas kernel: one row-tile of nodes; full TGCN cell + ELU + output linear     #
# ----------------------------------------------------------------------------- #
def _tgcn_kernel(
    a_ref,        # [T, Np]   bf16  raw adjacency (with self loops), row block
    dinvc_ref,    # [T, 1]    f32   D^-1/2 for the tile's target rows
    g_ref,        # [Np, 3Hp] bf16  dinv-scaled X @ [W'z | W'r | W'h]  (precomposed)
    h_ref,        # [T, Hp]   f32   previous hidden state, row block
    b3_ref,       # [1, 3Hp]  f32   fused gate biases [b'z | b'r | b'h]
    lzr_bot_ref,  # [Hp, 2Hp] bf16  [linear_z | linear_r] weight, H part
    lh_bot_ref,   # [Hp, Hp]  bf16  linear_h weight, H*R part
    low_ref,      # [Hp, Dp]  bf16  output linear weight
    lob_ref,      # [1, Dp]   f32   output linear bias
    y_ref,        # out [T, Dp] f32
    hnew_ref,     # out [T, Hp] f32
    *,
    hp,
):
    f32 = jnp.float32
    bf16 = jnp.bfloat16

    # Conv side of all three gates in one MXU matmul; normalization folded:
    #   A_n @ G = dinv_col * (A_raw @ (dinv-row-scaled G))
    c3 = jnp.dot(a_ref[...], g_ref[...], preferred_element_type=f32)
    c3 = c3 * dinvc_ref[...] + b3_ref[...]

    h = h_ref[...]                       # f32
    h_bf = h.astype(bf16)

    # Fused H-side matmul for the z / r gates (single wide RHS); biases already
    # folded into b3 on the host.
    hzr = jnp.dot(h_bf, lzr_bot_ref[...], preferred_element_type=f32)

    z = 1.0 / (1.0 + jnp.exp(-(c3[:, :hp] + hzr[:, :hp])))
    r = 1.0 / (1.0 + jnp.exp(-(c3[:, hp:2 * hp] + hzr[:, hp:])))

    h_pre = c3[:, 2 * hp:] + jnp.dot(
        (h * r).astype(bf16), lh_bot_ref[...], preferred_element_type=f32
    )
    h_tilde = jnp.tanh(h_pre)

    # GRU update in f32 (avoid recurrent drift).
    h_new = z * h + (1.0 - z) * h_tilde

    # ELU (alpha=1) + output linear head.
    act = jnp.where(h_new > 0, h_new, jnp.exp(jnp.minimum(h_new, 0.0)) - 1.0)
    y = jnp.dot(act.astype(bf16), low_ref[...], preferred_element_type=f32) + lob_ref[...]

    hnew_ref[...] = h_new
    y_ref[...] = y


def _vmem_limit_bytes(tile_n, np_, hp, dp):
    bf, f4 = 2, 4
    a_blk = 2 * tile_n * np_ * bf                 # streamed A row block (double-buffered)
    dinvc = 2 * tile_n * 1 * f4
    h_blk = 2 * tile_n * hp * f4
    g_res = 2 * np_ * 3 * hp * bf                 # resident G (conservatively x2)
    consts = 2 * ((3 * hp) * f4 + hp * 2 * hp * bf + hp * hp * bf
                  + hp * dp * bf + dp * f4)
    outs = 2 * tile_n * (dp + hp) * f4
    need = a_blk + dinvc + h_blk + g_res + consts + outs
    return int(min(max(need * 5 // 4 + (2 << 20), 8 << 20), 64 << 20))


# ----------------------------------------------------------------------------- #
# Wrapper: sparse->dense adjacency glue, host-side weight fusion/padding, grid   #
# ----------------------------------------------------------------------------- #
@functools.partial(jax.jit, static_argnames=("num_nodes", "tile_n"))
def recurrent_tgcn_forward(params, x, edge_index, edge_weight, prev_hidden,
                           *, num_nodes, tile_n=256):
    n = num_nodes
    hd = prev_hidden.shape[1]
    dout = params["lin_w"].shape[1]

    np_ = _round_up(max(n, tile_n), tile_n)      # padded node count (multiple of tile)
    hp = _round_up(hd, _LANE)
    dp = _round_up(dout, _LANE)

    # Raw adjacency with self-loops (scatter is plain-JAX glue; normalization folded
    # around the in-kernel matmul).  Scatter in f32, compute dinv, cast to bf16 once.
    src = edge_index[0]
    tgt = edge_index[1]
    a_raw = jnp.zeros((np_, np_), jnp.float32)
    a_raw = a_raw.at[tgt, src].add(edge_weight.astype(jnp.float32))
    diag = jnp.arange(np_)
    a_raw = a_raw.at[diag, diag].add(1.0)
    deg = a_raw.sum(axis=1)
    dinv = jnp.where(deg > 0, jax.lax.rsqrt(deg), 0.0)      # [Np]
    dinv_col = dinv[:, None]                                 # [Np, 1] f32
    a_bf = a_raw.astype(jnp.bfloat16)

    # ---- host-side precomposition (associativity) --------------------------- #
    # (A_n @ X @ Wg + bg) @ Lg_top == A_n @ (X @ (Wg @ Lg_top)) + bg @ Lg_top
    xf = x.astype(jnp.float32)
    lz_top = params["lz_w"][:hd]
    lr_top = params["lr_w"][:hd]
    lh_top = params["lh_w"][:hd]

    gz = xf @ (params["wz"] @ lz_top)            # [N, Hd]
    gr = xf @ (params["wr"] @ lr_top)
    gh = xf @ (params["wh"] @ lh_top)
    g = jnp.concatenate(
        [_pad2(gz, np_, hp), _pad2(gr, np_, hp), _pad2(gh, np_, hp)], axis=1
    )
    g = (dinv_col * g).astype(jnp.bfloat16)      # fold dinv_row side into G

    bpz = params["bz"] @ lz_top + params["lz_b"]
    bpr = params["br"] @ lr_top + params["lr_b"]
    bph = params["bh"] @ lh_top + params["lh_b"]
    b3 = jnp.concatenate(
        [_pad2(bpz, 1, hp), _pad2(bpr, 1, hp), _pad2(bph, 1, hp)], axis=1
    ).astype(jnp.float32)

    bf = jnp.bfloat16
    lzr_bot = jnp.concatenate([_pad2(params["lz_w"][hd:], hp, hp),
                               _pad2(params["lr_w"][hd:], hp, hp)], axis=1).astype(bf)
    lh_bot = _pad2(params["lh_w"][hd:], hp, hp).astype(bf)
    low = _pad2(params["lin_w"], hp, dp).astype(bf)
    lob = _pad2(params["lin_b"], 1, dp).astype(jnp.float32)

    # Padded hidden state (row-tiled input).
    h_p = _pad2(prev_hidden.astype(jnp.float32), np_, hp)

    grid = (np_ // tile_n,)
    rows = lambda i: (i, 0)     # row-tiled arrays
    whole = lambda i: (0, 0)    # resident (G, weights, biases)

    in_specs = [
        pl.BlockSpec((tile_n, np_), rows),     # A row-block (streamed)
        pl.BlockSpec((tile_n, 1), rows),       # dinv (target rows)
        pl.BlockSpec((np_, 3 * hp), whole),    # G (dinv-scaled X @ W')
        pl.BlockSpec((tile_n, hp), rows),      # H row-block
        pl.BlockSpec((1, 3 * hp), whole),      # fused gate biases
        pl.BlockSpec((hp, 2 * hp), whole),     # lzr_bot
        pl.BlockSpec((hp, hp), whole),         # lh_bot
        pl.BlockSpec((hp, dp), whole),         # lin_w
        pl.BlockSpec((1, dp), whole),          # lin_b
    ]
    out_specs = (
        pl.BlockSpec((tile_n, dp), rows),
        pl.BlockSpec((tile_n, hp), rows),
    )

    y_p, h_new_p = pl.pallas_call(
        functools.partial(_tgcn_kernel, hp=hp),
        out_shape=(
            jax.ShapeDtypeStruct((np_, dp), jnp.float32),
            jax.ShapeDtypeStruct((np_, hp), jnp.float32),
        ),
        grid=grid,
        in_specs=in_specs,
        out_specs=out_specs,
        compiler_params=pltpu.CompilerParams(
            dimension_semantics=("parallel",),
            vmem_limit_bytes=_vmem_limit_bytes(tile_n, np_, hp, dp),
        ),
    )(a_bf, dinv_col, g, h_p, b3, lzr_bot, lh_bot, low, lob)

    return y_p[:n, :dout], h_new_p[:n, :hd]


# ----------------------------------------------------------------------------- #
# Params (unpadded, [in, out] layout)                                            #
# ----------------------------------------------------------------------------- #
def init_params(key, in_channels, hidden_channels, out_channels):
    ks = jax.random.split(key, 11)
    s = 0.1

    def w(k, shape):
        return (s * jax.random.normal(k, shape)).astype(jnp.float32)

    return {
        "wz": w(ks[0], (in_channels, hidden_channels)),
        "bz": jnp.zeros((1, hidden_channels), jnp.float32),
        "wr": w(ks[1], (in_channels, hidden_channels)),
        "br": jnp.zeros((1, hidden_channels), jnp.float32),
        "wh": w(ks[2], (in_channels, hidden_channels)),
        "bh": jnp.zeros((1, hidden_channels), jnp.float32),
        "lz_w": w(ks[3], (2 * hidden_channels, hidden_channels)),
        "lz_b": w(ks[4], (1, hidden_channels)),
        "lr_w": w(ks[5], (2 * hidden_channels, hidden_channels)),
        "lr_b": w(ks[6], (1, hidden_channels)),
        "lh_w": w(ks[7], (2 * hidden_channels, hidden_channels)),
        "lh_b": w(ks[8], (1, hidden_channels)),
        "lin_w": w(ks[9], (hidden_channels, out_channels)),
        "lin_b": w(ks[10], (1, out_channels)),
    }


# ----------------------------------------------------------------------------- #
# Pure-JAX f32 reference (for correctness check of the bf16/padded kernel)       #
# ----------------------------------------------------------------------------- #
def _reference(params, x, edge_index, edge_weight, prev_hidden, num_nodes):
    src, tgt = edge_index[0], edge_index[1]
    A = jnp.zeros((num_nodes, num_nodes), jnp.float32)
    A = A.at[tgt, src].add(edge_weight.astype(jnp.float32))
    A = A + jnp.eye(num_nodes, dtype=jnp.float32)
    deg = A.sum(axis=1)
    dinv = jnp.where(deg > 0, jax.lax.rsqrt(deg), 0.0)
    An = dinv[:, None] * A * dinv[None, :]

    H = prev_hidden
    cz = An @ (x @ params["wz"]) + params["bz"]
    cr = An @ (x @ params["wr"]) + params["br"]
    ch = An @ (x @ params["wh"]) + params["bh"]
    Z = jax.nn.sigmoid(jnp.concatenate([cz, H], 1) @ params["lz_w"] + params["lz_b"])
    R = jax.nn.sigmoid(jnp.concatenate([cr, H], 1) @ params["lr_w"] + params["lr_b"])
    Ht = jnp.tanh(jnp.concatenate([ch, H * R], 1) @ params["lh_w"] + params["lh_b"])
    Hn = Z * H + (1.0 - Z) * Ht
    act = jnp.where(Hn > 0, Hn, jnp.expm1(jnp.minimum(Hn, 0.0)))
    y = act @ params["lin_w"] + params["lin_b"]
    return y, Hn


if __name__ == "__main__":
    key = jax.random.PRNGKey(0)
    k_x, k_h, k_w, k_p = jax.random.split(key, 4)

    num_nodes = 16
    in_channels = 4
    hidden_channels = 32
    out_channels = 8

    x = jax.random.normal(k_x, (num_nodes, in_channels), jnp.float32)
    prev_hidden = jax.random.normal(k_h, (num_nodes, hidden_channels), jnp.float32)

    # Bidirectional ring graph (no explicit self-loops; the kernel path adds them).
    src = jnp.arange(num_nodes, dtype=jnp.int32)
    dst = (src + 1) % num_nodes
    edge_index = jnp.concatenate(
        [jnp.stack([src, dst], axis=0), jnp.stack([dst, src], axis=0)], axis=1
    )  # [2, 2N]
    edge_weight = jax.random.uniform(
        k_w, (edge_index.shape[1],), jnp.float32, minval=0.5, maxval=1.5
    )

    params = init_params(k_p, in_channels, hidden_channels, out_channels)

    y, h = recurrent_tgcn_forward(
        params, x, edge_index, edge_weight, prev_hidden, num_nodes=num_nodes
    )
    jax.block_until_ready((y, h))

    assert y.shape == (num_nodes, out_channels)
    assert h.shape == (num_nodes, hidden_channels)
    assert bool(jnp.all(jnp.isfinite(y))) and bool(jnp.all(jnp.isfinite(h)))

    y_ref, h_ref = _reference(params, x, edge_index, edge_weight, prev_hidden, num_nodes)
    assert float(jnp.max(jnp.abs(y - y_ref))) < 5e-2
    assert float(jnp.max(jnp.abs(h - h_ref))) < 5e-2

    print("KERNEL_OK")
</pallas_src>

<mosaic_0001>
module attributes {stable_mosaic.version = 11 : i64} {
  func.func @_tgcn_kernel(%arg0: i32, %arg1: memref<256x256xbf16, #tpu.memory_space<vmem>>, %arg2: memref<256x1xf32, #tpu.memory_space<vmem>>, %arg3: memref<256x384xbf16, #tpu.memory_space<vmem>>, %arg4: memref<256x128xf32, #tpu.memory_space<vmem>>, %arg5: memref<1x384xf32, #tpu.memory_space<vmem>>, %arg6: memref<128x256xbf16, #tpu.memory_space<vmem>>, %arg7: memref<128x128xbf16, #tpu.memory_space<vmem>>, %arg8: memref<128x128xbf16, #tpu.memory_space<vmem>>, %arg9: memref<1x128xf32, #tpu.memory_space<vmem>>, %arg10: memref<256x128xf32, #tpu.memory_space<vmem>>, %arg11: memref<256x128xf32, #tpu.memory_space<vmem>>) attributes {dimension_semantics = [#tpu.dimension_semantics<parallel>], iteration_bounds = array<i64: 1>, scalar_prefetch = 0 : i64, scratch_operands = 0 : i64, tpu.core_type = #tpu.core_type<tc>, window_params = [{transform_indices = @transform_0, window_bounds = array<i64: 256, 256>}, {transform_indices = @transform_1, window_bounds = array<i64: 256, 1>}, {pipeline_mode = #tpu.pipeline_mode<synchronous>, transform_indices = @transform_2, window_bounds = array<i64: 256, 384>}, {transform_indices = @transform_3, window_bounds = array<i64: 256, 128>}, {pipeline_mode = #tpu.pipeline_mode<synchronous>, transform_indices = @transform_4, window_bounds = array<i64: 1, 384>}, {pipeline_mode = #tpu.pipeline_mode<synchronous>, transform_indices = @transform_5, window_bounds = array<i64: 128, 256>}, {pipeline_mode = #tpu.pipeline_mode<synchronous>, transform_indices = @transform_6, window_bounds = array<i64: 128, 128>}, {pipeline_mode = #tpu.pipeline_mode<synchronous>, transform_indices = @transform_7, window_bounds = array<i64: 128, 128>}, {pipeline_mode = #tpu.pipeline_mode<synchronous>, transform_indices = @transform_8, window_bounds = array<i64: 1, 128>}, {transform_indices = @transform_9, window_bounds = array<i64: 256, 128>}, {transform_indices = @transform_10, window_bounds = array<i64: 256, 128>}]} {
    %c0 = arith.constant 0 : index
    %c0_0 = arith.constant 0 : index
    %0 = vector.load %arg1[%c0, %c0_0] : memref<256x256xbf16, #tpu.memory_space<vmem>>, vector<256x256xbf16>
    %c0_1 = arith.constant 0 : index
    %c0_2 = arith.constant 0 : index
    %1 = vector.load %arg3[%c0_1, %c0_2] : memref<256x384xbf16, #tpu.memory_space<vmem>>, vector<256x384xbf16>
    %cst = arith.constant dense<0.000000e+00> : vector<256x384xf32>
    %2 = tpu.matmul %0, %1, %cst {dimension_numbers = #tpu.dot_dimension_numbers<[1], [0], [0], [1], [0, 0, 1, 1], [], []>} : vector<256x256xbf16>, vector<256x384xbf16>, vector<256x384xf32> -> vector<256x384xf32>
    %c0_3 = arith.constant 0 : index
    %c0_4 = arith.constant 0 : index
    %3 = vector.load %arg2[%c0_3, %c0_4] : memref<256x1xf32, #tpu.memory_space<vmem>>, vector<256x1xf32>
    %4 = vector.broadcast %3 : vector<256x1xf32> to vector<256x384xf32>
    %5 = arith.mulf %2, %4 : vector<256x384xf32>
    %c0_5 = arith.constant 0 : index
    %c0_6 = arith.constant 0 : index
    %6 = vector.load %arg5[%c0_5, %c0_6] : memref<1x384xf32, #tpu.memory_space<vmem>>, vector<1x384xf32>
    %7 = vector.broadcast %6 : vector<1x384xf32> to vector<256x384xf32>
    %8 = arith.addf %5, %7 : vector<256x384xf32>
    %c0_7 = arith.constant 0 : index
    %c0_8 = arith.constant 0 : index
    %9 = vector.load %arg4[%c0_7, %c0_8] : memref<256x128xf32, #tpu.memory_space<vmem>>, vector<256x128xf32>
    %10 = arith.truncf %9 : vector<256x128xf32> to vector<256x128xbf16>
    %c0_9 = arith.constant 0 : index
    %c0_10 = arith.constant 0 : index
    %11 = vector.load %arg6[%c0_9, %c0_10] : memref<128x256xbf16, #tpu.memory_space<vmem>>, vector<128x256xbf16>
    %cst_11 = arith.constant dense<0.000000e+00> : vector<256x256xf32>
    %12 = tpu.matmul %10, %11, %cst_11 {dimension_numbers = #tpu.dot_dimension_numbers<[1], [0], [0], [1], [0, 0, 1, 1], [], []>} : vector<256x128xbf16>, vector<128x256xbf16>, vector<256x256xf32> -> vector<256x256xf32>
    %13 = vector.extract_strided_slice %8 {offsets = [0, 0], sizes = [256, 128], strides = [1, 1]} : vector<256x384xf32> to vector<256x128xf32>
    %14 = vector.extract_strided_slice %12 {offsets = [0, 0], sizes = [256, 128], strides = [1, 1]} : vector<256x256xf32> to vector<256x128xf32>
    %15 = arith.addf %13, %14 : vector<256x128xf32>
    %cst_12 = arith.constant 0.000000e+00 : f32
    %16 = vector.broadcast %cst_12 : f32 to vector<256x128xf32>
    %17 = arith.subf %16, %15 : vector<256x128xf32>
    %18 = math.exp %17 : vector<256x128xf32>
    %cst_13 = arith.constant 1.000000e+00 : f32
    %19 = vector.broadcast %cst_13 : f32 to vector<256x128xf32>
    %20 = arith.addf %19, %18 : vector<256x128xf32>
    %cst_14 = arith.constant 1.000000e+00 : f32
    %21 = vector.broadcast %cst_14 : f32 to vector<256x128xf32>
    %22 = arith.divf %21, %20 : vector<256x128xf32>
    %23 = vector.extract_strided_slice %8 {offsets = [0, 128], sizes = [256, 128], strides = [1, 1]} : vector<256x384xf32> to vector<256x128xf32>
    %24 = vector.extract_strided_slice %12 {offsets = [0, 128], sizes = [256, 128], strides = [1, 1]} : vector<256x256xf32> to vector<256x128xf32>
    %25 = arith.addf %23, %24 : vector<256x128xf32>
    %cst_15 = arith.constant 0.000000e+00 : f32
    %26 = vector.broadcast %cst_15 : f32 to vector<256x128xf32>
    %27 = arith.subf %26, %25 : vector<256x128xf32>
    %28 = math.exp %27 : vector<256x128xf32>
    %cst_16 = arith.constant 1.000000e+00 : f32
    %29 = vector.broadcast %cst_16 : f32 to vector<256x128xf32>
    %30 = arith.addf %29, %28 : vector<256x128xf32>
    %cst_17 = arith.constant 1.000000e+00 : f32
    %31 = vector.broadcast %cst_17 : f32 to vector<256x128xf32>
    %32 = arith.divf %31, %30 : vector<256x128xf32>
    %33 = vector.extract_strided_slice %8 {offsets = [0, 256], sizes = [256, 128], strides = [1, 1]} : vector<256x384xf32> to vector<256x128xf32>
    %34 = arith.mulf %9, %32 : vector<256x128xf32>
    %35 = arith.truncf %34 : vector<256x128xf32> to vector<256x128xbf16>
    %c0_18 = arith.constant 0 : index
    %c0_19 = arith.constant 0 : index
    %36 = vector.load %arg7[%c0_18, %c0_19] : memref<128x128xbf16, #tpu.memory_space<vmem>>, vector<128x128xbf16>
    %cst_20 = arith.constant dense<0.000000e+00> : vector<256x128xf32>
    %37 = tpu.matmul %35, %36, %cst_20 {dimension_numbers = #tpu.dot_dimension_numbers<[1], [0], [0], [1], [0, 0, 1, 1], [], []>} : vector<256x128xbf16>, vector<128x128xbf16>, vector<256x128xf32> -> vector<256x128xf32>
    %38 = arith.addf %33, %37 : vector<256x128xf32>
    %39 = math.tanh %38 : vector<256x128xf32>
    %40 = arith.mulf %22, %9 : vector<256x128xf32>
    %cst_21 = arith.constant 1.000000e+00 : f32
    %41 = vector.broadcast %cst_21 : f32 to vector<256x128xf32>
    %42 = arith.subf %41, %22 : vector<256x128xf32>
    %43 = arith.mulf %42, %39 : vector<256x128xf32>
    %44 = arith.addf %40, %43 : vector<256x128xf32>
    %cst_22 = arith.constant 0.000000e+00 : f32
    %45 = vector.broadcast %cst_22 : f32 to vector<256x128xf32>
    %46 = arith.cmpf ogt, %44, %45 : vector<256x128xf32>
    %cst_23 = arith.constant 0.000000e+00 : f32
    %47 = vector.broadcast %cst_23 : f32 to vector<256x128xf32>
    %48 = arith.minimumf %44, %47 : vector<256x128xf32>
    %49 = math.exp %48 : vector<256x128xf32>
    %cst_24 = arith.constant 1.000000e+00 : f32
    %50 = vector.broadcast %cst_24 : f32 to vector<256x128xf32>
    %51 = arith.subf %49, %50 : vector<256x128xf32>
    %52 = arith.select %46, %44, %51 : vector<256x128xi1>, vector<256x128xf32>
    %53 = arith.truncf %52 : vector<256x128xf32> to vector<256x128xbf16>
    %c0_25 = arith.constant 0 : index
    %c0_26 = arith.constant 0 : index
    %54 = vector.load %arg8[%c0_25, %c0_26] : memref<128x128xbf16, #tpu.memory_space<vmem>>, vector<128x128xbf16>
    %cst_27 = arith.constant dense<0.000000e+00> : vector<256x128xf32>
    %55 = tpu.matmul %53, %54, %cst_27 {dimension_numbers = #tpu.dot_dimension_numbers<[1], [0], [0], [1], [0, 0, 1, 1], [], []>} : vector<256x128xbf16>, vector<128x128xbf16>, vector<256x128xf32> -> vector<256x128xf32>
    %c0_28 = arith.constant 0 : index
    %c0_29 = arith.constant 0 : index
    %56 = vector.load %arg9[%c0_28, %c0_29] : memref<1x128xf32, #tpu.memory_space<vmem>>, vector<1x128xf32>
    %57 = vector.broadcast %56 : vector<1x128xf32> to vector<256x128xf32>
    %58 = arith.addf %55, %57 : vector<256x128xf32>
    %c0_30 = arith.constant 0 : index
    %c0_31 = arith.constant 0 : index
    %59 = vector.load %arg11[%c0_30, %c0_31] : memref<256x128xf32, #tpu.memory_space<vmem>>, vector<256x128xf32>
    tpu.vector_store %arg11[%c0_30, %c0_31], %44 {strides = array<i32>} : memref<256x128xf32, #tpu.memory_space<vmem>>, vector<256x128xf32>,
    %c0_32 = arith.constant 0 : index
    %c0_33 = arith.constant 0 : index
    %60 = vector.load %arg10[%c0_32, %c0_33] : memref<256x128xf32, #tpu.memory_space<vmem>>, vector<256x128xf32>
    tpu.vector_store %arg10[%c0_32, %c0_33], %58 {strides = array<i32>} : memref<256x128xf32, #tpu.memory_space<vmem>>, vector<256x128xf32>,
    return
  }
  func.func @transform_0(%arg0: i32) -> (i32, i32) {
    %c0_i32 = arith.constant 0 : i32
    %c0_i32_0 = arith.constant 0 : i32
    return %arg0, %c0_i32 : i32, i32
  }
  func.func @transform_1(%arg0: i32) -> (i32, i32) {
    %c0_i32 = arith.constant 0 : i32
    %c0_i32_0 = arith.constant 0 : i32
    return %arg0, %c0_i32 : i32, i32
  }
  func.func @transform_2(%arg0: i32) -> (i32, i32) {
    %c0_i32 = arith.constant 0 : i32
    %c0_i32_0 = arith.constant 0 : i32
    %c0_i32_1 = arith.constant 0 : i32
    return %c0_i32, %c0_i32_0 : i32, i32
  }
  func.func @transform_3(%arg0: i32) -> (i32, i32) {
    %c0_i32 = arith.constant 0 : i32
    %c0_i32_0 = arith.constant 0 : i32
    return %arg0, %c0_i32 : i32, i32
  }
  func.func @transform_4(%arg0: i32) -> (i32, i32) {
    %c0_i32 = arith.constant 0 : i32
    %c0_i32_0 = arith.constant 0 : i32
    %c0_i32_1 = arith.constant 0 : i32
    return %c0_i32, %c0_i32_0 : i32, i32
  }
  func.func @transform_5(%arg0: i32) -> (i32, i32) {
    %c0_i32 = arith.constant 0 : i32
    %c0_i32_0 = arith.constant 0 : i32
    %c0_i32_1 = arith.constant 0 : i32
    return %c0_i32, %c0_i32_0 : i32, i32
  }
  func.func @transform_6(%arg0: i32) -> (i32, i32) {
    %c0_i32 = arith.constant 0 : i32
    %c0_i32_0 = arith.constant 0 : i32
    %c0_i32_1 = arith.constant 0 : i32
    return %c0_i32, %c0_i32_0 : i32, i32
  }
  func.func @transform_7(%arg0: i32) -> (i32, i32) {
    %c0_i32 = arith.constant 0 : i32
    %c0_i32_0 = arith.constant 0 : i32
    %c0_i32_1 = arith.constant 0 : i32
    return %c0_i32, %c0_i32_0 : i32, i32
  }
  func.func @transform_8(%arg0: i32) -> (i32, i32) {
    %c0_i32 = arith.constant 0 : i32
    %c0_i32_0 = arith.constant 0 : i32
    %c0_i32_1 = arith.constant 0 : i32
    return %c0_i32, %c0_i32_0 : i32, i32
  }
  func.func @transform_9(%arg0: i32) -> (i32, i32) {
    %c0_i32 = arith.constant 0 : i32
    %c0_i32_0 = arith.constant 0 : i32
    return %arg0, %c0_i32 : i32, i32
  }
  func.func @transform_10(%arg0: i32) -> (i32, i32) {
    %c0_i32 = arith.constant 0 : i32
    %c0_i32_0 = arith.constant 0 : i32
    return %arg0, %c0_i32 : i32, i32
  }
}

</mosaic_0001>

<llo_original>
// kernel: recurrent_tgcn_forward.1
$region0: #{recurrent_tgcn_forward.1}
  #allocation0 [shape = 'u32[]', space=smem, size = 0x4, offset = 0x4, fixed_abs, tag = 'smem constant byte address 0x4 - core index']
  #allocation1 [shape = 'u32[72,128]{1,0:T(1,128)}', space=vmem, size = 0x9000, scoped, tag = 'internal scratch']
  %s0 = inlined_call_operand.vmem [shape: bf16[256,256], index: 0, kind: input, shape index: {}]
  %s1 = inlined_call_operand.vmem [shape: f32[256,1], index: 1, kind: input, shape index: {}]
  %s2 = inlined_call_operand.vmem [shape: bf16[256,384], index: 2, kind: input, shape index: {}]
  %s3 = inlined_call_operand.vmem [shape: f32[256,128], index: 3, kind: input, shape index: {}]
  %s4 = inlined_call_operand.vmem [shape: f32[1,384], index: 4, kind: input, shape index: {}]
  %s5 = inlined_call_operand.vmem [shape: bf16[128,256], index: 5, kind: input, shape index: {}]
  %s6 = inlined_call_operand.vmem [shape: bf16[128,128], index: 6, kind: input, shape index: {}]
  %s7 = inlined_call_operand.vmem [shape: bf16[128,128], index: 7, kind: input, shape index: {}]
  %s8 = inlined_call_operand.vmem [shape: f32[1,128], index: 8, kind: input, shape index: {}]
  %s9 = inlined_call_operand.vmem [shape: f32[256,128], index: 9, kind: output, shape index: {0}]
  %s10 = inlined_call_operand.vmem [shape: f32[256,128], index: 10, kind: output, shape index: {1}]
  %11 = xla_tuple %s9, %s10
  %s12 = sld [smem:[#allocation0]]
  $region54: #{recurrent_tgcn_forward.1} parent=0
    _
  %s14 = ssub.s32 1, %s12
  %s15 = scalar_select 0, %s14, %s12
  // Predicated region
  $region2: #{recurrent_tgcn_forward.1} parent=0 // pred_check
    _
  $region3: #{recurrent_tgcn_forward.1} parent=0 // pred_check_branch
    %17 = sbr.rel (0) target = $region5
  $region4: #{recurrent_tgcn_forward.1} parent=0 // pred_region
    _
  $region5: #{recurrent_tgcn_forward.1} parent=0 // pred_fallthru
    _
  // Predicated region
  $region6: #{recurrent_tgcn_forward.1} parent=0 // pred_check
    _
  $region7: #{recurrent_tgcn_forward.1} parent=0 // pred_check_branch
    %19 = sbr.rel (0) target = $region9
  $region8: #{recurrent_tgcn_forward.1} parent=0 // pred_region
    _
  $region9: #{recurrent_tgcn_forward.1} parent=0 // pred_fallthru
    _
  // Predicated region
  $region10: #{recurrent_tgcn_forward.1} parent=0 // pred_check
    _
  $region11: #{recurrent_tgcn_forward.1} parent=0 // pred_check_branch
    %21 = sbr.rel (0) target = $region13
  $region12: #{recurrent_tgcn_forward.1} parent=0 // pred_region
    _
  $region13: #{recurrent_tgcn_forward.1} parent=0 // pred_fallthru
    _
  // Predicated region
  $region14: #{recurrent_tgcn_forward.1} parent=0 // pred_check
    _
  $region15: #{recurrent_tgcn_forward.1} parent=0 // pred_check_branch
    %23 = sbr.rel (0) target = $region17
  $region16: #{recurrent_tgcn_forward.1} parent=0 // pred_region
    _
  $region17: #{recurrent_tgcn_forward.1} parent=0 // pred_fallthru
    _
  // Predicated region
  $region18: #{recurrent_tgcn_forward.1} parent=0 // pred_check
    _
  $region19: #{recurrent_tgcn_forward.1} parent=0 // pred_check_branch
    %25 = sbr.rel (0) target = $region21
  $region20: #{recurrent_tgcn_forward.1} parent=0 // pred_region
    _
  $region21: #{recurrent_tgcn_forward.1} parent=0 // pred_fallthru
    _
  // Predicated region
  $region22: #{recurrent_tgcn_forward.1} parent=0 // pred_check
    _
  $region23: #{recurrent_tgcn_forward.1} parent=0 // pred_check_branch
    %27 = sbr.rel (0) target = $region25
  $region24: #{recurrent_tgcn_forward.1} parent=0 // pred_region
    _
  $region25: #{recurrent_tgcn_forward.1} parent=0 // pred_fallthru
    _
  // Predicated region
  $region26: #{recurrent_tgcn_forward.1} parent=0 // pred_check
    _
  $region27: #{recurrent_tgcn_forward.1} parent=0 // pred_check_branch
    %29 = sbr.rel (0) target = $region29
  $region28: #{recurrent_tgcn_forward.1} parent=0 // pred_region
    _
  $region29: #{recurrent_tgcn_forward.1} parent=0 // pred_fallthru
    _
  // Predicated region
  $region30: #{recurrent_tgcn_forward.1} parent=0 // pred_check
    _
  $region31: #{recurrent_tgcn_forward.1} parent=0 // pred_check_branch
    %31 = sbr.rel (0) target = $region33
  $region32: #{recurrent_tgcn_forward.1} parent=0 // pred_region
    _
  $region33: #{recurrent_tgcn_forward.1} parent=0 // pred_fallthru
    _
  // Predicated region
  $region34: #{recurrent_tgcn_forward.1} parent=0 // pred_check
    _
  $region35: #{recurrent_tgcn_forward.1} parent=0 // pred_check_branch
    %33 = sbr.rel (0) target = $region37
  $region36: #{recurrent_tgcn_forward.1} parent=0 // pred_region
    _
  $region37: #{recurrent_tgcn_forward.1} parent=0 // pred_fallthru
    _
  %v34 = vld [vmem:[%s0] sm:$0xff]
  %v35 = vld [vmem:[%s0 + $0x8] sm:$0xff]
  %v36 = vld [vmem:[%s0 + $0x10] sm:$0xff]
  %v37 = vld [vmem:[%s0 + $0x18] sm:$0xff]
  %v38 = vld [vmem:[%s0 + $0x20] sm:$0xff]
  %v39 = vld [vmem:[%s0 + $0x28] sm:$0xff]
  %v40 = vld [vmem:[%s0 + $0x30] sm:$0xff]
  %v41 = vld [vmem:[%s0 + $0x38] sm:$0xff]
  %v42 = vld [vmem:[%s0 + $0x40] sm:$0xff]
  %v43 = vld [vmem:[%s0 + $0x48] sm:$0xff]
  %v44 = vld [vmem:[%s0 + $0x50] sm:$0xff]
  %v45 = vld [vmem:[%s0 + $0x58] sm:$0xff]
  %v46 = vld [vmem:[%s0 + $0x60] sm:$0xff]
  %v47 = vld [vmem:[%s0 + $0x68] sm:$0xff]
  %v48 = vld [vmem:[%s0 + $0x70] sm:$0xff]
  %v49 = vld [vmem:[%s0 + $0x78] sm:$0xff]
  %v50 = vld [vmem:[%s0 + $0x80] sm:$0xff]
  %v51 = vld [vmem:[%s0 + $0x88] sm:$0xff]
  %v52 = vld [vmem:[%s0 + $0x90] sm:$0xff]
  %v53 = vld [vmem:[%s0 + $0x98] sm:$0xff]
  %v54 = vld [vmem:[%s0 + $0xa0] sm:$0xff]
  %v55 = vld [vmem:[%s0 + $0xa8] sm:$0xff]
  %v56 = vld [vmem:[%s0 + $0xb0] sm:$0xff]
  %v57 = vld [vmem:[%s0 + $0xb8] sm:$0xff]
  %v58 = vld [vmem:[%s0 + $0xc0] sm:$0xff]
  %v59 = vld [vmem:[%s0 + $0xc8] sm:$0xff]
  %v60 = vld [vmem:[%s0 + $0xd0] sm:$0xff]
  %v61 = vld [vmem:[%s0 + $0xd8] sm:$0xff]
  %v62 = vld [vmem:[%s0 + $0xe0] sm:$0xff]
  %v63 = vld [vmem:[%s0 + $0xe8] sm:$0xff]
  %v64 = vld [vmem:[%s0 + $0xf0] sm:$0xff]
  %v65 = vld [vmem:[%s0 + $0xf8] sm:$0xff]
  %v66 = vld [vmem:[%s2] sm:$0xff]
  %v67 = vld [vmem:[%s2 + $0x8] sm:$0xf]
  %v68 = vld [vmem:[%s2 + $0xc] sm:$0xff]
  %v69 = vld [vmem:[%s2 + $0x14] sm:$0xf]
  %v70 = vld [vmem:[%s2 + $0x18] sm:$0xff]
  %v71 = vld [vmem:[%s2 + $0x20] sm:$0xf]
  %v72 = vld [vmem:[%s2 + $0x24] sm:$0xff]
  %v73 = vld [vmem:[%s2 + $0x2c] sm:$0xf]
  %v74 = vld [vmem:[%s2 + $0x30] sm:$0xff]
  %v75 = vld [vmem:[%s2 + $0x38] sm:$0xf]
  %v76 = vld [vmem:[%s2 + $0x3c] sm:$0xff]
  %v77 = vld [vmem:[%s2 + $0x44] sm:$0xf]
  %v78 = vld [vmem:[%s2 + $0x48] sm:$0xff]
  %v79 = vld [vmem:[%s2 + $0x50] sm:$0xf]
  %v80 = vld [vmem:[%s2 + $0x54] sm:$0xff]
  %v81 = vld [vmem:[%s2 + $0x5c] sm:$0xf]
  %v82 = vld [vmem:[%s2 + $0x60] sm:$0xff]
  %v83 = vld [vmem:[%s2 + $0x68] sm:$0xf]
  %v84 = vld [vmem:[%s2 + $0x6c] sm:$0xff]
  %v85 = vld [vmem:[%s2 + $0x74] sm:$0xf]
  %v86 = vld [vmem:[%s2 + $0x78] sm:$0xff]
  %v87 = vld [vmem:[%s2 + $0x80] sm:$0xf]
  %v88 = vld [vmem:[%s2 + $0x84] sm:$0xff]
  %v89 = vld [vmem:[%s2 + $0x8c] sm:$0xf]
  %v90 = vld [vmem:[%s2 + $0x90] sm:$0xff]
  %v91 = vld [vmem:[%s2 + $0x98] sm:$0xf]
  %v92 = vld [vmem:[%s2 + $0x9c] sm:$0xff]
  %v93 = vld [vmem:[%s2 + $0xa4] sm:$0xf]
  %v94 = vld [vmem:[%s2 + $0xa8] sm:$0xff]
  %v95 = vld [vmem:[%s2 + $0xb0] sm:$0xf]
  %v96 = vld [vmem:[%s2 + $0xb4] sm:$0xff]
  %v97 = vld [vmem:[%s2 + $0xbc] sm:$0xf]
  %v98 = vld [vmem:[%s2 + $0xc0] sm:$0xff]
  %v99 = vld [vmem:[%s2 + $0xc8] sm:$0xf]
  %v100 = vld [vmem:[%s2 + $0xcc] sm:$0xff]
  %v101 = vld [vmem:[%s2 + $0xd4] sm:$0xf]
  %v102 = vld [vmem:[%s2 + $0xd8] sm:$0xff]
  %v103 = vld [vmem:[%s2 + $0xe0] sm:$0xf]
  %v104 = vld [vmem:[%s2 + $0xe4] sm:$0xff]
  %v105 = vld [vmem:[%s2 + $0xec] sm:$0xf]
  %v106 = vld [vmem:[%s2 + $0xf0] sm:$0xff]
  %v107 = vld [vmem:[%s2 + $0xf8] sm:$0xf]
  %v108 = vld [vmem:[%s2 + $0xfc] sm:$0xff]
  %v109 = vld [vmem:[%s2 + $0x104] sm:$0xf]
  %v110 = vld [vmem:[%s2 + $0x108] sm:$0xff]
  %v111 = vld [vmem:[%s2 + $0x110] sm:$0xf]
  %v112 = vld [vmem:[%s2 + $0x114] sm:$0xff]
  %v113 = vld [vmem:[%s2 + $0x11c] sm:$0xf]
  %v114 = vld [vmem:[%s2 + $0x120] sm:$0xff]
  %v115 = vld [vmem:[%s2 + $0x128] sm:$0xf]
  %v116 = vld [vmem:[%s2 + $0x12c] sm:$0xff]
  %v117 = vld [vmem:[%s2 + $0x134] sm:$0xf]
  %v118 = vld [vmem:[%s2 + $0x138] sm:$0xff]
  %v119 = vld [vmem:[%s2 + $0x140] sm:$0xf]
  %v120 = vld [vmem:[%s2 + $0x144] sm:$0xff]
  %v121 = vld [vmem:[%s2 + $0x14c] sm:$0xf]
  %v122 = vld [vmem:[%s2 + $0x150] sm:$0xff]
  %v123 = vld [vmem:[%s2 + $0x158] sm:$0xf]
  %v124 = vld [vmem:[%s2 + $0x15c] sm:$0xff]
  %v125 = vld [vmem:[%s2 + $0x164] sm:$0xf]
  %v126 = vld [vmem:[%s2 + $0x168] sm:$0xff]
  %v127 = vld [vmem:[%s2 + $0x170] sm:$0xf]
  %v128 = vld [vmem:[%s2 + $0x174] sm:$0xff]
  %v129 = vld [vmem:[%s2 + $0x17c] sm:$0xf]
  %v162 = vunpack.c.l.b16 %v34
  %v163 = vunpack.c.h.b16 %v34
  %v164 = vunpack.c.l.b16 %v35
  %v165 = vunpack.c.h.b16 %v35
  %v166 = vunpack.c.l.b16 %v36
  %v167 = vunpack.c.h.b16 %v36
  %v168 = vunpack.c.l.b16 %v37
  %v169 = vunpack.c.h.b16 %v37
  %v170 = vunpack.c.l.b16 %v38
  %v171 = vunpack.c.h.b16 %v38
  %v172 = vunpack.c.l.b16 %v39
  %v173 = vunpack.c.h.b16 %v39
  %v174 = vunpack.c.l.b16 %v40
  %v175 = vunpack.c.h.b16 %v40
  %v176 = vunpack.c.l.b16 %v41
  %v177 = vunpack.c.h.b16 %v41
  %v178 = vunpack.c.l.b16 %v42
  %v179 = vunpack.c.h.b16 %v42
  %v180 = vunpack.c.l.b16 %v43
  %v181 = vunpack.c.h.b16 %v43
  %v182 = vunpack.c.l.b16 %v44
  %v183 = vunpack.c.h.b16 %v44
  %v184 = vunpack.c.l.b16 %v45
  %v185 = vunpack.c.h.b16 %v45
  %v186 = vunpack.c.l.b16 %v46
  %v187 = vunpack.c.h.b16 %v46
  %v188 = vunpack.c.l.b16 %v47
  %v189 = vunpack.c.h.b16 %v47
  %v190 = vunpack.c.l.b16 %v48
  %v191 = vunpack.c.h.b16 %v48
  %v192 = vunpack.c.l.b16 %v49
  %v193 = vunpack.c.h.b16 %v49
  %v194 = vunpack.c.l.b16 %v50
  %v195 = vunpack.c.h.b16 %v50
  %v196 = vunpack.c.l.b16 %v51
  %v197 = vunpack.c.h.b16 %v51
  %v198 = vunpack.c.l.b16 %v52
  %v199 = vunpack.c.h.b16 %v52
  %v200 = vunpack.c.l.b16 %v53
  %v201 = vunpack.c.h.b16 %v53
  %v202 = vunpack.c.l.b16 %v54
  %v203 = vunpack.c.h.b16 %v54
  %v204 = vunpack.c.l.b16 %v55
  %v205 = vunpack.c.h.b16 %v55
  %v206 = vunpack.c.l.b16 %v56
  %v207 = vunpack.c.h.b16 %v56
  %v208 = vunpack.c.l.b16 %v57
  %v209 = vunpack.c.h.b16 %v57
  %v210 = vunpack.c.l.b16 %v58
  %v211 = vunpack.c.h.b16 %v58
  %v212 = vunpack.c.l.b16 %v59
  %v213 = vunpack.c.h.b16 %v59
  %v214 = vunpack.c.l.b16 %v60
  %v215 = vunpack.c.h.b16 %v60
  %v216 = vunpack.c.l.b16 %v61
  %v217 = vunpack.c.h.b16 %v61
  %v218 = vunpack.c.l.b16 %v62
  %v219 = vunpack.c.h.b16 %v62
  %v220 = vunpack.c.l.b16 %v63
  %v221 = vunpack.c.h.b16 %v63
  %v222 = vunpack.c.l.b16 %v64
  %v223 = vunpack.c.h.b16 %v64
  %v224 = vunpack.c.l.b16 %v65
  %v225 = vunpack.c.h.b16 %v65
  %v226 = vpack.c.b16 %v164, %v162
  %v227 = vpack.c.b16 %v165, %v163
  %v228 = vpack.c.b16 %v168, %v166
  %v229 = vpack.c.b16 %v169, %v167
  %v230 = vpack.c.b16 %v172, %v170
  %v231 = vpack.c.b16 %v173, %v171
  %v232 = vpack.c.b16 %v176, %v174
  %v233 = vpack.c.b16 %v177, %v175
  %v234 = vpack.c.b16 %v180, %v178
  %v235 = vpack.c.b16 %v181, %v179
  %v236 = vpack.c.b16 %v184, %v182
  %v237 = vpack.c.b16 %v185, %v183
  %v238 = vpack.c.b16 %v188, %v186
  %v239 = vpack.c.b16 %v189, %v187
  %v240 = vpack.c.b16 %v192, %v190
  %v241 = vpack.c.b16 %v193, %v191
  %v242 = vpack.c.b16 %v196, %v194
  %v243 = vpack.c.b16 %v197, %v195
  %v244 = vpack.c.b16 %v200, %v198
  %v245 = vpack.c.b16 %v201, %v199
  %v246 = vpack.c.b16 %v204, %v202
  %v247 = vpack.c.b16 %v205, %v203
  %v248 = vpack.c.b16 %v208, %v206
  %v249 = vpack.c.b16 %v209, %v207
  %v250 = vpack.c.b16 %v212, %v210
  %v251 = vpack.c.b16 %v213, %v211
  %v252 = vpack.c.b16 %v216, %v214
  %v253 = vpack.c.b16 %v217, %v215
  %v254 = vpack.c.b16 %v220, %v218
  %v255 = vpack.c.b16 %v221, %v219
  %v256 = vpack.c.b16 %v224, %v222
  %v257 = vpack.c.b16 %v225, %v223
  %v354 = vunpack.c.l.b16 %v66
  %v355 = vunpack.c.h.b16 %v66
  %v356 = vunpack.c.l.b16 %v67
  %v357 = vunpack.c.l.b16 %v68
  %v358 = vunpack.c.h.b16 %v68
  %v359 = vunpack.c.l.b16 %v69
  %v360 = vunpack.c.l.b16 %v70
  %v361 = vunpack.c.h.b16 %v70
  %v362 = vunpack.c.l.b16 %v71
  %v363 = vunpack.c.l.b16 %v72
  %v364 = vunpack.c.h.b16 %v72
  %v365 = vunpack.c.l.b16 %v73
  %v366 = vunpack.c.l.b16 %v74
  %v367 = vunpack.c.h.b16 %v74
  %v368 = vunpack.c.l.b16 %v75
  %v369 = vunpack.c.l.b16 %v76
  %v370 = vunpack.c.h.b16 %v76
  %v371 = vunpack.c.l.b16 %v77
  %v372 = vunpack.c.l.b16 %v78
  %v373 = vunpack.c.h.b16 %v78
  %v374 = vunpack.c.l.b16 %v79
  %v375 = vunpack.c.l.b16 %v80
  %v376 = vunpack.c.h.b16 %v80
  %v377 = vunpack.c.l.b16 %v81
  %v378 = vunpack.c.l.b16 %v82
  %v379 = vunpack.c.h.b16 %v82
  %v380 = vunpack.c.l.b16 %v83
  %v381 = vunpack.c.l.b16 %v84
  %v382 = vunpack.c.h.b16 %v84
  %v383 = vunpack.c.l.b16 %v85
  %v384 = vunpack.c.l.b16 %v86
  %v385 = vunpack.c.h.b16 %v86
  %v386 = vunpack.c.l.b16 %v87
  %v387 = vunpack.c.l.b16 %v88
  %v388 = vunpack.c.h.b16 %v88
  %v389 = vunpack.c.l.b16 %v89
  %v390 = vunpack.c.l.b16 %v90
  %v391 = vunpack.c.h.b16 %v90
  %v392 = vunpack.c.l.b16 %v91
  %v393 = vunpack.c.l.b16 %v92
  %v394 = vunpack.c.h.b16 %v92
  %v395 = vunpack.c.l.b16 %v93
  %v396 = vunpack.c.l.b16 %v94
  %v397 = vunpack.c.h.b16 %v94
  %v398 = vunpack.c.l.b16 %v95
  %v399 = vunpack.c.l.b16 %v96
  %v400 = vunpack.c.h.b16 %v96
  %v401 = vunpack.c.l.b16 %v97
  %v402 = vunpack.c.l.b16 %v98
  %v403 = vunpack.c.h.b16 %v98
  %v404 = vunpack.c.l.b16 %v99
  %v405 = vunpack.c.l.b16 %v100
  %v406 = vunpack.c.h.b16 %v100
  %v407 = vunpack.c.l.b16 %v101
  %v408 = vunpack.c.l.b16 %v102
  %v409 = vunpack.c.h.b16 %v102
  %v410 = vunpack.c.l.b16 %v103
  %v411 = vunpack.c.l.b16 %v104
  %v412 = vunpack.c.h.b16 %v104
  %v413 = vunpack.c.l.b16 %v105
  %v414 = vunpack.c.l.b16 %v106
  %v415 = vunpack.c.h.b16 %v106
  %v416 = vunpack.c.l.b16 %v107
  %v417 = vunpack.c.l.b16 %v108
  %v418 = vunpack.c.h.b16 %v108
  %v419 = vunpack.c.l.b16 %v109
  %v420 = vunpack.c.l.b16 %v110
  %v421 = vunpack.c.h.b16 %v110
  %v422 = vunpack.c.l.b16 %v111
  %v423 = vunpack.c.l.b16 %v112
  %v424 = vunpack.c.h.b16 %v112
  %v425 = vunpack.c.l.b16 %v113
  %v426 = vunpack.c.l.b16 %v114
  %v427 = vunpack.c.h.b16 %v114
  %v428 = vunpack.c.l.b16 %v115
  %v429 = vunpack.c.l.b16 %v116
  %v430 = vunpack.c.h.b16 %v116
  %v431 = vunpack.c.l.b16 %v117
  %v432 = vunpack.c.l.b16 %v118
  %v433 = vunpack.c.h.b16 %v118
  %v434 = vunpack.c.l.b16 %v119
  %v435 = vunpack.c.l.b16 %v120
  %v436 = vunpack.c.h.b16 %v120
  %v437 = vunpack.c.l.b16 %v121
  %v438 = vunpack.c.l.b16 %v122
  %v439 = vunpack.c.h.b16 %v122
  %v440 = vunpack.c.l.b16 %v123
  %v441 = vunpack.c.l.b16 %v124
  %v442 = vunpack.c.h.b16 %v124
  %v443 = vunpack.c.l.b16 %v125
  %v444 = vunpack.c.l.b16 %v126
  %v445 = vunpack.c.h.b16 %v126
  %v446 = vunpack.c.l.b16 %v127
  %v447 = vunpack.c.l.b16 %v128
  %v448 = vunpack.c.h.b16 %v128
  %v449 = vunpack.c.l.b16 %v129
  %v450 = vpack.c.b16 %v357, %v354
  %v451 = vpack.c.b16 %v358, %v355
  %v452 = vpack.c.b16 %v359, %v356
  %v453 = vpack.c.b16 %v363, %v360
  %v454 = vpack.c.b16 %v364, %v361
  %v455 = vpack.c.b16 %v365, %v362
  %v456 = vpack.c.b16 %v369, %v366
  %v457 = vpack.c.b16 %v370, %v367
  %v458 = vpack.c.b16 %v371, %v368
  %v459 = vpack.c.b16 %v375, %v372
  %v460 = vpack.c.b16 %v376, %v373
  %v461 = vpack.c.b16 %v377, %v374
  %v462 = vpack.c.b16 %v381, %v378
  %v463 = vpack.c.b16 %v382, %v379
  %v464 = vpack.c.b16 %v383, %v380
  %v465 = vpack.c.b16 %v387, %v384
  %v466 = vpack.c.b16 %v388, %v385
  %v467 = vpack.c.b16 %v389, %v386
  %v468 = vpack.c.b16 %v393, %v390
  %v469 = vpack.c.b16 %v394, %v391
  %v470 = vpack.c.b16 %v395, %v392
  %v471 = vpack.c.b16 %v399, %v396
  %v472 = vpack.c.b16 %v400, %v397
  %v473 = vpack.c.b16 %v401, %v398
  %v474 = vpack.c.b16 %v405, %v402
  %v475 = vpack.c.b16 %v406, %v403
  %v476 = vpack.c.b16 %v407, %v404
  %v477 = vpack.c.b16 %v411, %v408
  %v478 = vpack.c.b16 %v412, %v409
  %v479 = vpack.c.b16 %v413, %v410
  %v480 = vpack.c.b16 %v417, %v414
  %v481 = vpack.c.b16 %v418, %v415
  %v482 = vpack.c.b16 %v419, %v416
  %v483 = vpack.c.b16 %v423, %v420
  %v484 = vpack.c.b16 %v424, %v421
  %v485 = vpack.c.b16 %v425, %v422
  %v486 = vpack.c.b16 %v429, %v426
  %v487 = vpack.c.b16 %v430, %v427
  %v488 = vpack.c.b16 %v431, %v428
  %v489 = vpack.c.b16 %v435, %v432
  %v490 = vpack.c.b16 %v436, %v433
  %v491 = vpack.c.b16 %v437, %v434
  %v492 = vpack.c.b16 %v441, %v438
  %v493 = vpack.c.b16 %v442, %v439
  %v494 = vpack.c.b16 %v443, %v440
  %v495 = vpack.c.b16 %v447, %v444
  %v496 = vpack.c.b16 %v448, %v445
  %v497 = vpack.c.b16 %v449, %v446
  %546 = vmatpush.bf16.msra.mxu0 %v471
  %547 = vmatpush.bf16.msra.mxu0 %v468
  %548 = vmatpush.bf16.msra.mxu0 %v465
  %549 = vmatpush.bf16.msra.mxu0 %v462
  %550 = vmatpush.bf16.msra.mxu0 %v459
  %551 = vmatpush.bf16.msra.mxu0 %v456
  %552 = vmatpush.bf16.msra.mxu0 %v453
  %553 = vmatpush.bf16.msra.mxu0 %v450
  %554 = vmatmul.bf16.gmra.mxu0 %v226
  %v555 = vpop.f32.mrf.mxu0
  %v556 = vadd.f32 0.0, %v555
  %v557 = vpop.f32.mrf.mxu0
  %v558 = vadd.f32 0.0, %v557
  %559 = vmatmul.bf16.gmra.mxu0 %v228
  %v560 = vpop.f32.mrf.mxu0
  %v561 = vadd.f32 0.0, %v560
  %v562 = vpop.f32.mrf.mxu0
  %v563 = vadd.f32 0.0, %v562
  %564 = vmatmul.bf16.gmra.mxu0 %v230
  %v565 = vpop.f32.mrf.mxu0
  %v566 = vadd.f32 0.0, %v565
  %v567 = vpop.f32.mrf.mxu0
  %v568 = vadd.f32 0.0, %v567
  %569 = vmatmul.bf16.gmra.mxu0 %v232
  %v570 = vpop.f32.mrf.mxu0
  %v571 = vadd.f32 0.0, %v570
  %v572 = vpop.f32.mrf.mxu0
  %v573 = vadd.f32 0.0, %v572
  %574 = vmatmul.bf16.gmra.mxu0 %v234
  %v575 = vpop.f32.mrf.mxu0
  %v576 = vadd.f32 0.0, %v575
  %v577 = vpop.f32.mrf.mxu0
  %v578 = vadd.f32 0.0, %v577
  %579 = vmatmul.bf16.gmra.mxu0 %v236
  %v580 = vpop.f32.mrf.mxu0
  %v581 = vadd.f32 0.0, %v580
  %v582 = vpop.f32.mrf.mxu0
  %v583 = vadd.f32 0.0, %v582
  %584 = vmatmul.bf16.gmra.mxu0 %v238
  %v585 = vpop.f32.mrf.mxu0
  %v586 = vadd.f32 0.0, %v585
  %v587 = vpop.f32.mrf.mxu0
  %v588 = vadd.f32 0.0, %v587
  %589 = vmatmul.bf16.gmra.mxu0 %v240
  %v590 = vpop.f32.mrf.mxu0
  %v591 = vadd.f32 0.0, %v590
  %v592 = vpop.f32.mrf.mxu0
  %v593 = vadd.f32 0.0, %v592
  %594 = vmatmul.bf16.gmra.mxu0 %v242
  %v595 = vpop.f32.mrf.mxu0
  %v596 = vadd.f32 0.0, %v595
  %v597 = vpop.f32.mrf.mxu0
  %v598 = vadd.f32 0.0, %v597
  %599 = vmatmul.bf16.gmra.mxu0 %v244
  %v600 = vpop.f32.mrf.mxu0
  %v601 = vadd.f32 0.0, %v600
  %v602 = vpop.f32.mrf.mxu0
  %v603 = vadd.f32 0.0, %v602
  %604 = vmatmul.bf16.gmra.mxu0 %v246
  %v605 = vpop.f32.mrf.mxu0
  %v606 = vadd.f32 0.0, %v605
  %v607 = vpop.f32.mrf.mxu0
  %v608 = vadd.f32 0.0, %v607
  %609 = vmatmul.bf16.gmra.mxu0 %v248
  %v610 = vpop.f32.mrf.mxu0
  %v611 = vadd.f32 0.0, %v610
  %v612 = vpop.f32.mrf.mxu0
  %v613 = vadd.f32 0.0, %v612
  %614 = vmatmul.bf16.gmra.mxu0 %v250
  %v615 = vpop.f32.mrf.mxu0
  %v616 = vadd.f32 0.0, %v615
  %v617 = vpop.f32.mrf.mxu0
  %v618 = vadd.f32 0.0, %v617
  %619 = vmatmul.bf16.gmra.mxu0 %v252
  %v620 = vpop.f32.mrf.mxu0
  %v621 = vadd.f32 0.0, %v620
  %v622 = vpop.f32.mrf.mxu0
  %v623 = vadd.f32 0.0, %v622
  %624 = vmatmul.bf16.gmra.mxu0 %v254
  %v625 = vpop.f32.mrf.mxu0
  %v626 = vadd.f32 0.0, %v625
  %v627 = vpop.f32.mrf.mxu0
  %v628 = vadd.f32 0.0, %v627
  %629 = vmatmul.bf16.gmra.mxu0 %v256
  %v630 = vpop.f32.mrf.mxu0
  %v631 = vadd.f32 0.0, %v630
  %v632 = vpop.f32.mrf.mxu0
  %v633 = vadd.f32 0.0, %v632
  %634 = vdwg.mxu0
  %635 = vmatpush.bf16.msra.mxu0 %v495
  %636 = vmatpush.bf16.msra.mxu0 %v492
  %637 = vmatpush.bf16.msra.mxu0 %v489
  %638 = vmatpush.bf16.msra.mxu0 %v486
  %639 = vmatpush.bf16.msra.mxu0 %v483
  %640 = vmatpush.bf16.msra.mxu0 %v480
  %641 = vmatpush.bf16.msra.mxu0 %v477
  %642 = vmatpush.bf16.msra.mxu0 %v474
  %643 = vmatmul.bf16.gmra.mxu0 %v227
  %v644 = vpop.f32.mrf.mxu0
  %v645 = vadd.f32 %v556, %v644
  %v646 = vpop.f32.mrf.mxu0
  %v647 = vadd.f32 %v558, %v646
  %648 = vmatmul.bf16.gmra.mxu0 %v229
  %v649 = vpop.f32.mrf.mxu0
  %v650 = vadd.f32 %v561, %v649
  %v651 = vpop.f32.mrf.mxu0
  %v652 = vadd.f32 %v563, %v651
  %653 = vmatmul.bf16.gmra.mxu0 %v231
  %v654 = vpop.f32.mrf.mxu0
  %v655 = vadd.f32 %v566, %v654
  %v656 = vpop.f32.mrf.mxu0
  %v657 = vadd.f32 %v568, %v656
  %658 = vmatmul.bf16.gmra.mxu0 %v233
  %v659 = vpop.f32.mrf.mxu0
  %v660 = vadd.f32 %v571, %v659
  %v661 = vpop.f32.mrf.mxu0
  %v662 = vadd.f32 %v573, %v661
  %663 = vmatmul.bf16.gmra.mxu0 %v235
  %v664 = vpop.f32.mrf.mxu0
  %v665 = vadd.f32 %v576, %v664
  %v666 = vpop.f32.mrf.mxu0
  %v667 = vadd.f32 %v578, %v666
  %668 = vmatmul.bf16.gmra.mxu0 %v237
  %v669 = vpop.f32.mrf.mxu0
  %v670 = vadd.f32 %v581, %v669
  %v671 = vpop.f32.mrf.mxu0
  %v672 = vadd.f32 %v583, %v671
  %673 = vmatmul.bf16.gmra.mxu0 %v239
  %v674 = vpop.f32.mrf.mxu0
  %v675 = vadd.f32 %v586, %v674
  %v676 = vpop.f32.mrf.mxu0
  %v677 = vadd.f32 %v588, %v676
  %678 = vmatmul.bf16.gmra.mxu0 %v241
  %v679 = vpop.f32.mrf.mxu0
  %v680 = vadd.f32 %v591, %v679
  %v681 = vpop.f32.mrf.mxu0
  %v682 = vadd.f32 %v593, %v681
  %683 = vmatmul.bf16.gmra.mxu0 %v243
  %v684 = vpop.f32.mrf.mxu0
  %v685 = vadd.f32 %v596, %v684
  %v686 = vpop.f32.mrf.mxu0
  %v687 = vadd.f32 %v598, %v686
  %688 = vmatmul.bf16.gmra.mxu0 %v245
  %v689 = vpop.f32.mrf.mxu0
  %v690 = vadd.f32 %v601, %v689
  %v691 = vpop.f32.mrf.mxu0
  %v692 = vadd.f32 %v603, %v691
  %693 = vmatmul.bf16.gmra.mxu0 %v247
  %v694 = vpop.f32.mrf.mxu0
  %v695 = vadd.f32 %v606, %v694
  %v696 = vpop.f32.mrf.mxu0
  %v697 = vadd.f32 %v608, %v696
  %698 = vmatmul.bf16.gmra.mxu0 %v249
  %v699 = vpop.f32.mrf.mxu0
  %v700 = vadd.f32 %v611, %v699
  %v701 = vpop.f32.mrf.mxu0
  %v702 = vadd.f32 %v613, %v701
  %703 = vmatmul.bf16.gmra.mxu0 %v251
  %v704 = vpop.f32.mrf.mxu0
  %v705 = vadd.f32 %v616, %v704
  %v706 = vpop.f32.mrf.mxu0
  %v707 = vadd.f32 %v618, %v706
  %708 = vmatmul.bf16.gmra.mxu0 %v253
  %v709 = vpop.f32.mrf.mxu0
  %v710 = vadd.f32 %v621, %v709
  %v711 = vpop.f32.mrf.mxu0
  %v712 = vadd.f32 %v623, %v711
  %713 = vmatmul.bf16.gmra.mxu0 %v255
  %v714 = vpop.f32.mrf.mxu0
  %v715 = vadd.f32 %v626, %v714
  %v716 = vpop.f32.mrf.mxu0
  %v717 = vadd.f32 %v628, %v716
  %718 = vmatmul.bf16.gmra.mxu0 %v257
  %v719 = vpop.f32.mrf.mxu0
  %v720 = vadd.f32 %v631, %v719
  %v721 = vpop.f32.mrf.mxu0
  %v722 = vadd.f32 %v633, %v721
  %723 = vdwg.mxu0
  %724 = vmatpush.bf16.msra.mxu0 %v472
  %725 = vmatpush.bf16.msra.mxu0 %v469
  %726 = vmatpush.bf16.msra.mxu0 %v466
  %727 = vmatpush.bf16.msra.mxu0 %v463
  %728 = vmatpush.bf16.msra.mxu0 %v460
  %729 = vmatpush.bf16.msra.mxu0 %v457
  %730 = vmatpush.bf16.msra.mxu0 %v454
  %731 = vmatpush.bf16.msra.mxu0 %v451
  %732 = vmatmul.bf16.gmra.mxu0 %v226
  %v733 = vpop.f32.mrf.mxu0
  %v734 = vadd.f32 0.0, %v733
  %v735 = vpop.f32.mrf.mxu0
  %v736 = vadd.f32 0.0, %v735
  %737 = vmatmul.bf16.gmra.mxu0 %v228
  %v738 = vpop.f32.mrf.mxu0
  %v739 = vadd.f32 0.0, %v738
  %v740 = vpop.f32.mrf.mxu0
  %v741 = vadd.f32 0.0, %v740
  %742 = vmatmul.bf16.gmra.mxu0 %v230
  %v743 = vpop.f32.mrf.mxu0
  %v744 = vadd.f32 0.0, %v743
  %v745 = vpop.f32.mrf.mxu0
  %v746 = vadd.f32 0.0, %v745
  %747 = vmatmul.bf16.gmra.mxu0 %v232
  %v748 = vpop.f32.mrf.mxu0
  %v749 = vadd.f32 0.0, %v748
  %v750 = vpop.f32.mrf.mxu0
  %v751 = vadd.f32 0.0, %v750
  %752 = vmatmul.bf16.gmra.mxu0 %v234
  %v753 = vpop.f32.mrf.mxu0
  %v754 = vadd.f32 0.0, %v753
  %v755 = vpop.f32.mrf.mxu0
  %v756 = vadd.f32 0.0, %v755
  %757 = vmatmul.bf16.gmra.mxu0 %v236
  %v758 = vpop.f32.mrf.mxu0
  %v759 = vadd.f32 0.0, %v758
  %v760 = vpop.f32.mrf.mxu0
  %v761 = vadd.f32 0.0, %v760
  %762 = vmatmul.bf16.gmra.mxu0 %v238
  %v763 = vpop.f32.mrf.mxu0
  %v764 = vadd.f32 0.0, %v763
  %v765 = vpop.f32.mrf.mxu0
  %v766 = vadd.f32 0.0, %v765
  %767 = vmatmul.bf16.gmra.mxu0 %v240
  %v768 = vpop.f32.mrf.mxu0
  %v769 = vadd.f32 0.0, %v768
  %v770 = vpop.f32.mrf.mxu0
  %v771 = vadd.f32 0.0, %v770
  %772 = vmatmul.bf16.gmra.mxu0 %v242
  %v773 = vpop.f32.mrf.mxu0
  %v774 = vadd.f32 0.0, %v773
  %v775 = vpop.f32.mrf.mxu0
  %v776 = vadd.f32 0.0, %v775
  %777 = vmatmul.bf16.gmra.mxu0 %v244
  %v778 = vpop.f32.mrf.mxu0
  %v779 = vadd.f32 0.0, %v778
  %v780 = vpop.f32.mrf.mxu0
  %v781 = vadd.f32 0.0, %v780
  %782 = vmatmul.bf16.gmra.mxu0 %v246
  %v783 = vpop.f32.mrf.mxu0
  %v784 = vadd.f32 0.0, %v783
  %v785 = vpop.f32.mrf.mxu0
  %v786 = vadd.f32 0.0, %v785
  %787 = vmatmul.bf16.gmra.mxu0 %v248
  %v788 = vpop.f32.mrf.mxu0
  %v789 = vadd.f32 0.0, %v788
  %v790 = vpop.f32.mrf.mxu0
  %v791 = vadd.f32 0.0, %v790
  %792 = vmatmul.bf16.gmra.mxu0 %v250
  %v793 = vpop.f32.mrf.mxu0
  %v794 = vadd.f32 0.0, %v793
  %v795 = vpop.f32.mrf.mxu0
  %v796 = vadd.f32 0.0, %v795
  %797 = vmatmul.bf16.gmra.mxu0 %v252
  %v798 = vpop.f32.mrf.mxu0
  %v799 = vadd.f32 0.0, %v798
  %v800 = vpop.f32.mrf.mxu0
  %v801 = vadd.f32 0.0, %v800
  %802 = vmatmul.bf16.gmra.mxu0 %v254
  %v803 = vpop.f32.mrf.mxu0
  %v804 = vadd.f32 0.0, %v803
  %v805 = vpop.f32.mrf.mxu0
  %v806 = vadd.f32 0.0, %v805
  %807 = vmatmul.bf16.gmra.mxu0 %v256
  %v808 = vpop.f32.mrf.mxu0
  %v809 = vadd.f32 0.0, %v808
  %v810 = vpop.f32.mrf.mxu0
  %v811 = vadd.f32 0.0, %v810
  %812 = vdwg.mxu0
  %813 = vmatpush.bf16.msra.mxu0 %v496
  %814 = vmatpush.bf16.msra.mxu0 %v493
  %815 = vmatpush.bf16.msra.mxu0 %v490
  %816 = vmatpush.bf16.msra.mxu0 %v487
  %817 = vmatpush.bf16.msra.mxu0 %v484
  %818 = vmatpush.bf16.msra.mxu0 %v481
  %819 = vmatpush.bf16.msra.mxu0 %v478
  %820 = vmatpush.bf16.msra.mxu0 %v475
  %821 = vmatmul.bf16.gmra.mxu0 %v227
  %v822 = vpop.f32.mrf.mxu0
  %v823 = vadd.f32 %v734, %v822
  %v824 = vpop.f32.mrf.mxu0
  %v825 = vadd.f32 %v736, %v824
  %826 = vmatmul.bf16.gmra.mxu0 %v229
  %v827 = vpop.f32.mrf.mxu0
  %v828 = vadd.f32 %v739, %v827
  %v829 = vpop.f32.mrf.mxu0
  %v830 = vadd.f32 %v741, %v829
  %831 = vmatmul.bf16.gmra.mxu0 %v231
  %v832 = vpop.f32.mrf.mxu0
  %v833 = vadd.f32 %v744, %v832
  %v834 = vpop.f32.mrf.mxu0
  %v835 = vadd.f32 %v746, %v834
  %836 = vmatmul.bf16.gmra.mxu0 %v233
  %v837 = vpop.f32.mrf.mxu0
  %v838 = vadd.f32 %v749, %v837
  %v839 = vpop.f32.mrf.mxu0
  %v840 = vadd.f32 %v751, %v839
  %841 = vmatmul.bf16.gmra.mxu0 %v235
  %v842 = vpop.f32.mrf.mxu0
  %v843 = vadd.f32 %v754, %v842
  %v844 = vpop.f32.mrf.mxu0
  %v845 = vadd.f32 %v756, %v844
  %846 = vmatmul.bf16.gmra.mxu0 %v237
  %v847 = vpop.f32.mrf.mxu0
  %v848 = vadd.f32 %v759, %v847
  %v849 = vpop.f32.mrf.mxu0
  %v850 = vadd.f32 %v761, %v849
  %851 = vmatmul.bf16.gmra.mxu0 %v239
  %v852 = vpop.f32.mrf.mxu0
  %v853 = vadd.f32 %v764, %v852
  %v854 = vpop.f32.mrf.mxu0
  %v855 = vadd.f32 %v766, %v854
  %856 = vmatmul.bf16.gmra.mxu0 %v241
  %v857 = vpop.f32.mrf.mxu0
  %v858 = vadd.f32 %v769, %v857
  %v859 = vpop.f32.mrf.mxu0
  %v860 = vadd.f32 %v771, %v859
  %861 = vmatmul.bf16.gmra.mxu0 %v243
  %v862 = vpop.f32.mrf.mxu0
  %v863 = vadd.f32 %v774, %v862
  %v864 = vpop.f32.mrf.mxu0
  %v865 = vadd.f32 %v776, %v864
  %866 = vmatmul.bf16.gmra.mxu0 %v245
  %v867 = vpop.f32.mrf.mxu0
  %v868 = vadd.f32 %v779, %v867
  %v869 = vpop.f32.mrf.mxu0
  %v870 = vadd.f32 %v781, %v869
  %871 = vmatmul.bf16.gmra.mxu0 %v247
  %v872 = vpop.f32.mrf.mxu0
  %v873 = vadd.f32 %v784, %v872
  %v874 = vpop.f32.mrf.mxu0
  %v875 = vadd.f32 %v786, %v874
  %876 = vmatmul.bf16.gmra.mxu0 %v249
  %v877 = vpop.f32.mrf.mxu0
  %v878 = vadd.f32 %v789, %v877
  %v879 = vpop.f32.mrf.mxu0
  %v880 = vadd.f32 %v791, %v879
  %881 = vmatmul.bf16.gmra.mxu0 %v251
  %v882 = vpop.f32.mrf.mxu0
  %v883 = vadd.f32 %v794, %v882
  %v884 = vpop.f32.mrf.mxu0
  %v885 = vadd.f32 %v796, %v884
  %886 = vmatmul.bf16.gmra.mxu0 %v253
  %v887 = vpop.f32.mrf.mxu0
  %v888 = vadd.f32 %v799, %v887
  %v889 = vpop.f32.mrf.mxu0
  %v890 = vadd.f32 %v801, %v889
  %891 = vmatmul.bf16.gmra.mxu0 %v255
  %v892 = vpop.f32.mrf.mxu0
  %v893 = vadd.f32 %v804, %v892
  %v894 = vpop.f32.mrf.mxu0
  %v895 = vadd.f32 %v806, %v894
  %896 = vmatmul.bf16.gmra.mxu0 %v257
  %v897 = vpop.f32.mrf.mxu0
  %v898 = vadd.f32 %v809, %v897
  %v899 = vpop.f32.mrf.mxu0
  %v900 = vadd.f32 %v811, %v899
  %901 = vdwg.mxu0
  %902 = vmatpush.bf16.msra.mxu0 %v473
  %903 = vmatpush.bf16.msra.mxu0 %v470
  %904 = vmatpush.bf16.msra.mxu0 %v467
  %905 = vmatpush.bf16.msra.mxu0 %v464
  %906 = vmatpush.bf16.msra.mxu0 %v461
  %907 = vmatpush.bf16.msra.mxu0 %v458
  %908 = vmatpush.bf16.msra.mxu0 %v455
  %909 = vmatpush.bf16.msra.mxu0 %v452
  %910 = vmatmul.bf16.gmra.mxu0 %v226
  %v911 = vpop.f32.mrf.mxu0
  %v912 = vadd.f32 0.0, %v911
  %v913 = vpop.f32.mrf.mxu0
  %v914 = vadd.f32 0.0, %v913
  %915 = vmatmul.bf16.gmra.mxu0 %v228
  %v916 = vpop.f32.mrf.mxu0
  %v917 = vadd.f32 0.0, %v916
  %v918 = vpop.f32.mrf.mxu0
  %v919 = vadd.f32 0.0, %v918
  %920 = vmatmul.bf16.gmra.mxu0 %v230
  %v921 = vpop.f32.mrf.mxu0
  %v922 = vadd.f32 0.0, %v921
  %v923 = vpop.f32.mrf.mxu0
  %v924 = vadd.f32 0.0, %v923
  %925 = vmatmul.bf16.gmra.mxu0 %v232
  %v926 = vpop.f32.mrf.mxu0
  %v927 = vadd.f32 0.0, %v926
  %v928 = vpop.f32.mrf.mxu0
  %v929 = vadd.f32 0.0, %v928
  %930 = vmatmul.bf16.gmra.mxu0 %v234
  %v931 = vpop.f32.mrf.mxu0
  %v932 = vadd.f32 0.0, %v931
  %v933 = vpop.f32.mrf.mxu0
  %v934 = vadd.f32 0.0, %v933
  %935 = vmatmul.bf16.gmra.mxu0 %v236
  %v936 = vpop.f32.mrf.mxu0
  %v937 = vadd.f32 0.0, %v936
  %v938 = vpop.f32.mrf.mxu0
  %v939 = vadd.f32 0.0, %v938
  %940 = vmatmul.bf16.gmra.mxu0 %v238
  %v941 = vpop.f32.mrf.mxu0
  %v942 = vadd.f32 0.0, %v941
  %v943 = vpop.f32.mrf.mxu0
  %v944 = vadd.f32 0.0, %v943
  %945 = vmatmul.bf16.gmra.mxu0 %v240
  %v946 = vpop.f32.mrf.mxu0
  %v947 = vadd.f32 0.0, %v946
  %v948 = vpop.f32.mrf.mxu0
  %v949 = vadd.f32 0.0, %v948
  %950 = vmatmul.bf16.gmra.mxu0 %v242
  %v951 = vpop.f32.mrf.mxu0
  %v952 = vadd.f32 0.0, %v951
  %v953 = vpop.f32.mrf.mxu0
  %v954 = vadd.f32 0.0, %v953
  %955 = vmatmul.bf16.gmra.mxu0 %v244
  %v956 = vpop.f32.mrf.mxu0
  %v957 = vadd.f32 0.0, %v956
  %v958 = vpop.f32.mrf.mxu0
  %v959 = vadd.f32 0.0, %v958
  %960 = vmatmul.bf16.gmra.mxu0 %v246
  %v961 = vpop.f32.mrf.mxu0
  %v962 = vadd.f32 0.0, %v961
  %v963 = vpop.f32.mrf.mxu0
  %v964 = vadd.f32 0.0, %v963
  %965 = vmatmul.bf16.gmra.mxu0 %v248
  %v966 = vpop.f32.mrf.mxu0
  %v967 = vadd.f32 0.0, %v966
  %v968 = vpop.f32.mrf.mxu0
  %v969 = vadd.f32 0.0, %v968
  %970 = vmatmul.bf16.gmra.mxu0 %v250
  %v971 = vpop.f32.mrf.mxu0
  %v972 = vadd.f32 0.0, %v971
  %v973 = vpop.f32.mrf.mxu0
  %v974 = vadd.f32 0.0, %v973
  %975 = vmatmul.bf16.gmra.mxu0 %v252
  %v976 = vpop.f32.mrf.mxu0
  %v977 = vadd.f32 0.0, %v976
  %v978 = vpop.f32.mrf.mxu0
  %v979 = vadd.f32 0.0, %v978
  %980 = vmatmul.bf16.gmra.mxu0 %v254
  %v981 = vpop.f32.mrf.mxu0
  %v982 = vadd.f32 0.0, %v981
  %v983 = vpop.f32.mrf.mxu0
  %v984 = vadd.f32 0.0, %v983
  %985 = vmatmul.bf16.gmra.mxu0 %v256
  %v986 = vpop.f32.mrf.mxu0
  %v987 = vadd.f32 0.0, %v986
  %v988 = vpop.f32.mrf.mxu0
  %v989 = vadd.f32 0.0, %v988
  %990 = vdwg.mxu0
  %991 = vmatpush.bf16.msra.mxu0 %v497
  %992 = vmatpush.bf16.msra.mxu0 %v494
  %993 = vmatpush.bf16.msra.mxu0 %v491
  %994 = vmatpush.bf16.msra.mxu0 %v488
  %995 = vmatpush.bf16.msra.mxu0 %v485
  %996 = vmatpush.bf16.msra.mxu0 %v482
  %997 = vmatpush.bf16.msra.mxu0 %v479
  %998 = vmatpush.bf16.msra.mxu0 %v476
  %999 = vmatmul.bf16.gmra.mxu0 %v227
  %v1000 = vpop.f32.mrf.mxu0
  %v1001 = vadd.f32 %v912, %v1000
  %v1002 = vpop.f32.mrf.mxu0
  %v1003 = vadd.f32 %v914, %v1002
  %1004 = vmatmul.bf16.gmra.mxu0 %v229
  %v1005 = vpop.f32.mrf.mxu0
  %v1006 = vadd.f32 %v917, %v1005
  %v1007 = vpop.f32.mrf.mxu0
  %v1008 = vadd.f32 %v919, %v1007
  %1009 = vmatmul.bf16.gmra.mxu0 %v231
  %v1010 = vpop.f32.mrf.mxu0
  %v1011 = vadd.f32 %v922, %v1010
  %v1012 = vpop.f32.mrf.mxu0
  %v1013 = vadd.f32 %v924, %v1012
  %1014 = vmatmul.bf16.gmra.mxu0 %v233
  %v1015 = vpop.f32.mrf.mxu0
  %v1016 = vadd.f32 %v927, %v1015
  %v1017 = vpop.f32.mrf.mxu0
  %v1018 = vadd.f32 %v929, %v1017
  %1019 = vmatmul.bf16.gmra.mxu0 %v235
  %v1020 = vpop.f32.mrf.mxu0
  %v1021 = vadd.f32 %v932, %v1020
  %v1022 = vpop.f32.mrf.mxu0
  %v1023 = vadd.f32 %v934, %v1022
  %1024 = vmatmul.bf16.gmra.mxu0 %v237
  %v1025 = vpop.f32.mrf.mxu0
  %v1026 = vadd.f32 %v937, %v1025
  %v1027 = vpop.f32.mrf.mxu0
  %v1028 = vadd.f32 %v939, %v1027
  %1029 = vmatmul.bf16.gmra.mxu0 %v239
  %v1030 = vpop.f32.mrf.mxu0
  %v1031 = vadd.f32 %v942, %v1030
  %v1032 = vpop.f32.mrf.mxu0
  %v1033 = vadd.f32 %v944, %v1032
  %1034 = vmatmul.bf16.gmra.mxu0 %v241
  %v1035 = vpop.f32.mrf.mxu0
  %v1036 = vadd.f32 %v947, %v1035
  %v1037 = vpop.f32.mrf.mxu0
  %v1038 = vadd.f32 %v949, %v1037
  %1039 = vmatmul.bf16.gmra.mxu0 %v243
  %v1040 = vpop.f32.mrf.mxu0
  %v1041 = vadd.f32 %v952, %v1040
  %v1042 = vpop.f32.mrf.mxu0
  %v1043 = vadd.f32 %v954, %v1042
  %1044 = vmatmul.bf16.gmra.mxu0 %v245
  %v1045 = vpop.f32.mrf.mxu0
  %v1046 = vadd.f32 %v957, %v1045
  %v1047 = vpop.f32.mrf.mxu0
  %v1048 = vadd.f32 %v959, %v1047
  %1049 = vmatmul.bf16.gmra.mxu0 %v247
  %v1050 = vpop.f32.mrf.mxu0
  %v1051 = vadd.f32 %v962, %v1050
  %v1052 = vpop.f32.mrf.mxu0
  %v1053 = vadd.f32 %v964, %v1052
  %1054 = vmatmul.bf16.gmra.mxu0 %v249
  %v1055 = vpop.f32.mrf.mxu0
  %v1056 = vadd.f32 %v967, %v1055
  %v1057 = vpop.f32.mrf.mxu0
  %v1058 = vadd.f32 %v969, %v1057
  %1059 = vmatmul.bf16.gmra.mxu0 %v251
  %v1060 = vpop.f32.mrf.mxu0
  %v1061 = vadd.f32 %v972, %v1060
  %v1062 = vpop.f32.mrf.mxu0
  %v1063 = vadd.f32 %v974, %v1062
  %1064 = vmatmul.bf16.gmra.mxu0 %v253
  %v1065 = vpop.f32.mrf.mxu0
  %v1066 = vadd.f32 %v977, %v1065
  %v1067 = vpop.f32.mrf.mxu0
  %v1068 = vadd.f32 %v979, %v1067
  %1069 = vmatmul.bf16.gmra.mxu0 %v255
  %v1070 = vpop.f32.mrf.mxu0
  %v1071 = vadd.f32 %v982, %v1070
  %v1072 = vpop.f32.mrf.mxu0
  %v1073 = vadd.f32 %v984, %v1072
  %1074 = vmatmul.bf16.gmra.mxu0 %v257
  %v1075 = vpop.f32.mrf.mxu0
  %v1076 = vadd.f32 %v987, %v1075
  %v1077 = vpop.f32.mrf.mxu0
  %v1078 = vadd.f32 %v989, %v1077
  %1079 = vdwg.mxu0
  %v1080 = vld [vmem:[%s1] sm:$0xff]
  %v1081 = vld [vmem:[%s1 + $0x8] sm:$0xff]
  %v1082 = vld [vmem:[%s1 + $0x10] sm:$0xff]
  %v1083 = vld [vmem:[%s1 + $0x18] sm:$0xff]
  %v1084 = vld [vmem:[%s1 + $0x20] sm:$0xff]
  %v1085 = vld [vmem:[%s1 + $0x28] sm:$0xff]
  %v1086 = vld [vmem:[%s1 + $0x30] sm:$0xff]
  %v1087 = vld [vmem:[%s1 + $0x38] sm:$0xff]
  %v1088 = vld [vmem:[%s1 + $0x40] sm:$0xff]
  %v1089 = vld [vmem:[%s1 + $0x48] sm:$0xff]
  %v1090 = vld [vmem:[%s1 + $0x50] sm:$0xff]
  %v1091 = vld [vmem:[%s1 + $0x58] sm:$0xff]
  %v1092 = vld [vmem:[%s1 + $0x60] sm:$0xff]
  %v1093 = vld [vmem:[%s1 + $0x68] sm:$0xff]
  %v1094 = vld [vmem:[%s1 + $0x70] sm:$0xff]
  %v1095 = vld [vmem:[%s1 + $0x78] sm:$0xff]
  %v1096 = vld [vmem:[%s1 + $0x80] sm:$0xff]
  %v1097 = vld [vmem:[%s1 + $0x88] sm:$0xff]
  %v1098 = vld [vmem:[%s1 + $0x90] sm:$0xff]
  %v1099 = vld [vmem:[%s1 + $0x98] sm:$0xff]
  %v1100 = vld [vmem:[%s1 + $0xa0] sm:$0xff]
  %v1101 = vld [vmem:[%s1 + $0xa8] sm:$0xff]
  %v1102 = vld [vmem:[%s1 + $0xb0] sm:$0xff]
  %v1103 = vld [vmem:[%s1 + $0xb8] sm:$0xff]
  %v1104 = vld [vmem:[%s1 + $0xc0] sm:$0xff]
  %v1105 = vld [vmem:[%s1 + $0xc8] sm:$0xff]
  %v1106 = vld [vmem:[%s1 + $0xd0] sm:$0xff]
  %v1107 = vld [vmem:[%s1 + $0xd8] sm:$0xff]
  %v1108 = vld [vmem:[%s1 + $0xe0] sm:$0xff]
  %v1109 = vld [vmem:[%s1 + $0xe8] sm:$0xff]
  %v1110 = vld [vmem:[%s1 + $0xf0] sm:$0xff]
  %v1111 = vld [vmem:[%s1 + $0xf8] sm:$0xff]
  %1113 = vset.pattern.permute.xlu0 0
  %1114 = vperm.xlu0 %1113, %v1080
  %v1115 = vpop.permute.xlu0 %1114
  %1118 = vset.pattern.permute.xlu0 0
  %1119 = vperm.xlu0 %1118, %v1081
  %v1120 = vpop.permute.xlu0 %1119
  %1123 = vset.pattern.permute.xlu0 0
  %1124 = vperm.xlu0 %1123, %v1082
  %v1125 = vpop.permute.xlu0 %1124
  %1128 = vset.pattern.permute.xlu0 0
  %1129 = vperm.xlu0 %1128, %v1083
  %v1130 = vpop.permute.xlu0 %1129
  %1133 = vset.pattern.permute.xlu0 0
  %1134 = vperm.xlu0 %1133, %v1084
  %v1135 = vpop.permute.xlu0 %1134
  %1138 = vset.pattern.permute.xlu0 0
  %1139 = vperm.xlu0 %1138, %v1085
  %v1140 = vpop.permute.xlu0 %1139
  %1143 = vset.pattern.permute.xlu0 0
  %1144 = vperm.xlu0 %1143, %v1086
  %v1145 = vpop.permute.xlu0 %1144
  %1148 = vset.pattern.permute.xlu0 0
  %1149 = vperm.xlu0 %1148, %v1087
  %v1150 = vpop.permute.xlu0 %1149
  %1153 = vset.pattern.permute.xlu0 0
  %1154 = vperm.xlu0 %1153, %v1088
  %v1155 = vpop.permute.xlu0 %1154
  %1158 = vset.pattern.permute.xlu0 0
  %1159 = vperm.xlu0 %1158, %v1089
  %v1160 = vpop.permute.xlu0 %1159
  %1163 = vset.pattern.permute.xlu0 0
  %1164 = vperm.xlu0 %1163, %v1090
  %v1165 = vpop.permute.xlu0 %1164
  %1168 = vset.pattern.permute.xlu0 0
  %1169 = vperm.xlu0 %1168, %v1091
  %v1170 = vpop.permute.xlu0 %1169
  %1173 = vset.pattern.permute.xlu0 0
  %1174 = vperm.xlu0 %1173, %v1092
  %v1175 = vpop.permute.xlu0 %1174
  %1178 = vset.pattern.permute.xlu0 0
  %1179 = vperm.xlu0 %1178, %v1093
  %v1180 = vpop.permute.xlu0 %1179
  %1183 = vset.pattern.permute.xlu0 0
  %1184 = vperm.xlu0 %1183, %v1094
  %v1185 = vpop.permute.xlu0 %1184
  %1188 = vset.pattern.permute.xlu0 0
  %1189 = vperm.xlu0 %1188, %v1095
  %v1190 = vpop.permute.xlu0 %1189
  %1193 = vset.pattern.permute.xlu0 0
  %1194 = vperm.xlu0 %1193, %v1096
  %v1195 = vpop.permute.xlu0 %1194
  %1198 = vset.pattern.permute.xlu0 0
  %1199 = vperm.xlu0 %1198, %v1097
  %v1200 = vpop.permute.xlu0 %1199
  %1203 = vset.pattern.permute.xlu0 0
  %1204 = vperm.xlu0 %1203, %v1098
  %v1205 = vpop.permute.xlu0 %1204
  %1208 = vset.pattern.permute.xlu0 0
  %1209 = vperm.xlu0 %1208, %v1099
  %v1210 = vpop.permute.xlu0 %1209
  %1213 = vset.pattern.permute.xlu0 0
  %1214 = vperm.xlu0 %1213, %v1100
  %v1215 = vpop.permute.xlu0 %1214
  %1218 = vset.pattern.permute.xlu0 0
  %1219 = vperm.xlu0 %1218, %v1101
  %v1220 = vpop.permute.xlu0 %1219
  %1223 = vset.pattern.permute.xlu0 0
  %1224 = vperm.xlu0 %1223, %v1102
  %v1225 = vpop.permute.xlu0 %1224
  %1228 = vset.pattern.permute.xlu0 0
  %1229 = vperm.xlu0 %1228, %v1103
  %v1230 = vpop.permute.xlu0 %1229
  %1233 = vset.pattern.permute.xlu0 0
  %1234 = vperm.xlu0 %1233, %v1104
  %v1235 = vpop.permute.xlu0 %1234
  %1238 = vset.pattern.permute.xlu0 0
  %1239 = vperm.xlu0 %1238, %v1105
  %v1240 = vpop.permute.xlu0 %1239
  %1243 = vset.pattern.permute.xlu0 0
  %1244 = vperm.xlu0 %1243, %v1106
  %v1245 = vpop.permute.xlu0 %1244
  %1248 = vset.pattern.permute.xlu0 0
  %1249 = vperm.xlu0 %1248, %v1107
  %v1250 = vpop.permute.xlu0 %1249
  %1253 = vset.pattern.permute.xlu0 0
  %1254 = vperm.xlu0 %1253, %v1108
  %v1255 = vpop.permute.xlu0 %1254
  %1258 = vset.pattern.permute.xlu0 0
  %1259 = vperm.xlu0 %1258, %v1109
  %v1260 = vpop.permute.xlu0 %1259
  %1263 = vset.pattern.permute.xlu0 0
  %1264 = vperm.xlu0 %1263, %v1110
  %v1265 = vpop.permute.xlu0 %1264
  %1268 = vset.pattern.permute.xlu0 0
  %1269 = vperm.xlu0 %1268, %v1111
  %v1270 = vpop.permute.xlu0 %1269
  %v1272 = vmul.f32 %v645, %v1115
  %v1273 = vmul.f32 %v823, %v1115
  %v1274 = vmul.f32 %v1001, %v1115
  %v1275 = vmul.f32 %v647, %v1120
  %v1276 = vmul.f32 %v825, %v1120
  %v1277 = vmul.f32 %v1003, %v1120
  %v1278 = vmul.f32 %v650, %v1125
  %v1279 = vmul.f32 %v828, %v1125
  %v1280 = vmul.f32 %v1006, %v1125
  %v1281 = vmul.f32 %v652, %v1130
  %v1282 = vmul.f32 %v830, %v1130
  %v1283 = vmul.f32 %v1008, %v1130
  %v1284 = vmul.f32 %v655, %v1135
  %v1285 = vmul.f32 %v833, %v1135
  %v1286 = vmul.f32 %v1011, %v1135
  %v1287 = vmul.f32 %v657, %v1140
  %v1288 = vmul.f32 %v835, %v1140
  %v1289 = vmul.f32 %v1013, %v1140
  %v1290 = vmul.f32 %v660, %v1145
  %v1291 = vmul.f32 %v838, %v1145
  %v1292 = vmul.f32 %v1016, %v1145
  %v1293 = vmul.f32 %v662, %v1150
  %v1294 = vmul.f32 %v840, %v1150
  %v1295 = vmul.f32 %v1018, %v1150
  %v1296 = vmul.f32 %v665, %v1155
  %v1297 = vmul.f32 %v843, %v1155
  %v1298 = vmul.f32 %v1021, %v1155
  %v1299 = vmul.f32 %v667, %v1160
  %v1300 = vmul.f32 %v845, %v1160
  %v1301 = vmul.f32 %v1023, %v1160
  %v1302 = vmul.f32 %v670, %v1165
  %v1303 = vmul.f32 %v848, %v1165
  %v1304 = vmul.f32 %v1026, %v1165
  %v1305 = vmul.f32 %v672, %v1170
  %v1306 = vmul.f32 %v850, %v1170
  %v1307 = vmul.f32 %v1028, %v1170
  %v1308 = vmul.f32 %v675, %v1175
  %v1309 = vmul.f32 %v853, %v1175
  %v1310 = vmul.f32 %v1031, %v1175
  %v1311 = vmul.f32 %v677, %v1180
  %v1312 = vmul.f32 %v855, %v1180
  %v1313 = vmul.f32 %v1033, %v1180
  %v1314 = vmul.f32 %v680, %v1185
  %v1315 = vmul.f32 %v858, %v1185
  %v1316 = vmul.f32 %v1036, %v1185
  %v1317 = vmul.f32 %v682, %v1190
  %v1318 = vmul.f32 %v860, %v1190
  %v1319 = vmul.f32 %v1038, %v1190
  %v1320 = vmul.f32 %v685, %v1195
  %v1321 = vmul.f32 %v863, %v1195
  %v1322 = vmul.f32 %v1041, %v1195
  %v1323 = vmul.f32 %v687, %v1200
  %v1324 = vmul.f32 %v865, %v1200
  %v1325 = vmul.f32 %v1043, %v1200
  %v1326 = vmul.f32 %v690, %v1205
  %v1327 = vmul.f32 %v868, %v1205
  %v1328 = vmul.f32 %v1046, %v1205
  %v1329 = vmul.f32 %v692, %v1210
  %v1330 = vmul.f32 %v870, %v1210
  %v1331 = vmul.f32 %v1048, %v1210
  %v1332 = vmul.f32 %v695, %v1215
  %v1333 = vmul.f32 %v873, %v1215
  %v1334 = vmul.f32 %v1051, %v1215
  %v1335 = vmul.f32 %v697, %v1220
  %v1336 = vmul.f32 %v875, %v1220
  %v1337 = vmul.f32 %v1053, %v1220
  %v1338 = vmul.f32 %v700, %v1225
  %v1339 = vmul.f32 %v878, %v1225
  %v1340 = vmul.f32 %v1056, %v1225
  %v1341 = vmul.f32 %v702, %v1230
  %v1342 = vmul.f32 %v880, %v1230
  %v1343 = vmul.f32 %v1058, %v1230
  %v1344 = vmul.f32 %v705, %v1235
  %v1345 = vmul.f32 %v883, %v1235
  %v1346 = vmul.f32 %v1061, %v1235
  %v1347 = vmul.f32 %v707, %v1240
  %v1348 = vmul.f32 %v885, %v1240
  %v1349 = vmul.f32 %v1063, %v1240
  %v1350 = vmul.f32 %v710, %v1245
  %v1351 = vmul.f32 %v888, %v1245
  %v1352 = vmul.f32 %v1066, %v1245
  %v1353 = vmul.f32 %v712, %v1250
  %v1354 = vmul.f32 %v890, %v1250
  %v1355 = vmul.f32 %v1068, %v1250
  %v1356 = vmul.f32 %v715, %v1255
  %v1357 = vmul.f32 %v893, %v1255
  %v1358 = vmul.f32 %v1071, %v1255
  %v1359 = vmul.f32 %v717, %v1260
  %v1360 = vmul.f32 %v895, %v1260
  %v1361 = vmul.f32 %v1073, %v1260
  %v1362 = vmul.f32 %v720, %v1265
  %v1363 = vmul.f32 %v898, %v1265
  %v1364 = vmul.f32 %v1076, %v1265
  %v1365 = vmul.f32 %v722, %v1270
  %v1366 = vmul.f32 %v900, %v1270
  %v1367 = vmul.f32 %v1078, %v1270
  %v1368 = vld [vmem:[%s4] sm:$0x7]
  %v1370 = vperm.slane %v1368, 0
  %v1371 = vperm.slane %v1368, 1
  %v1372 = vperm.slane %v1368, 2
  %v1376 = vadd.f32 %v1272, %v1370
  %v1377 = vadd.f32 %v1273, %v1371
  %v1378 = vadd.f32 %v1274, %v1372
  %v1379 = vadd.f32 %v1275, %v1370
  %v1380 = vadd.f32 %v1276, %v1371
  %v1381 = vadd.f32 %v1277, %v1372
  %v1382 = vadd.f32 %v1278, %v1370
  %v1383 = vadd.f32 %v1279, %v1371
  %v1384 = vadd.f32 %v1280, %v1372
  %v1385 = vadd.f32 %v1281, %v1370
  %v1386 = vadd.f32 %v1282, %v1371
  %v1387 = vadd.f32 %v1283, %v1372
  %v1388 = vadd.f32 %v1284, %v1370
  %v1389 = vadd.f32 %v1285, %v1371
  %v1390 = vadd.f32 %v1286, %v1372
  %v1391 = vadd.f32 %v1287, %v1370
  %v1392 = vadd.f32 %v1288, %v1371
  %v1393 = vadd.f32 %v1289, %v1372
  %v1394 = vadd.f32 %v1290, %v1370
  %v1395 = vadd.f32 %v1291, %v1371
  %v1396 = vadd.f32 %v1292, %v1372
  %v1397 = vadd.f32 %v1293, %v1370
  %v1398 = vadd.f32 %v1294, %v1371
  %v1399 = vadd.f32 %v1295, %v1372
  %v1400 = vadd.f32 %v1296, %v1370
  %v1401 = vadd.f32 %v1297, %v1371
  %v1402 = vadd.f32 %v1298, %v1372
  %v1403 = vadd.f32 %v1299, %v1370
  %v1404 = vadd.f32 %v1300, %v1371
  %v1405 = vadd.f32 %v1301, %v1372
  %v1406 = vadd.f32 %v1302, %v1370
  %v1407 = vadd.f32 %v1303, %v1371
  %v1408 = vadd.f32 %v1304, %v1372
  %v1409 = vadd.f32 %v1305, %v1370
  %v1410 = vadd.f32 %v1306, %v1371
  %v1411 = vadd.f32 %v1307, %v1372
  %v1412 = vadd.f32 %v1308, %v1370
  %v1413 = vadd.f32 %v1309, %v1371
  %v1414 = vadd.f32 %v1310, %v1372
  %v1415 = vadd.f32 %v1311, %v1370
  %v1416 = vadd.f32 %v1312, %v1371
  %v1417 = vadd.f32 %v1313, %v1372
  %v1418 = vadd.f32 %v1314, %v1370
  %v1419 = vadd.f32 %v1315, %v1371
  %v1420 = vadd.f32 %v1316, %v1372
  %v1421 = vadd.f32 %v1317, %v1370
  %v1422 = vadd.f32 %v1318, %v1371
  %v1423 = vadd.f32 %v1319, %v1372
  %v1424 = vadd.f32 %v1320, %v1370
  %v1425 = vadd.f32 %v1321, %v1371
  %v1426 = vadd.f32 %v1322, %v1372
  %v1427 = vadd.f32 %v1323, %v1370
  %v1428 = vadd.f32 %v1324, %v1371
  %v1429 = vadd.f32 %v1325, %v1372
  %v1430 = vadd.f32 %v1326, %v1370
  %v1431 = vadd.f32 %v1327, %v1371
  %v1432 = vadd.f32 %v1328, %v1372
  %v1433 = vadd.f32 %v1329, %v1370
  %v1434 = vadd.f32 %v1330, %v1371
  %v1435 = vadd.f32 %v1331, %v1372
  %v1436 = vadd.f32 %v1332, %v1370
  %v1437 = vadd.f32 %v1333, %v1371
  %v1438 = vadd.f32 %v1334, %v1372
  %v1439 = vadd.f32 %v1335, %v1370
  %v1440 = vadd.f32 %v1336, %v1371
  %v1441 = vadd.f32 %v1337, %v1372
  %v1442 = vadd.f32 %v1338, %v1370
  %v1443 = vadd.f32 %v1339, %v1371
  %v1444 = vadd.f32 %v1340, %v1372
  %v1445 = vadd.f32 %v1341, %v1370
  %v1446 = vadd.f32 %v1342, %v1371
  %v1447 = vadd.f32 %v1343, %v1372
  %v1448 = vadd.f32 %v1344, %v1370
  %v1449 = vadd.f32 %v1345, %v1371
  %v1450 = vadd.f32 %v1346, %v1372
  %v1451 = vadd.f32 %v1347, %v1370
  %v1452 = vadd.f32 %v1348, %v1371
  %v1453 = vadd.f32 %v1349, %v1372
  %v1454 = vadd.f32 %v1350, %v1370
  %v1455 = vadd.f32 %v1351, %v1371
  %v1456 = vadd.f32 %v1352, %v1372
  %v1457 = vadd.f32 %v1353, %v1370
  %v1458 = vadd.f32 %v1354, %v1371
  %v1459 = vadd.f32 %v1355, %v1372
  %v1460 = vadd.f32 %v1356, %v1370
  %v1461 = vadd.f32 %v1357, %v1371
  %v1462 = vadd.f32 %v1358, %v1372
  %v1463 = vadd.f32 %v1359, %v1370
  %v1464 = vadd.f32 %v1360, %v1371
  %v1465 = vadd.f32 %v1361, %v1372
  %v1466 = vadd.f32 %v1362, %v1370
  %v1467 = vadd.f32 %v1363, %v1371
  %v1468 = vadd.f32 %v1364, %v1372
  %v1469 = vadd.f32 %v1365, %v1370
  %v1470 = vadd.f32 %v1366, %v1371
  %v1471 = vadd.f32 %v1367, %v1372
  %v1472 = vld [vmem:[%s3] sm:$0xff]
  %v1473 = vld [vmem:[%s3 + $0x8] sm:$0xff]
  %v1474 = vld [vmem:[%s3 + $0x10] sm:$0xff]
  %v1475 = vld [vmem:[%s3 + $0x18] sm:$0xff]
  %v1476 = vld [vmem:[%s3 + $0x20] sm:$0xff]
  %v1477 = vld [vmem:[%s3 + $0x28] sm:$0xff]
  %v1478 = vld [vmem:[%s3 + $0x30] sm:$0xff]
  %v1479 = vld [vmem:[%s3 + $0x38] sm:$0xff]
  %v1480 = vld [vmem:[%s3 + $0x40] sm:$0xff]
  %v1481 = vld [vmem:[%s3 + $0x48] sm:$0xff]
  %v1482 = vld [vmem:[%s3 + $0x50] sm:$0xff]
  %v1483 = vld [vmem:[%s3 + $0x58] sm:$0xff]
  %v1484 = vld [vmem:[%s3 + $0x60] sm:$0xff]
  %v1485 = vld [vmem:[%s3 + $0x68] sm:$0xff]
  %v1486 = vld [vmem:[%s3 + $0x70] sm:$0xff]
  %v1487 = vld [vmem:[%s3 + $0x78] sm:$0xff]
  %v1488 = vld [vmem:[%s3 + $0x80] sm:$0xff]
  %v1489 = vld [vmem:[%s3 + $0x88] sm:$0xff]
  %v1490 = vld [vmem:[%s3 + $0x90] sm:$0xff]
  %v1491 = vld [vmem:[%s3 + $0x98] sm:$0xff]
  %v1492 = vld [vmem:[%s3 + $0xa0] sm:$0xff]
  %v1493 = vld [vmem:[%s3 + $0xa8] sm:$0xff]
  %v1494 = vld [vmem:[%s3 + $0xb0] sm:$0xff]
  %v1495 = vld [vmem:[%s3 + $0xb8] sm:$0xff]
  %v1496 = vld [vmem:[%s3 + $0xc0] sm:$0xff]
  %v1497 = vld [vmem:[%s3 + $0xc8] sm:$0xff]
  %v1498 = vld [vmem:[%s3 + $0xd0] sm:$0xff]
  %v1499 = vld [vmem:[%s3 + $0xd8] sm:$0xff]
  %v1500 = vld [vmem:[%s3 + $0xe0] sm:$0xff]
  %v1501 = vld [vmem:[%s3 + $0xe8] sm:$0xff]
  %v1502 = vld [vmem:[%s3 + $0xf0] sm:$0xff]
  %v1503 = vld [vmem:[%s3 + $0xf8] sm:$0xff]
  %v1504 = vpack.c.bf16 %v1473, %v1472
  %v1505 = vpack.c.bf16 %v1475, %v1474
  %v1506 = vpack.c.bf16 %v1477, %v1476
  %v1507 = vpack.c.bf16 %v1479, %v1478
  %v1508 = vpack.c.bf16 %v1481, %v1480
  %v1509 = vpack.c.bf16 %v1483, %v1482
  %v1510 = vpack.c.bf16 %v1485, %v1484
  %v1511 = vpack.c.bf16 %v1487, %v1486
  %v1512 = vpack.c.bf16 %v1489, %v1488
  %v1513 = vpack.c.bf16 %v1491, %v1490
  %v1514 = vpack.c.bf16 %v1493, %v1492
  %v1515 = vpack.c.bf16 %v1495, %v1494
  %v1516 = vpack.c.bf16 %v1497, %v1496
  %v1517 = vpack.c.bf16 %v1499, %v1498
  %v1518 = vpack.c.bf16 %v1501, %v1500
  %v1519 = vpack.c.bf16 %v1503, %v1502
  %v1520 = vld [vmem:[%s5] sm:$0xff]
  %v1521 = vld [vmem:[%s5 + $0x8] sm:$0xff]
  %v1522 = vld [vmem:[%s5 + $0x10] sm:$0xff]
  %v1523 = vld [vmem:[%s5 + $0x18] sm:$0xff]
  %v1524 = vld [vmem:[%s5 + $0x20] sm:$0xff]
  %v1525 = vld [vmem:[%s5 + $0x28] sm:$0xff]
  %v1526 = vld [vmem:[%s5 + $0x30] sm:$0xff]
  %v1527 = vld [vmem:[%s5 + $0x38] sm:$0xff]
  %v1528 = vld [vmem:[%s5 + $0x40] sm:$0xff]
  %v1529 = vld [vmem:[%s5 + $0x48] sm:$0xff]
  %v1530 = vld [vmem:[%s5 + $0x50] sm:$0xff]
  %v1531 = vld [vmem:[%s5 + $0x58] sm:$0xff]
  %v1532 = vld [vmem:[%s5 + $0x60] sm:$0xff]
  %v1533 = vld [vmem:[%s5 + $0x68] sm:$0xff]
  %v1534 = vld [vmem:[%s5 + $0x70] sm:$0xff]
  %v1535 = vld [vmem:[%s5 + $0x78] sm:$0xff]
  %v1552 = vunpack.c.l.b16 %v1520
  %v1553 = vunpack.c.h.b16 %v1520
  %v1554 = vunpack.c.l.b16 %v1521
  %v1555 = vunpack.c.h.b16 %v1521
  %v1556 = vunpack.c.l.b16 %v1522
  %v1557 = vunpack.c.h.b16 %v1522
  %v1558 = vunpack.c.l.b16 %v1523
  %v1559 = vunpack.c.h.b16 %v1523
  %v1560 = vunpack.c.l.b16 %v1524
  %v1561 = vunpack.c.h.b16 %v1524
  %v1562 = vunpack.c.l.b16 %v1525
  %v1563 = vunpack.c.h.b16 %v1525
  %v1564 = vunpack.c.l.b16 %v1526
  %v1565 = vunpack.c.h.b16 %v1526
  %v1566 = vunpack.c.l.b16 %v1527
  %v1567 = vunpack.c.h.b16 %v1527
  %v1568 = vunpack.c.l.b16 %v1528
  %v1569 = vunpack.c.h.b16 %v1528
  %v1570 = vunpack.c.l.b16 %v1529
  %v1571 = vunpack.c.h.b16 %v1529
  %v1572 = vunpack.c.l.b16 %v1530
  %v1573 = vunpack.c.h.b16 %v1530
  %v1574 = vunpack.c.l.b16 %v1531
  %v1575 = vunpack.c.h.b16 %v1531
  %v1576 = vunpack.c.l.b16 %v1532
  %v1577 = vunpack.c.h.b16 %v1532
  %v1578 = vunpack.c.l.b16 %v1533
  %v1579 = vunpack.c.h.b16 %v1533
  %v1580 = vunpack.c.l.b16 %v1534
  %v1581 = vunpack.c.h.b16 %v1534
  %v1582 = vunpack.c.l.b16 %v1535
  %v1583 = vunpack.c.h.b16 %v1535
  %v1584 = vpack.c.b16 %v1554, %v1552
  %v1585 = vpack.c.b16 %v1555, %v1553
  %v1586 = vpack.c.b16 %v1558, %v1556
  %v1587 = vpack.c.b16 %v1559, %v1557
  %v1588 = vpack.c.b16 %v1562, %v1560
  %v1589 = vpack.c.b16 %v1563, %v1561
  %v1590 = vpack.c.b16 %v1566, %v1564
  %v1591 = vpack.c.b16 %v1567, %v1565
  %v1592 = vpack.c.b16 %v1570, %v1568
  %v1593 = vpack.c.b16 %v1571, %v1569
  %v1594 = vpack.c.b16 %v1574, %v1572
  %v1595 = vpack.c.b16 %v1575, %v1573
  %v1596 = vpack.c.b16 %v1578, %v1576
  %v1597 = vpack.c.b16 %v1579, %v1577
  %v1598 = vpack.c.b16 %v1582, %v1580
  %v1599 = vpack.c.b16 %v1583, %v1581
  %1616 = vmatpush.bf16.msra.mxu0 %v1598
  %1617 = vmatpush.bf16.msra.mxu0 %v1596
  %1618 = vmatpush.bf16.msra.mxu0 %v1594
  %1619 = vmatpush.bf16.msra.mxu0 %v1592
  %1620 = vmatpush.bf16.msra.mxu0 %v1590
  %1621 = vmatpush.bf16.msra.mxu0 %v1588
  %1622 = vmatpush.bf16.msra.mxu0 %v1586
  %1623 = vmatpush.bf16.msra.mxu0 %v1584
  %1624 = vmatmul.bf16.gmra.mxu0 %v1504
  %v1625 = vpop.f32.mrf.mxu0
  %v1626 = vadd.f32 0.0, %v1625
  %v1627 = vpop.f32.mrf.mxu0
  %v1628 = vadd.f32 0.0, %v1627
  %1629 = vmatmul.bf16.gmra.mxu0 %v1505
  %v1630 = vpop.f32.mrf.mxu0
  %v1631 = vadd.f32 0.0, %v1630
  %v1632 = vpop.f32.mrf.mxu0
  %v1633 = vadd.f32 0.0, %v1632
  %1634 = vmatmul.bf16.gmra.mxu0 %v1506
  %v1635 = vpop.f32.mrf.mxu0
  %v1636 = vadd.f32 0.0, %v1635
  %v1637 = vpop.f32.mrf.mxu0
  %v1638 = vadd.f32 0.0, %v1637
  %1639 = vmatmul.bf16.gmra.mxu0 %v1507
  %v1640 = vpop.f32.mrf.mxu0
  %v1641 = vadd.f32 0.0, %v1640
  %v1642 = vpop.f32.mrf.mxu0
  %v1643 = vadd.f32 0.0, %v1642
  %1644 = vmatmul.bf16.gmra.mxu0 %v1508
  %v1645 = vpop.f32.mrf.mxu0
  %v1646 = vadd.f32 0.0, %v1645
  %v1647 = vpop.f32.mrf.mxu0
  %v1648 = vadd.f32 0.0, %v1647
  %1649 = vmatmul.bf16.gmra.mxu0 %v1509
  %v1650 = vpop.f32.mrf.mxu0
  %v1651 = vadd.f32 0.0, %v1650
  %v1652 = vpop.f32.mrf.mxu0
  %v1653 = vadd.f32 0.0, %v1652
  %1654 = vmatmul.bf16.gmra.mxu0 %v1510
  %v1655 = vpop.f32.mrf.mxu0
  %v1656 = vadd.f32 0.0, %v1655
  %v1657 = vpop.f32.mrf.mxu0
  %v1658 = vadd.f32 0.0, %v1657
  %1659 = vmatmul.bf16.gmra.mxu0 %v1511
  %v1660 = vpop.f32.mrf.mxu0
  %v1661 = vadd.f32 0.0, %v1660
  %v1662 = vpop.f32.mrf.mxu0
  %v1663 = vadd.f32 0.0, %v1662
  %1664 = vmatmul.bf16.gmra.mxu0 %v1512
  %v1665 = vpop.f32.mrf.mxu0
  %v1666 = vadd.f32 0.0, %v1665
  %v1667 = vpop.f32.mrf.mxu0
  %v1668 = vadd.f32 0.0, %v1667
  %1669 = vmatmul.bf16.gmra.mxu0 %v1513
  %v1670 = vpop.f32.mrf.mxu0
  %v1671 = vadd.f32 0.0, %v1670
  %v1672 = vpop.f32.mrf.mxu0
  %v1673 = vadd.f32 0.0, %v1672
  %1674 = vmatmul.bf16.gmra.mxu0 %v1514
  %v1675 = vpop.f32.mrf.mxu0
  %v1676 = vadd.f32 0.0, %v1675
  %v1677 = vpop.f32.mrf.mxu0
  %v1678 = vadd.f32 0.0, %v1677
  %1679 = vmatmul.bf16.gmra.mxu0 %v1515
  %v1680 = vpop.f32.mrf.mxu0
  %v1681 = vadd.f32 0.0, %v1680
  %v1682 = vpop.f32.mrf.mxu0
  %v1683 = vadd.f32 0.0, %v1682
  %1684 = vmatmul.bf16.gmra.mxu0 %v1516
  %v1685 = vpop.f32.mrf.mxu0
  %v1686 = vadd.f32 0.0, %v1685
  %v1687 = vpop.f32.mrf.mxu0
  %v1688 = vadd.f32 0.0, %v1687
  %1689 = vmatmul.bf16.gmra.mxu0 %v1517
  %v1690 = vpop.f32.mrf.mxu0
  %v1691 = vadd.f32 0.0, %v1690
  %v1692 = vpop.f32.mrf.mxu0
  %v1693 = vadd.f32 0.0, %v1692
  %1694 = vmatmul.bf16.gmra.mxu0 %v1518
  %v1695 = vpop.f32.mrf.mxu0
  %v1696 = vadd.f32 0.0, %v1695
  %v1697 = vpop.f32.mrf.mxu0
  %v1698 = vadd.f32 0.0, %v1697
  %1699 = vmatmul.bf16.gmra.mxu0 %v1519
  %v1700 = vpop.f32.mrf.mxu0
  %v1701 = vadd.f32 0.0, %v1700
  %v1702 = vpop.f32.mrf.mxu0
  %v1703 = vadd.f32 0.0, %v1702
  %1704 = vdwg.mxu0
  %1705 = vmatpush.bf16.msra.mxu0 %v1599
  %1706 = vmatpush.bf16.msra.mxu0 %v1597
  %1707 = vmatpush.bf16.msra.mxu0 %v1595
  %1708 = vmatpush.bf16.msra.mxu0 %v1593
  %1709 = vmatpush.bf16.msra.mxu0 %v1591
  %1710 = vmatpush.bf16.msra.mxu0 %v1589
  %1711 = vmatpush.bf16.msra.mxu0 %v1587
  %1712 = vmatpush.bf16.msra.mxu0 %v1585
  %1713 = vmatmul.bf16.gmra.mxu0 %v1504
  %v1714 = vpop.f32.mrf.mxu0
  %v1715 = vadd.f32 0.0, %v1714
  %v1716 = vpop.f32.mrf.mxu0
  %v1717 = vadd.f32 0.0, %v1716
  %1718 = vmatmul.bf16.gmra.mxu0 %v1505
  %v1719 = vpop.f32.mrf.mxu0
  %v1720 = vadd.f32 0.0, %v1719
  %v1721 = vpop.f32.mrf.mxu0
  %v1722 = vadd.f32 0.0, %v1721
  %1723 = vmatmul.bf16.gmra.mxu0 %v1506
  %v1724 = vpop.f32.mrf.mxu0
  %v1725 = vadd.f32 0.0, %v1724
  %v1726 = vpop.f32.mrf.mxu0
  %v1727 = vadd.f32 0.0, %v1726
  %1728 = vmatmul.bf16.gmra.mxu0 %v1507
  %v1729 = vpop.f32.mrf.mxu0
  %v1730 = vadd.f32 0.0, %v1729
  %v1731 = vpop.f32.mrf.mxu0
  %v1732 = vadd.f32 0.0, %v1731
  %1733 = vmatmul.bf16.gmra.mxu0 %v1508
  %v1734 = vpop.f32.mrf.mxu0
  %v1735 = vadd.f32 0.0, %v1734
  %v1736 = vpop.f32.mrf.mxu0
  %v1737 = vadd.f32 0.0, %v1736
  %1738 = vmatmul.bf16.gmra.mxu0 %v1509
  %v1739 = vpop.f32.mrf.mxu0
  %v1740 = vadd.f32 0.0, %v1739
  %v1741 = vpop.f32.mrf.mxu0
  %v1742 = vadd.f32 0.0, %v1741
  %1743 = vmatmul.bf16.gmra.mxu0 %v1510
  %v1744 = vpop.f32.mrf.mxu0
  %v1745 = vadd.f32 0.0, %v1744
  %v1746 = vpop.f32.mrf.mxu0
  %v1747 = vadd.f32 0.0, %v1746
  %1748 = vmatmul.bf16.gmra.mxu0 %v1511
  %v1749 = vpop.f32.mrf.mxu0
  %v1750 = vadd.f32 0.0, %v1749
  %v1751 = vpop.f32.mrf.mxu0
  %v1752 = vadd.f32 0.0, %v1751
  %1753 = vmatmul.bf16.gmra.mxu0 %v1512
  %v1754 = vpop.f32.mrf.mxu0
  %v1755 = vadd.f32 0.0, %v1754
  %v1756 = vpop.f32.mrf.mxu0
  %v1757 = vadd.f32 0.0, %v1756
  %1758 = vmatmul.bf16.gmra.mxu0 %v1513
  %v1759 = vpop.f32.mrf.mxu0
  %v1760 = vadd.f32 0.0, %v1759
  %v1761 = vpop.f32.mrf.mxu0
  %v1762 = vadd.f32 0.0, %v1761
  %1763 = vmatmul.bf16.gmra.mxu0 %v1514
  %v1764 = vpop.f32.mrf.mxu0
  %v1765 = vadd.f32 0.0, %v1764
  %v1766 = vpop.f32.mrf.mxu0
  %v1767 = vadd.f32 0.0, %v1766
  %1768 = vmatmul.bf16.gmra.mxu0 %v1515
  %v1769 = vpop.f32.mrf.mxu0
  %v1770 = vadd.f32 0.0, %v1769
  %v1771 = vpop.f32.mrf.mxu0
  %v1772 = vadd.f32 0.0, %v1771
  %1773 = vmatmul.bf16.gmra.mxu0 %v1516
  %v1774 = vpop.f32.mrf.mxu0
  %v1775 = vadd.f32 0.0, %v1774
  %v1776 = vpop.f32.mrf.mxu0
  %v1777 = vadd.f32 0.0, %v1776
  %1778 = vmatmul.bf16.gmra.mxu0 %v1517
  %v1779 = vpop.f32.mrf.mxu0
  %v1780 = vadd.f32 0.0, %v1779
  %v1781 = vpop.f32.mrf.mxu0
  %v1782 = vadd.f32 0.0, %v1781
  %1783 = vmatmul.bf16.gmra.mxu0 %v1518
  %v1784 = vpop.f32.mrf.mxu0
  %v1785 = vadd.f32 0.0, %v1784
  %v1786 = vpop.f32.mrf.mxu0
  %v1787 = vadd.f32 0.0, %v1786
  %1788 = vmatmul.bf16.gmra.mxu0 %v1519
  %v1789 = vpop.f32.mrf.mxu0
  %v1790 = vadd.f32 0.0, %v1789
  %v1791 = vpop.f32.mrf.mxu0
  %v1792 = vadd.f32 0.0, %v1791
  %1793 = vdwg.mxu0
  %v1794 = vadd.f32 %v1376, %v1626
  %v1795 = vadd.f32 %v1379, %v1628
  %v1796 = vadd.f32 %v1382, %v1631
  %v1797 = vadd.f32 %v1385, %v1633
  %v1798 = vadd.f32 %v1388, %v1636
  %v1799 = vadd.f32 %v1391, %v1638
  %v1800 = vadd.f32 %v1394, %v1641
  %v1801 = vadd.f32 %v1397, %v1643
  %v1802 = vadd.f32 %v1400, %v1646
  %v1803 = vadd.f32 %v1403, %v1648
  %v1804 = vadd.f32 %v1406, %v1651
  %v1805 = vadd.f32 %v1409, %v1653
  %v1806 = vadd.f32 %v1412, %v1656
  %v1807 = vadd.f32 %v1415, %v1658
  %v1808 = vadd.f32 %v1418, %v1661
  %v1809 = vadd.f32 %v1421, %v1663
  %v1810 = vadd.f32 %v1424, %v1666
  %v1811 = vadd.f32 %v1427, %v1668
  %v1812 = vadd.f32 %v1430, %v1671
  %v1813 = vadd.f32 %v1433, %v1673
  %v1814 = vadd.f32 %v1436, %v1676
  %v1815 = vadd.f32 %v1439, %v1678
  %v1816 = vadd.f32 %v1442, %v1681
  %v1817 = vadd.f32 %v1445, %v1683
  %v1818 = vadd.f32 %v1448, %v1686
  %v1819 = vadd.f32 %v1451, %v1688
  %v1820 = vadd.f32 %v1454, %v1691
  %v1821 = vadd.f32 %v1457, %v1693
  %v1822 = vadd.f32 %v1460, %v1696
  %v1823 = vadd.f32 %v1463, %v1698
  %v1824 = vadd.f32 %v1466, %v1701
  %v1825 = vadd.f32 %v1469, %v1703
  %v1826 = vsub.f32 0.0, %v1794
  %v1827 = vsub.f32 0.0, %v1795
  %v1828 = vsub.f32 0.0, %v1796
  %v1829 = vsub.f32 0.0, %v1797
  %v1830 = vsub.f32 0.0, %v1798
  %v1831 = vsub.f32 0.0, %v1799
  %v1832 = vsub.f32 0.0, %v1800
  %v1833 = vsub.f32 0.0, %v1801
  %v1834 = vsub.f32 0.0, %v1802
  %v1835 = vsub.f32 0.0, %v1803
  %v1836 = vsub.f32 0.0, %v1804
  %v1837 = vsub.f32 0.0, %v1805
  %v1838 = vsub.f32 0.0, %v1806
  %v1839 = vsub.f32 0.0, %v1807
  %v1840 = vsub.f32 0.0, %v1808
  %v1841 = vsub.f32 0.0, %v1809
  %v1842 = vsub.f32 0.0, %v1810
  %v1843 = vsub.f32 0.0, %v1811
  %v1844 = vsub.f32 0.0, %v1812
  %v1845 = vsub.f32 0.0, %v1813
  %v1846 = vsub.f32 0.0, %v1814
  %v1847 = vsub.f32 0.0, %v1815
  %v1848 = vsub.f32 0.0, %v1816
  %v1849 = vsub.f32 0.0, %v1817
  %v1850 = vsub.f32 0.0, %v1818
  %v1851 = vsub.f32 0.0, %v1819
  %v1852 = vsub.f32 0.0, %v1820
  %v1853 = vsub.f32 0.0, %v1821
  %v1854 = vsub.f32 0.0, %v1822
  %v1855 = vsub.f32 0.0, %v1823
  %v1856 = vsub.f32 0.0, %v1824
  %v1857 = vsub.f32 0.0, %v1825
  %v1858 = vmul.f32 %v1826, 1.442695
  %v1859 = vpow.pop %v1858
  %v1860 = vmul.f32 %v1827, 1.442695
  %v1861 = vpow.pop %v1860
  %v1862 = vmul.f32 %v1828, 1.442695
  %v1863 = vpow.pop %v1862
  %v1864 = vmul.f32 %v1829, 1.442695
  %v1865 = vpow.pop %v1864
  %v1866 = vmul.f32 %v1830, 1.442695
  %v1867 = vpow.pop %v1866
  %v1868 = vmul.f32 %v1831, 1.442695
  %v1869 = vpow.pop %v1868
  %v1870 = vmul.f32 %v1832, 1.442695
  %v1871 = vpow.pop %v1870
  %v1872 = vmul.f32 %v1833, 1.442695
  %v1873 = vpow.pop %v1872
  %v1874 = vmul.f32 %v1834, 1.442695
  %v1875 = vpow.pop %v1874
  %v1876 = vmul.f32 %v1835, 1.442695
  %v1877 = vpow.pop %v1876
  %v1878 = vmul.f32 %v1836, 1.442695
  %v1879 = vpow.pop %v1878
  %v1880 = vmul.f32 %v1837, 1.442695
  %v1881 = vpow.pop %v1880
  %v1882 = vmul.f32 %v1838, 1.442695
  %v1883 = vpow.pop %v1882
  %v1884 = vmul.f32 %v1839, 1.442695
  %v1885 = vpow.pop %v1884
  %v1886 = vmul.f32 %v1840, 1.442695
  %v1887 = vpow.pop %v1886
  %v1888 = vmul.f32 %v1841, 1.442695
  %v1889 = vpow.pop %v1888
  %v1890 = vmul.f32 %v1842, 1.442695
  %v1891 = vpow.pop %v1890
  %v1892 = vmul.f32 %v1843, 1.442695
  %v1893 = vpow.pop %v1892
  %v1894 = vmul.f32 %v1844, 1.442695
  %v1895 = vpow.pop %v1894
  %v1896 = vmul.f32 %v1845, 1.442695
  %v1897 = vpow.pop %v1896
  %v1898 = vmul.f32 %v1846, 1.442695
  %v1899 = vpow.pop %v1898
  %v1900 = vmul.f32 %v1847, 1.442695
  %v1901 = vpow.pop %v1900
  %v1902 = vmul.f32 %v1848, 1.442695
  %v1903 = vpow.pop %v1902
  %v1904 = vmul.f32 %v1849, 1.442695
  %v1905 = vpow.pop %v1904
  %v1906 = vmul.f32 %v1850, 1.442695
  %v1907 = vpow.pop %v1906
  %v1908 = vmul.f32 %v1851, 1.442695
  %v1909 = vpow.pop %v1908
  %v1910 = vmul.f32 %v1852, 1.442695
  %v1911 = vpow.pop %v1910
  %v1912 = vmul.f32 %v1853, 1.442695
  %v1913 = vpow.pop %v1912
  %v1914 = vmul.f32 %v1854, 1.442695
  %v1915 = vpow.pop %v1914
  %v1916 = vmul.f32 %v1855, 1.442695
  %v1917 = vpow.pop %v1916
  %v1918 = vmul.f32 %v1856, 1.442695
  %v1919 = vpow.pop %v1918
  %v1920 = vmul.f32 %v1857, 1.442695
  %v1921 = vpow.pop %v1920
  %v1922 = vadd.f32 %v1859, 1.0
  %v1923 = vadd.f32 %v1861, 1.0
  %v1924 = vadd.f32 %v1863, 1.0
  %v1925 = vadd.f32 %v1865, 1.0
  %v1926 = vadd.f32 %v1867, 1.0
  %v1927 = vadd.f32 %v1869, 1.0
  %v1928 = vadd.f32 %v1871, 1.0
  %v1929 = vadd.f32 %v1873, 1.0
  %v1930 = vadd.f32 %v1875, 1.0
  %v1931 = vadd.f32 %v1877, 1.0
  %v1932 = vadd.f32 %v1879, 1.0
  %v1933 = vadd.f32 %v1881, 1.0
  %v1934 = vadd.f32 %v1883, 1.0
  %v1935 = vadd.f32 %v1885, 1.0
  %v1936 = vadd.f32 %v1887, 1.0
  %v1937 = vadd.f32 %v1889, 1.0
  %v1938 = vadd.f32 %v1891, 1.0
  %v1939 = vadd.f32 %v1893, 1.0
  %v1940 = vadd.f32 %v1895, 1.0
  %v1941 = vadd.f32 %v1897, 1.0
  %v1942 = vadd.f32 %v1899, 1.0
  %v1943 = vadd.f32 %v1901, 1.0
  %v1944 = vadd.f32 %v1903, 1.0
  %v1945 = vadd.f32 %v1905, 1.0
  %v1946 = vadd.f32 %v1907, 1.0
  %v1947 = vadd.f32 %v1909, 1.0
  %v1948 = vadd.f32 %v1911, 1.0
  %v1949 = vadd.f32 %v1913, 1.0
  %v1950 = vadd.f32 %v1915, 1.0
  %v1951 = vadd.f32 %v1917, 1.0
  %v1952 = vadd.f32 %v1919, 1.0
  %v1953 = vadd.f32 %v1921, 1.0
  %v1954 = vrcp.pop %v1922
  %v1955 = vmul.f32 %v1922, %v1954
  %v1956 = vsub.f32 1.0, %v1955
  %v1957 = vmul.f32 %v1954, %v1956
  %v1958 = vadd.f32 %v1954, %v1957
  %vm1959 = vweird.f32 %v1922
  %vm1960 = vweird.f32 %v1954
  %vm1961 = vmor %vm1959, %vm1960
  %v1962 = vsel %vm1961, %v1954, %v1958
  %v1963 = vand.u32 2147483647, %v1922
  %vm1964 = vcmp.eq.f32.partialorder %v1963, 8.507059e+37
  %v1965 = vand.u32 %v1922, 2147483648
  %v1966 = vor.u32 1.1754944e-38, %v1965
  %v1967 = vsel %vm1964, %v1966, %v1962
  %v1968 = vmul.f32 1.0, %v1967
  %v1969 = vrcp.pop %v1923
  %v1970 = vmul.f32 %v1923, %v1969
  %v1971 = vsub.f32 1.0, %v1970
  %v1972 = vmul.f32 %v1969, %v1971
  %v1973 = vadd.f32 %v1969, %v1972
  %vm1974 = vweird.f32 %v1923
  %vm1975 = vweird.f32 %v1969
  %vm1976 = vmor %vm1974, %vm1975
  %v1977 = vsel %vm1976, %v1969, %v1973
  %v1978 = vand.u32 2147483647, %v1923
  %vm1979 = vcmp.eq.f32.partialorder %v1978, 8.507059e+37
  %v1980 = vand.u32 %v1923, 2147483648
  %v1981 = vor.u32 1.1754944e-38, %v1980
  %v1982 = vsel %vm1979, %v1981, %v1977
  %v1983 = vmul.f32 1.0, %v1982
  %v1984 = vrcp.pop %v1924
  %v1985 = vmul.f32 %v1924, %v1984
  %v1986 = vsub.f32 1.0, %v1985
  %v1987 = vmul.f32 %v1984, %v1986
  %v1988 = vadd.f32 %v1984, %v1987
  %vm1989 = vweird.f32 %v1924
  %vm1990 = vweird.f32 %v1984
  %vm1991 = vmor %vm1989, %vm1990
  %v1992 = vsel %vm1991, %v1984, %v1988
  %v1993 = vand.u32 2147483647, %v1924
  %vm1994 = vcmp.eq.f32.partialorder %v1993, 8.507059e+37
  %v1995 = vand.u32 %v1924, 2147483648
  %v1996 = vor.u32 1.1754944e-38, %v1995
  %v1997 = vsel %vm1994, %v1996, %v1992
  %v1998 = vmul.f32 1.0, %v1997
  %v1999 = vrcp.pop %v1925
  %v2000 = vmul.f32 %v1925, %v1999
  %v2001 = vsub.f32 1.0, %v2000
  %v2002 = vmul.f32 %v1999, %v2001
  %v2003 = vadd.f32 %v1999, %v2002
  %vm2004 = vweird.f32 %v1925
  %vm2005 = vweird.f32 %v1999
  %vm2006 = vmor %vm2004, %vm2005
  %v2007 = vsel %vm2006, %v1999, %v2003
  %v2008 = vand.u32 2147483647, %v1925
  %vm2009 = vcmp.eq.f32.partialorder %v2008, 8.507059e+37
  %v2010 = vand.u32 %v1925, 2147483648
  %v2011 = vor.u32 1.1754944e-38, %v2010
  %v2012 = vsel %vm2009, %v2011, %v2007
  %v2013 = vmul.f32 1.0, %v2012
  %v2014 = vrcp.pop %v1926
  %v2015 = vmul.f32 %v1926, %v2014
  %v2016 = vsub.f32 1.0, %v2015
  %v2017 = vmul.f32 %v2014, %v2016
  %v2018 = vadd.f32 %v2014, %v2017
  %vm2019 = vweird.f32 %v1926
  %vm2020 = vweird.f32 %v2014
  %vm2021 = vmor %vm2019, %vm2020
  %v2022 = vsel %vm2021, %v2014, %v2018
  %v2023 = vand.u32 2147483647, %v1926
  %vm2024 = vcmp.eq.f32.partialorder %v2023, 8.507059e+37
  %v2025 = vand.u32 %v1926, 2147483648
  %v2026 = vor.u32 1.1754944e-38, %v2025
  %v2027 = vsel %vm2024, %v2026, %v2022
  %v2028 = vmul.f32 1.0, %v2027
  %v2029 = vrcp.pop %v1927
  %v2030 = vmul.f32 %v1927, %v2029
  %v2031 = vsub.f32 1.0, %v2030
  %v2032 = vmul.f32 %v2029, %v2031
  %v2033 = vadd.f32 %v2029, %v2032
  %vm2034 = vweird.f32 %v1927
  %vm2035 = vweird.f32 %v2029
  %vm2036 = vmor %vm2034, %vm2035
  %v2037 = vsel %vm2036, %v2029, %v2033
  %v2038 = vand.u32 2147483647, %v1927
  %vm2039 = vcmp.eq.f32.partialorder %v2038, 8.507059e+37
  %v2040 = vand.u32 %v1927, 2147483648
  %v2041 = vor.u32 1.1754944e-38, %v2040
  %v2042 = vsel %vm2039, %v2041, %v2037
  %v2043 = vmul.f32 1.0, %v2042
  %v2044 = vrcp.pop %v1928
  %v2045 = vmul.f32 %v1928, %v2044
  %v2046 = vsub.f32 1.0, %v2045
  %v2047 = vmul.f32 %v2044, %v2046
  %v2048 = vadd.f32 %v2044, %v2047
  %vm2049 = vweird.f32 %v1928
  %vm2050 = vweird.f32 %v2044
  %vm2051 = vmor %vm2049, %vm2050
  %v2052 = vsel %vm2051, %v2044, %v2048
  %v2053 = vand.u32 2147483647, %v1928
  %vm2054 = vcmp.eq.f32.partialorder %v2053, 8.507059e+37
  %v2055 = vand.u32 %v1928, 2147483648
  %v2056 = vor.u32 1.1754944e-38, %v2055
  %v2057 = vsel %vm2054, %v2056, %v2052
  %v2058 = vmul.f32 1.0, %v2057
  %v2059 = vrcp.pop %v1929
  %v2060 = vmul.f32 %v1929, %v2059
  %v2061 = vsub.f32 1.0, %v2060
  %v2062 = vmul.f32 %v2059, %v2061
  %v2063 = vadd.f32 %v2059, %v2062
  %vm2064 = vweird.f32 %v1929
  %vm2065 = vweird.f32 %v2059
  %vm2066 = vmor %vm2064, %vm2065
  %v2067 = vsel %vm2066, %v2059, %v2063
  %v2068 = vand.u32 2147483647, %v1929
  %vm2069 = vcmp.eq.f32.partialorder %v2068, 8.507059e+37
  %v2070 = vand.u32 %v1929, 2147483648
  %v2071 = vor.u32 1.1754944e-38, %v2070
  %v2072 = vsel %vm2069, %v2071, %v2067
  %v2073 = vmul.f32 1.0, %v2072
  %v2074 = vrcp.pop %v1930
  %v2075 = vmul.f32 %v1930, %v2074
  %v2076 = vsub.f32 1.0, %v2075
  %v2077 = vmul.f32 %v2074, %v2076
  %v2078 = vadd.f32 %v2074, %v2077
  %vm2079 = vweird.f32 %v1930
  %vm2080 = vweird.f32 %v2074
  %vm2081 = vmor %vm2079, %vm2080
  %v2082 = vsel %vm2081, %v2074, %v2078
  %v2083 = vand.u32 2147483647, %v1930
  %vm2084 = vcmp.eq.f32.partialorder %v2083, 8.507059e+37
  %v2085 = vand.u32 %v1930, 2147483648
  %v2086 = vor.u32 1.1754944e-38, %v2085
  %v2087 = vsel %vm2084, %v2086, %v2082
  %v2088 = vmul.f32 1.0, %v2087
  %v2089 = vrcp.pop %v1931
  %v2090 = vmul.f32 %v1931, %v2089
  %v2091 = vsub.f32 1.0, %v2090
  %v2092 = vmul.f32 %v2089, %v2091
  %v2093 = vadd.f32 %v2089, %v2092
  %vm2094 = vweird.f32 %v1931
  %vm2095 = vweird.f32 %v2089
  %vm2096 = vmor %vm2094, %vm2095
  %v2097 = vsel %vm2096, %v2089, %v2093
  %v2098 = vand.u32 2147483647, %v1931
  %vm2099 = vcmp.eq.f32.partialorder %v2098, 8.507059e+37
  %v2100 = vand.u32 %v1931, 2147483648
  %v2101 = vor.u32 1.1754944e-38, %v2100
  %v2102 = vsel %vm2099, %v2101, %v2097
  %v2103 = vmul.f32 1.0, %v2102
  %v2104 = vrcp.pop %v1932
  %v2105 = vmul.f32 %v1932, %v2104
  %v2106 = vsub.f32 1.0, %v2105
  %v2107 = vmul.f32 %v2104, %v2106
  %v2108 = vadd.f32 %v2104, %v2107
  %vm2109 = vweird.f32 %v1932
  %vm2110 = vweird.f32 %v2104
  %vm2111 = vmor %vm2109, %vm2110
  %v2112 = vsel %vm2111, %v2104, %v2108
  %v2113 = vand.u32 2147483647, %v1932
  %vm2114 = vcmp.eq.f32.partialorder %v2113, 8.507059e+37
  %v2115 = vand.u32 %v1932, 2147483648
  %v2116 = vor.u32 1.1754944e-38, %v2115
  %v2117 = vsel %vm2114, %v2116, %v2112
  %v2118 = vmul.f32 1.0, %v2117
  %v2119 = vrcp.pop %v1933
  %v2120 = vmul.f32 %v1933, %v2119
  %v2121 = vsub.f32 1.0, %v2120
  %v2122 = vmul.f32 %v2119, %v2121
  %v2123 = vadd.f32 %v2119, %v2122
  %vm2124 = vweird.f32 %v1933
  %vm2125 = vweird.f32 %v2119
  %vm2126 = vmor %vm2124, %vm2125
  %v2127 = vsel %vm2126, %v2119, %v2123
  %v2128 = vand.u32 2147483647, %v1933
  %vm2129 = vcmp.eq.f32.partialorder %v2128, 8.507059e+37
  %v2130 = vand.u32 %v1933, 2147483648
  %v2131 = vor.u32 1.1754944e-38, %v2130
  %v2132 = vsel %vm2129, %v2131, %v2127
  %v2133 = vmul.f32 1.0, %v2132
  %v2134 = vrcp.pop %v1934
  %v2135 = vmul.f32 %v1934, %v2134
  %v2136 = vsub.f32 1.0, %v2135
  %v2137 = vmul.f32 %v2134, %v2136
  %v2138 = vadd.f32 %v2134, %v2137
  %vm2139 = vweird.f32 %v1934
  %vm2140 = vweird.f32 %v2134
  %vm2141 = vmor %vm2139, %vm2140
  %v2142 = vsel %vm2141, %v2134, %v2138
  %v2143 = vand.u32 2147483647, %v1934
  %vm2144 = vcmp.eq.f32.partialorder %v2143, 8.507059e+37
  %v2145 = vand.u32 %v1934, 2147483648
  %v2146 = vor.u32 1.1754944e-38, %v2145
  %v2147 = vsel %vm2144, %v2146, %v2142
  %v2148 = vmul.f32 1.0, %v2147
  %v2149 = vrcp.pop %v1935
  %v2150 = vmul.f32 %v1935, %v2149
  %v2151 = vsub.f32 1.0, %v2150
  %v2152 = vmul.f32 %v2149, %v2151
  %v2153 = vadd.f32 %v2149, %v2152
  %vm2154 = vweird.f32 %v1935
  %vm2155 = vweird.f32 %v2149
  %vm2156 = vmor %vm2154, %vm2155
  %v2157 = vsel %vm2156, %v2149, %v2153
  %v2158 = vand.u32 2147483647, %v1935
  %vm2159 = vcmp.eq.f32.partialorder %v2158, 8.507059e+37
  %v2160 = vand.u32 %v1935, 2147483648
  %v2161 = vor.u32 1.1754944e-38, %v2160
  %v2162 = vsel %vm2159, %v2161, %v2157
  %v2163 = vmul.f32 1.0, %v2162
  %v2164 = vrcp.pop %v1936
  %v2165 = vmul.f32 %v1936, %v2164
  %v2166 = vsub.f32 1.0, %v2165
  %v2167 = vmul.f32 %v2164, %v2166
  %v2168 = vadd.f32 %v2164, %v2167
  %vm2169 = vweird.f32 %v1936
  %vm2170 = vweird.f32 %v2164
  %vm2171 = vmor %vm2169, %vm2170
  %v2172 = vsel %vm2171, %v2164, %v2168
  %v2173 = vand.u32 2147483647, %v1936
  %vm2174 = vcmp.eq.f32.partialorder %v2173, 8.507059e+37
  %v2175 = vand.u32 %v1936, 2147483648
  %v2176 = vor.u32 1.1754944e-38, %v2175
  %v2177 = vsel %vm2174, %v2176, %v2172
  %v2178 = vmul.f32 1.0, %v2177
  %v2179 = vrcp.pop %v1937
  %v2180 = vmul.f32 %v1937, %v2179
  %v2181 = vsub.f32 1.0, %v2180
  %v2182 = vmul.f32 %v2179, %v2181
  %v2183 = vadd.f32 %v2179, %v2182
  %vm2184 = vweird.f32 %v1937
  %vm2185 = vweird.f32 %v2179
  %vm2186 = vmor %vm2184, %vm2185
  %v2187 = vsel %vm2186, %v2179, %v2183
  %v2188 = vand.u32 2147483647, %v1937
  %vm2189 = vcmp.eq.f32.partialorder %v2188, 8.507059e+37
  %v2190 = vand.u32 %v1937, 2147483648
  %v2191 = vor.u32 1.1754944e-38, %v2190
  %v2192 = vsel %vm2189, %v2191, %v2187
  %v2193 = vmul.f32 1.0, %v2192
  %v2194 = vrcp.pop %v1938
  %v2195 = vmul.f32 %v1938, %v2194
  %v2196 = vsub.f32 1.0, %v2195
  %v2197 = vmul.f32 %v2194, %v2196
  %v2198 = vadd.f32 %v2194, %v2197
  %vm2199 = vweird.f32 %v1938
  %vm2200 = vweird.f32 %v2194
  %vm2201 = vmor %vm2199, %vm2200
  %v2202 = vsel %vm2201, %v2194, %v2198
  %v2203 = vand.u32 2147483647, %v1938
  %vm2204 = vcmp.eq.f32.partialorder %v2203, 8.507059e+37
  %v2205 = vand.u32 %v1938, 2147483648
  %v2206 = vor.u32 1.1754944e-38, %v2205
  %v2207 = vsel %vm2204, %v2206, %v2202
  %v2208 = vmul.f32 1.0, %v2207
  %v2209 = vrcp.pop %v1939
  %v2210 = vmul.f32 %v1939, %v2209
  %v2211 = vsub.f32 1.0, %v2210
  %v2212 = vmul.f32 %v2209, %v2211
  %v2213 = vadd.f32 %v2209, %v2212
  %vm2214 = vweird.f32 %v1939
  %vm2215 = vweird.f32 %v2209
  %vm2216 = vmor %vm2214, %vm2215
  %v2217 = vsel %vm2216, %v2209, %v2213
  %v2218 = vand.u32 2147483647, %v1939
  %vm2219 = vcmp.eq.f32.partialorder %v2218, 8.507059e+37
  %v2220 = vand.u32 %v1939, 2147483648
  %v2221 = vor.u32 1.1754944e-38, %v2220
  %v2222 = vsel %vm2219, %v2221, %v2217
  %v2223 = vmul.f32 1.0, %v2222
  %v2224 = vrcp.pop %v1940
  %v2225 = vmul.f32 %v1940, %v2224
  %v2226 = vsub.f32 1.0, %v2225
  %v2227 = vmul.f32 %v2224, %v2226
  %v2228 = vadd.f32 %v2224, %v2227
  %vm2229 = vweird.f32 %v1940
  %vm2230 = vweird.f32 %v2224
  %vm2231 = vmor %vm2229, %vm2230
  %v2232 = vsel %vm2231, %v2224, %v2228
  %v2233 = vand.u32 2147483647, %v1940
  %vm2234 = vcmp.eq.f32.partialorder %v2233, 8.507059e+37
  %v2235 = vand.u32 %v1940, 2147483648
  %v2236 = vor.u32 1.1754944e-38, %v2235
  %v2237 = vsel %vm2234, %v2236, %v2232
  %v2238 = vmul.f32 1.0, %v2237
  %v2239 = vrcp.pop %v1941
  %v2240 = vmul.f32 %v1941, %v2239
  %v2241 = vsub.f32 1.0, %v2240
  %v2242 = vmul.f32 %v2239, %v2241
  %v2243 = vadd.f32 %v2239, %v2242
  %vm2244 = vweird.f32 %v1941
  %vm2245 = vweird.f32 %v2239
  %vm2246 = vmor %vm2244, %vm2245
  %v2247 = vsel %vm2246, %v2239, %v2243
  %v2248 = vand.u32 2147483647, %v1941
  %vm2249 = vcmp.eq.f32.partialorder %v2248, 8.507059e+37
  %v2250 = vand.u32 %v1941, 2147483648
  %v2251 = vor.u32 1.1754944e-38, %v2250
  %v2252 = vsel %vm2249, %v2251, %v2247
  %v2253 = vmul.f32 1.0, %v2252
  %v2254 = vrcp.pop %v1942
  %v2255 = vmul.f32 %v1942, %v2254
  %v2256 = vsub.f32 1.0, %v2255
  %v2257 = vmul.f32 %v2254, %v2256
  %v2258 = vadd.f32 %v2254, %v2257
  %vm2259 = vweird.f32 %v1942
  %vm2260 = vweird.f32 %v2254
  %vm2261 = vmor %vm2259, %vm2260
  %v2262 = vsel %vm2261, %v2254, %v2258
  %v2263 = vand.u32 2147483647, %v1942
  %vm2264 = vcmp.eq.f32.partialorder %v2263, 8.507059e+37
  %v2265 = vand.u32 %v1942, 2147483648
  %v2266 = vor.u32 1.1754944e-38, %v2265
  %v2267 = vsel %vm2264, %v2266, %v2262
  %v2268 = vmul.f32 1.0, %v2267
  %v2269 = vrcp.pop %v1943
  %v2270 = vmul.f32 %v1943, %v2269
  %v2271 = vsub.f32 1.0, %v2270
  %v2272 = vmul.f32 %v2269, %v2271
  %v2273 = vadd.f32 %v2269, %v2272
  %vm2274 = vweird.f32 %v1943
  %vm2275 = vweird.f32 %v2269
  %vm2276 = vmor %vm2274, %vm2275
  %v2277 = vsel %vm2276, %v2269, %v2273
  %v2278 = vand.u32 2147483647, %v1943
  %vm2279 = vcmp.eq.f32.partialorder %v2278, 8.507059e+37
  %v2280 = vand.u32 %v1943, 2147483648
  %v2281 = vor.u32 1.1754944e-38, %v2280
  %v2282 = vsel %vm2279, %v2281, %v2277
  %v2283 = vmul.f32 1.0, %v2282
  %v2284 = vrcp.pop %v1944
  %v2285 = vmul.f32 %v1944, %v2284
  %v2286 = vsub.f32 1.0, %v2285
  %v2287 = vmul.f32 %v2284, %v2286
  %v2288 = vadd.f32 %v2284, %v2287
  %vm2289 = vweird.f32 %v1944
  %vm2290 = vweird.f32 %v2284
  %vm2291 = vmor %vm2289, %vm2290
  %v2292 = vsel %vm2291, %v2284, %v2288
  %v2293 = vand.u32 2147483647, %v1944
  %vm2294 = vcmp.eq.f32.partialorder %v2293, 8.507059e+37
  %v2295 = vand.u32 %v1944, 2147483648
  %v2296 = vor.u32 1.1754944e-38, %v2295
  %v2297 = vsel %vm2294, %v2296, %v2292
  %v2298 = vmul.f32 1.0, %v2297
  %v2299 = vrcp.pop %v1945
  %v2300 = vmul.f32 %v1945, %v2299
  %v2301 = vsub.f32 1.0, %v2300
  %v2302 = vmul.f32 %v2299, %v2301
  %v2303 = vadd.f32 %v2299, %v2302
  %vm2304 = vweird.f32 %v1945
  %vm2305 = vweird.f32 %v2299
  %vm2306 = vmor %vm2304, %vm2305
  %v2307 = vsel %vm2306, %v2299, %v2303
  %v2308 = vand.u32 2147483647, %v1945
  %vm2309 = vcmp.eq.f32.partialorder %v2308, 8.507059e+37
  %v2310 = vand.u32 %v1945, 2147483648
  %v2311 = vor.u32 1.1754944e-38, %v2310
  %v2312 = vsel %vm2309, %v2311, %v2307
  %v2313 = vmul.f32 1.0, %v2312
  %v2314 = vrcp.pop %v1946
  %v2315 = vmul.f32 %v1946, %v2314
  %v2316 = vsub.f32 1.0, %v2315
  %v2317 = vmul.f32 %v2314, %v2316
  %v2318 = vadd.f32 %v2314, %v2317
  %vm2319 = vweird.f32 %v1946
  %vm2320 = vweird.f32 %v2314
  %vm2321 = vmor %vm2319, %vm2320
  %v2322 = vsel %vm2321, %v2314, %v2318
  %v2323 = vand.u32 2147483647, %v1946
  %vm2324 = vcmp.eq.f32.partialorder %v2323, 8.507059e+37
  %v2325 = vand.u32 %v1946, 2147483648
  %v2326 = vor.u32 1.1754944e-38, %v2325
  %v2327 = vsel %vm2324, %v2326, %v2322
  %v2328 = vmul.f32 1.0, %v2327
  %v2329 = vrcp.pop %v1947
  %v2330 = vmul.f32 %v1947, %v2329
  %v2331 = vsub.f32 1.0, %v2330
  %v2332 = vmul.f32 %v2329, %v2331
  %v2333 = vadd.f32 %v2329, %v2332
  %vm2334 = vweird.f32 %v1947
  %vm2335 = vweird.f32 %v2329
  %vm2336 = vmor %vm2334, %vm2335
  %v2337 = vsel %vm2336, %v2329, %v2333
  %v2338 = vand.u32 2147483647, %v1947
  %vm2339 = vcmp.eq.f32.partialorder %v2338, 8.507059e+37
  %v2340 = vand.u32 %v1947, 2147483648
  %v2341 = vor.u32 1.1754944e-38, %v2340
  %v2342 = vsel %vm2339, %v2341, %v2337
  %v2343 = vmul.f32 1.0, %v2342
  %v2344 = vrcp.pop %v1948
  %v2345 = vmul.f32 %v1948, %v2344
  %v2346 = vsub.f32 1.0, %v2345
  %v2347 = vmul.f32 %v2344, %v2346
  %v2348 = vadd.f32 %v2344, %v2347
  %vm2349 = vweird.f32 %v1948
  %vm2350 = vweird.f32 %v2344
  %vm2351 = vmor %vm2349, %vm2350
  %v2352 = vsel %vm2351, %v2344, %v2348
  %v2353 = vand.u32 2147483647, %v1948
  %vm2354 = vcmp.eq.f32.partialorder %v2353, 8.507059e+37
  %v2355 = vand.u32 %v1948, 2147483648
  %v2356 = vor.u32 1.1754944e-38, %v2355
  %v2357 = vsel %vm2354, %v2356, %v2352
  %v2358 = vmul.f32 1.0, %v2357
  %v2359 = vrcp.pop %v1949
  %v2360 = vmul.f32 %v1949, %v2359
  %v2361 = vsub.f32 1.0, %v2360
  %v2362 = vmul.f32 %v2359, %v2361
  %v2363 = vadd.f32 %v2359, %v2362
  %vm2364 = vweird.f32 %v1949
  %vm2365 = vweird.f32 %v2359
  %vm2366 = vmor %vm2364, %vm2365
  %v2367 = vsel %vm2366, %v2359, %v2363
  %v2368 = vand.u32 2147483647, %v1949
  %vm2369 = vcmp.eq.f32.partialorder %v2368, 8.507059e+37
  %v2370 = vand.u32 %v1949, 2147483648
  %v2371 = vor.u32 1.1754944e-38, %v2370
  %v2372 = vsel %vm2369, %v2371, %v2367
  %v2373 = vmul.f32 1.0, %v2372
  %v2374 = vrcp.pop %v1950
  %v2375 = vmul.f32 %v1950, %v2374
  %v2376 = vsub.f32 1.0, %v2375
  %v2377 = vmul.f32 %v2374, %v2376
  %v2378 = vadd.f32 %v2374, %v2377
  %vm2379 = vweird.f32 %v1950
  %vm2380 = vweird.f32 %v2374
  %vm2381 = vmor %vm2379, %vm2380
  %v2382 = vsel %vm2381, %v2374, %v2378
  %v2383 = vand.u32 2147483647, %v1950
  %vm2384 = vcmp.eq.f32.partialorder %v2383, 8.507059e+37
  %v2385 = vand.u32 %v1950, 2147483648
  %v2386 = vor.u32 1.1754944e-38, %v2385
  %v2387 = vsel %vm2384, %v2386, %v2382
  %v2388 = vmul.f32 1.0, %v2387
  %v2389 = vrcp.pop %v1951
  %v2390 = vmul.f32 %v1951, %v2389
  %v2391 = vsub.f32 1.0, %v2390
  %v2392 = vmul.f32 %v2389, %v2391
  %v2393 = vadd.f32 %v2389, %v2392
  %vm2394 = vweird.f32 %v1951
  %vm2395 = vweird.f32 %v2389
  %vm2396 = vmor %vm2394, %vm2395
  %v2397 = vsel %vm2396, %v2389, %v2393
  %v2398 = vand.u32 2147483647, %v1951
  %vm2399 = vcmp.eq.f32.partialorder %v2398, 8.507059e+37
  %v2400 = vand.u32 %v1951, 2147483648
  %v2401 = vor.u32 1.1754944e-38, %v2400
  %v2402 = vsel %vm2399, %v2401, %v2397
  %v2403 = vmul.f32 1.0, %v2402
  %v2404 = vrcp.pop %v1952
  %v2405 = vmul.f32 %v1952, %v2404
  %v2406 = vsub.f32 1.0, %v2405
  %v2407 = vmul.f32 %v2404, %v2406
  %v2408 = vadd.f32 %v2404, %v2407
  %vm2409 = vweird.f32 %v1952
  %vm2410 = vweird.f32 %v2404
  %vm2411 = vmor %vm2409, %vm2410
  %v2412 = vsel %vm2411, %v2404, %v2408
  %v2413 = vand.u32 2147483647, %v1952
  %vm2414 = vcmp.eq.f32.partialorder %v2413, 8.507059e+37
  %v2415 = vand.u32 %v1952, 2147483648
  %v2416 = vor.u32 1.1754944e-38, %v2415
  %v2417 = vsel %vm2414, %v2416, %v2412
  %v2418 = vmul.f32 1.0, %v2417
  %v2419 = vrcp.pop %v1953
  %v2420 = vmul.f32 %v1953, %v2419
  %v2421 = vsub.f32 1.0, %v2420
  %v2422 = vmul.f32 %v2419, %v2421
  %v2423 = vadd.f32 %v2419, %v2422
  %vm2424 = vweird.f32 %v1953
  %vm2425 = vweird.f32 %v2419
  %vm2426 = vmor %vm2424, %vm2425
  %v2427 = vsel %vm2426, %v2419, %v2423
  %v2428 = vand.u32 2147483647, %v1953
  %vm2429 = vcmp.eq.f32.partialorder %v2428, 8.507059e+37
  %v2430 = vand.u32 %v1953, 2147483648
  %v2431 = vor.u32 1.1754944e-38, %v2430
  %v2432 = vsel %vm2429, %v2431, %v2427
  %v2433 = vmul.f32 1.0, %v2432
  %v2434 = vadd.f32 %v1377, %v1715
  %v2435 = vadd.f32 %v1380, %v1717
  %v2436 = vadd.f32 %v1383, %v1720
  %v2437 = vadd.f32 %v1386, %v1722
  %v2438 = vadd.f32 %v1389, %v1725
  %v2439 = vadd.f32 %v1392, %v1727
  %v2440 = vadd.f32 %v1395, %v1730
  %v2441 = vadd.f32 %v1398, %v1732
  %v2442 = vadd.f32 %v1401, %v1735
  %v2443 = vadd.f32 %v1404, %v1737
  %v2444 = vadd.f32 %v1407, %v1740
  %v2445 = vadd.f32 %v1410, %v1742
  %v2446 = vadd.f32 %v1413, %v1745
  %v2447 = vadd.f32 %v1416, %v1747
  %v2448 = vadd.f32 %v1419, %v1750
  %v2449 = vadd.f32 %v1422, %v1752
  %v2450 = vadd.f32 %v1425, %v1755
  %v2451 = vadd.f32 %v1428, %v1757
  %v2452 = vadd.f32 %v1431, %v1760
  %v2453 = vadd.f32 %v1434, %v1762
  %v2454 = vadd.f32 %v1437, %v1765
  %v2455 = vadd.f32 %v1440, %v1767
  %v2456 = vadd.f32 %v1443, %v1770
  %v2457 = vadd.f32 %v1446, %v1772
  %v2458 = vadd.f32 %v1449, %v1775
  %v2459 = vadd.f32 %v1452, %v1777
  %v2460 = vadd.f32 %v1455, %v1780
  %v2461 = vadd.f32 %v1458, %v1782
  %v2462 = vadd.f32 %v1461, %v1785
  %v2463 = vadd.f32 %v1464, %v1787
  %v2464 = vadd.f32 %v1467, %v1790
  %v2465 = vadd.f32 %v1470, %v1792
  %v2466 = vsub.f32 0.0, %v2434
  %v2467 = vsub.f32 0.0, %v2435
  %v2468 = vsub.f32 0.0, %v2436
  %v2469 = vsub.f32 0.0, %v2437
  %v2470 = vsub.f32 0.0, %v2438
  %v2471 = vsub.f32 0.0, %v2439
  %v2472 = vsub.f32 0.0, %v2440
  %v2473 = vsub.f32 0.0, %v2441
  %v2474 = vsub.f32 0.0, %v2442
  %v2475 = vsub.f32 0.0, %v2443
  %v2476 = vsub.f32 0.0, %v2444
  %v2477 = vsub.f32 0.0, %v2445
  %v2478 = vsub.f32 0.0, %v2446
  %v2479 = vsub.f32 0.0, %v2447
  %v2480 = vsub.f32 0.0, %v2448
  %v2481 = vsub.f32 0.0, %v2449
  %v2482 = vsub.f32 0.0, %v2450
  %v2483 = vsub.f32 0.0, %v2451
  %v2484 = vsub.f32 0.0, %v2452
  %v2485 = vsub.f32 0.0, %v2453
  %v2486 = vsub.f32 0.0, %v2454
  %v2487 = vsub.f32 0.0, %v2455
  %v2488 = vsub.f32 0.0, %v2456
  %v2489 = vsub.f32 0.0, %v2457
  %v2490 = vsub.f32 0.0, %v2458
  %v2491 = vsub.f32 0.0, %v2459
  %v2492 = vsub.f32 0.0, %v2460
  %v2493 = vsub.f32 0.0, %v2461
  %v2494 = vsub.f32 0.0, %v2462
  %v2495 = vsub.f32 0.0, %v2463
  %v2496 = vsub.f32 0.0, %v2464
  %v2497 = vsub.f32 0.0, %v2465
  %v2498 = vmul.f32 %v2466, 1.442695
  %v2499 = vpow.pop %v2498
  %v2500 = vmul.f32 %v2467, 1.442695
  %v2501 = vpow.pop %v2500
  %v2502 = vmul.f32 %v2468, 1.442695
  %v2503 = vpow.pop %v2502
  %v2504 = vmul.f32 %v2469, 1.442695
  %v2505 = vpow.pop %v2504
  %v2506 = vmul.f32 %v2470, 1.442695
  %v2507 = vpow.pop %v2506
  %v2508 = vmul.f32 %v2471, 1.442695
  %v2509 = vpow.pop %v2508
  %v2510 = vmul.f32 %v2472, 1.442695
  %v2511 = vpow.pop %v2510
  %v2512 = vmul.f32 %v2473, 1.442695
  %v2513 = vpow.pop %v2512
  %v2514 = vmul.f32 %v2474, 1.442695
  %v2515 = vpow.pop %v2514
  %v2516 = vmul.f32 %v2475, 1.442695
  %v2517 = vpow.pop %v2516
  %v2518 = vmul.f32 %v2476, 1.442695
  %v2519 = vpow.pop %v2518
  %v2520 = vmul.f32 %v2477, 1.442695
  %v2521 = vpow.pop %v2520
  %v2522 = vmul.f32 %v2478, 1.442695
  %v2523 = vpow.pop %v2522
  %v2524 = vmul.f32 %v2479, 1.442695
  %v2525 = vpow.pop %v2524
  %v2526 = vmul.f32 %v2480, 1.442695
  %v2527 = vpow.pop %v2526
  %v2528 = vmul.f32 %v2481, 1.442695
  %v2529 = vpow.pop %v2528
  %v2530 = vmul.f32 %v2482, 1.442695
  %v2531 = vpow.pop %v2530
  %v2532 = vmul.f32 %v2483, 1.442695
  %v2533 = vpow.pop %v2532
  %v2534 = vmul.f32 %v2484, 1.442695
  %v2535 = vpow.pop %v2534
  %v2536 = vmul.f32 %v2485, 1.442695
  %v2537 = vpow.pop %v2536
  %v2538 = vmul.f32 %v2486, 1.442695
  %v2539 = vpow.pop %v2538
  %v2540 = vmul.f32 %v2487, 1.442695
  %v2541 = vpow.pop %v2540
  %v2542 = vmul.f32 %v2488, 1.442695
  %v2543 = vpow.pop %v2542
  %v2544 = vmul.f32 %v2489, 1.442695
  %v2545 = vpow.pop %v2544
  %v2546 = vmul.f32 %v2490, 1.442695
  %v2547 = vpow.pop %v2546
  %v2548 = vmul.f32 %v2491, 1.442695
  %v2549 = vpow.pop %v2548
  %v2550 = vmul.f32 %v2492, 1.442695
  %v2551 = vpow.pop %v2550
  %v2552 = vmul.f32 %v2493, 1.442695
  %v2553 = vpow.pop %v2552
  %v2554 = vmul.f32 %v2494, 1.442695
  %v2555 = vpow.pop %v2554
  %v2556 = vmul.f32 %v2495, 1.442695
  %v2557 = vpow.pop %v2556
  %v2558 = vmul.f32 %v2496, 1.442695
  %v2559 = vpow.pop %v2558
  %v2560 = vmul.f32 %v2497, 1.442695
  %v2561 = vpow.pop %v2560
  %v2562 = vadd.f32 %v2499, 1.0
  %v2563 = vadd.f32 %v2501, 1.0
  %v2564 = vadd.f32 %v2503, 1.0
  %v2565 = vadd.f32 %v2505, 1.0
  %v2566 = vadd.f32 %v2507, 1.0
  %v2567 = vadd.f32 %v2509, 1.0
  %v2568 = vadd.f32 %v2511, 1.0
  %v2569 = vadd.f32 %v2513, 1.0
  %v2570 = vadd.f32 %v2515, 1.0
  %v2571 = vadd.f32 %v2517, 1.0
  %v2572 = vadd.f32 %v2519, 1.0
  %v2573 = vadd.f32 %v2521, 1.0
  %v2574 = vadd.f32 %v2523, 1.0
  %v2575 = vadd.f32 %v2525, 1.0
  %v2576 = vadd.f32 %v2527, 1.0
  %v2577 = vadd.f32 %v2529, 1.0
  %v2578 = vadd.f32 %v2531, 1.0
  %v2579 = vadd.f32 %v2533, 1.0
  %v2580 = vadd.f32 %v2535, 1.0
  %v2581 = vadd.f32 %v2537, 1.0
  %v2582 = vadd.f32 %v2539, 1.0
  %v2583 = vadd.f32 %v2541, 1.0
  %v2584 = vadd.f32 %v2543, 1.0
  %v2585 = vadd.f32 %v2545, 1.0
  %v2586 = vadd.f32 %v2547, 1.0
  %v2587 = vadd.f32 %v2549, 1.0
  %v2588 = vadd.f32 %v2551, 1.0
  %v2589 = vadd.f32 %v2553, 1.0
  %v2590 = vadd.f32 %v2555, 1.0
  %v2591 = vadd.f32 %v2557, 1.0
  %v2592 = vadd.f32 %v2559, 1.0
  %v2593 = vadd.f32 %v2561, 1.0
  %v2594 = vrcp.pop %v2562
  %v2595 = vmul.f32 %v2562, %v2594
  %v2596 = vsub.f32 1.0, %v2595
  %v2597 = vmul.f32 %v2594, %v2596
  %v2598 = vadd.f32 %v2594, %v2597
  %vm2599 = vweird.f32 %v2562
  %vm2600 = vweird.f32 %v2594
  %vm2601 = vmor %vm2599, %vm2600
  %v2602 = vsel %vm2601, %v2594, %v2598
  %v2603 = vand.u32 2147483647, %v2562
  %vm2604 = vcmp.eq.f32.partialorder %v2603, 8.507059e+37
  %v2605 = vand.u32 %v2562, 2147483648
  %v2606 = vor.u32 1.1754944e-38, %v2605
  %v2607 = vsel %vm2604, %v2606, %v2602
  %v2608 = vmul.f32 1.0, %v2607
  %v2609 = vrcp.pop %v2563
  %v2610 = vmul.f32 %v2563, %v2609
  %v2611 = vsub.f32 1.0, %v2610
  %v2612 = vmul.f32 %v2609, %v2611
  %v2613 = vadd.f32 %v2609, %v2612
  %vm2614 = vweird.f32 %v2563
  %vm2615 = vweird.f32 %v2609
  %vm2616 = vmor %vm2614, %vm2615
  %v2617 = vsel %vm2616, %v2609, %v2613
  %v2618 = vand.u32 2147483647, %v2563
  %vm2619 = vcmp.eq.f32.partialorder %v2618, 8.507059e+37
  %v2620 = vand.u32 %v2563, 2147483648
  %v2621 = vor.u32 1.1754944e-38, %v2620
  %v2622 = vsel %vm2619, %v2621, %v2617
  %v2623 = vmul.f32 1.0, %v2622
  %v2624 = vrcp.pop %v2564
  %v2625 = vmul.f32 %v2564, %v2624
  %v2626 = vsub.f32 1.0, %v2625
  %v2627 = vmul.f32 %v2624, %v2626
  %v2628 = vadd.f32 %v2624, %v2627
  %vm2629 = vweird.f32 %v2564
  %vm2630 = vweird.f32 %v2624
  %vm2631 = vmor %vm2629, %vm2630
  %v2632 = vsel %vm2631, %v2624, %v2628
  %v2633 = vand.u32 2147483647, %v2564
  %vm2634 = vcmp.eq.f32.partialorder %v2633, 8.507059e+37
  %v2635 = vand.u32 %v2564, 2147483648
  %v2636 = vor.u32 1.1754944e-38, %v2635
  %v2637 = vsel %vm2634, %v2636, %v2632
  %v2638 = vmul.f32 1.0, %v2637
  %v2639 = vrcp.pop %v2565
  %v2640 = vmul.f32 %v2565, %v2639
  %v2641 = vsub.f32 1.0, %v2640
  %v2642 = vmul.f32 %v2639, %v2641
  %v2643 = vadd.f32 %v2639, %v2642
  %vm2644 = vweird.f32 %v2565
  %vm2645 = vweird.f32 %v2639
  %vm2646 = vmor %vm2644, %vm2645
  %v2647 = vsel %vm2646, %v2639, %v2643
  %v2648 = vand.u32 2147483647, %v2565
  %vm2649 = vcmp.eq.f32.partialorder %v2648, 8.507059e+37
  %v2650 = vand.u32 %v2565, 2147483648
  %v2651 = vor.u32 1.1754944e-38, %v2650
  %v2652 = vsel %vm2649, %v2651, %v2647
  %v2653 = vmul.f32 1.0, %v2652
  %v2654 = vrcp.pop %v2566
  %v2655 = vmul.f32 %v2566, %v2654
  %v2656 = vsub.f32 1.0, %v2655
  %v2657 = vmul.f32 %v2654, %v2656
  %v2658 = vadd.f32 %v2654, %v2657
  %vm2659 = vweird.f32 %v2566
  %vm2660 = vweird.f32 %v2654
  %vm2661 = vmor %vm2659, %vm2660
  %v2662 = vsel %vm2661, %v2654, %v2658
  %v2663 = vand.u32 2147483647, %v2566
  %vm2664 = vcmp.eq.f32.partialorder %v2663, 8.507059e+37
  %v2665 = vand.u32 %v2566, 2147483648
  %v2666 = vor.u32 1.1754944e-38, %v2665
  %v2667 = vsel %vm2664, %v2666, %v2662
  %v2668 = vmul.f32 1.0, %v2667
  %v2669 = vrcp.pop %v2567
  %v2670 = vmul.f32 %v2567, %v2669
  %v2671 = vsub.f32 1.0, %v2670
  %v2672 = vmul.f32 %v2669, %v2671
  %v2673 = vadd.f32 %v2669, %v2672
  %vm2674 = vweird.f32 %v2567
  %vm2675 = vweird.f32 %v2669
  %vm2676 = vmor %vm2674, %vm2675
  %v2677 = vsel %vm2676, %v2669, %v2673
  %v2678 = vand.u32 2147483647, %v2567
  %vm2679 = vcmp.eq.f32.partialorder %v2678, 8.507059e+37
  %v2680 = vand.u32 %v2567, 2147483648
  %v2681 = vor.u32 1.1754944e-38, %v2680
  %v2682 = vsel %vm2679, %v2681, %v2677
  %v2683 = vmul.f32 1.0, %v2682
  %v2684 = vrcp.pop %v2568
  %v2685 = vmul.f32 %v2568, %v2684
  %v2686 = vsub.f32 1.0, %v2685
  %v2687 = vmul.f32 %v2684, %v2686
  %v2688 = vadd.f32 %v2684, %v2687
  %vm2689 = vweird.f32 %v2568
  %vm2690 = vweird.f32 %v2684
  %vm2691 = vmor %vm2689, %vm2690
  %v2692 = vsel %vm2691, %v2684, %v2688
  %v2693 = vand.u32 2147483647, %v2568
  %vm2694 = vcmp.eq.f32.partialorder %v2693, 8.507059e+37
  %v2695 = vand.u32 %v2568, 2147483648
  %v2696 = vor.u32 1.1754944e-38, %v2695
  %v2697 = vsel %vm2694, %v2696, %v2692
  %v2698 = vmul.f32 1.0, %v2697
  %v2699 = vrcp.pop %v2569
  %v2700 = vmul.f32 %v2569, %v2699
  %v2701 = vsub.f32 1.0, %v2700
  %v2702 = vmul.f32 %v2699, %v2701
  %v2703 = vadd.f32 %v2699, %v2702
  %vm2704 = vweird.f32 %v2569
  %vm2705 = vweird.f32 %v2699
  %vm2706 = vmor %vm2704, %vm2705
  %v2707 = vsel %vm2706, %v2699, %v2703
  %v2708 = vand.u32 2147483647, %v2569
  %vm2709 = vcmp.eq.f32.partialorder %v2708, 8.507059e+37
  %v2710 = vand.u32 %v2569, 2147483648
  %v2711 = vor.u32 1.1754944e-38, %v2710
  %v2712 = vsel %vm2709, %v2711, %v2707
  %v2713 = vmul.f32 1.0, %v2712
  %v2714 = vrcp.pop %v2570
  %v2715 = vmul.f32 %v2570, %v2714
  %v2716 = vsub.f32 1.0, %v2715
  %v2717 = vmul.f32 %v2714, %v2716
  %v2718 = vadd.f32 %v2714, %v2717
  %vm2719 = vweird.f32 %v2570
  %vm2720 = vweird.f32 %v2714
  %vm2721 = vmor %vm2719, %vm2720
  %v2722 = vsel %vm2721, %v2714, %v2718
  %v2723 = vand.u32 2147483647, %v2570
  %vm2724 = vcmp.eq.f32.partialorder %v2723, 8.507059e+37
  %v2725 = vand.u32 %v2570, 2147483648
  %v2726 = vor.u32 1.1754944e-38, %v2725
  %v2727 = vsel %vm2724, %v2726, %v2722
  %v2728 = vmul.f32 1.0, %v2727
  %v2729 = vrcp.pop %v2571
  %v2730 = vmul.f32 %v2571, %v2729
  %v2731 = vsub.f32 1.0, %v2730
  %v2732 = vmul.f32 %v2729, %v2731
  %v2733 = vadd.f32 %v2729, %v2732
  %vm2734 = vweird.f32 %v2571
  %vm2735 = vweird.f32 %v2729
  %vm2736 = vmor %vm2734, %vm2735
  %v2737 = vsel %vm2736, %v2729, %v2733
  %v2738 = vand.u32 2147483647, %v2571
  %vm2739 = vcmp.eq.f32.partialorder %v2738, 8.507059e+37
  %v2740 = vand.u32 %v2571, 2147483648
  %v2741 = vor.u32 1.1754944e-38, %v2740
  %v2742 = vsel %vm2739, %v2741, %v2737
  %v2743 = vmul.f32 1.0, %v2742
  %v2744 = vrcp.pop %v2572
  %v2745 = vmul.f32 %v2572, %v2744
  %v2746 = vsub.f32 1.0, %v2745
  %v2747 = vmul.f32 %v2744, %v2746
  %v2748 = vadd.f32 %v2744, %v2747
  %vm2749 = vweird.f32 %v2572
  %vm2750 = vweird.f32 %v2744
  %vm2751 = vmor %vm2749, %vm2750
  %v2752 = vsel %vm2751, %v2744, %v2748
  %v2753 = vand.u32 2147483647, %v2572
  %vm2754 = vcmp.eq.f32.partialorder %v2753, 8.507059e+37
  %v2755 = vand.u32 %v2572, 2147483648
  %v2756 = vor.u32 1.1754944e-38, %v2755
  %v2757 = vsel %vm2754, %v2756, %v2752
  %v2758 = vmul.f32 1.0, %v2757
  %v2759 = vrcp.pop %v2573
  %v2760 = vmul.f32 %v2573, %v2759
  %v2761 = vsub.f32 1.0, %v2760
  %v2762 = vmul.f32 %v2759, %v2761
  %v2763 = vadd.f32 %v2759, %v2762
  %vm2764 = vweird.f32 %v2573
  %vm2765 = vweird.f32 %v2759
  %vm2766 = vmor %vm2764, %vm2765
  %v2767 = vsel %vm2766, %v2759, %v2763
  %v2768 = vand.u32 2147483647, %v2573
  %vm2769 = vcmp.eq.f32.partialorder %v2768, 8.507059e+37
  %v2770 = vand.u32 %v2573, 2147483648
  %v2771 = vor.u32 1.1754944e-38, %v2770
  %v2772 = vsel %vm2769, %v2771, %v2767
  %v2773 = vmul.f32 1.0, %v2772
  %v2774 = vrcp.pop %v2574
  %v2775 = vmul.f32 %v2574, %v2774
  %v2776 = vsub.f32 1.0, %v2775
  %v2777 = vmul.f32 %v2774, %v2776
  %v2778 = vadd.f32 %v2774, %v2777
  %vm2779 = vweird.f32 %v2574
  %vm2780 = vweird.f32 %v2774
  %vm2781 = vmor %vm2779, %vm2780
  %v2782 = vsel %vm2781, %v2774, %v2778
  %v2783 = vand.u32 2147483647, %v2574
  %vm2784 = vcmp.eq.f32.partialorder %v2783, 8.507059e+37
  %v2785 = vand.u32 %v2574, 2147483648
  %v2786 = vor.u32 1.1754944e-38, %v2785
  %v2787 = vsel %vm2784, %v2786, %v2782
  %v2788 = vmul.f32 1.0, %v2787
  %v2789 = vrcp.pop %v2575
  %v2790 = vmul.f32 %v2575, %v2789
  %v2791 = vsub.f32 1.0, %v2790
  %v2792 = vmul.f32 %v2789, %v2791
  %v2793 = vadd.f32 %v2789, %v2792
  %vm2794 = vweird.f32 %v2575
  %vm2795 = vweird.f32 %v2789
  %vm2796 = vmor %vm2794, %vm2795
  %v2797 = vsel %vm2796, %v2789, %v2793
  %v2798 = vand.u32 2147483647, %v2575
  %vm2799 = vcmp.eq.f32.partialorder %v2798, 8.507059e+37
  %v2800 = vand.u32 %v2575, 2147483648
  %v2801 = vor.u32 1.1754944e-38, %v2800
  %v2802 = vsel %vm2799, %v2801, %v2797
  %v2803 = vmul.f32 1.0, %v2802
  %v2804 = vrcp.pop %v2576
  %v2805 = vmul.f32 %v2576, %v2804
  %v2806 = vsub.f32 1.0, %v2805
  %v2807 = vmul.f32 %v2804, %v2806
  %v2808 = vadd.f32 %v2804, %v2807
  %vm2809 = vweird.f32 %v2576
  %vm2810 = vweird.f32 %v2804
  %vm2811 = vmor %vm2809, %vm2810
  %v2812 = vsel %vm2811, %v2804, %v2808
  %v2813 = vand.u32 2147483647, %v2576
  %vm2814 = vcmp.eq.f32.partialorder %v2813, 8.507059e+37
  %v2815 = vand.u32 %v2576, 2147483648
  %v2816 = vor.u32 1.1754944e-38, %v2815
  %v2817 = vsel %vm2814, %v2816, %v2812
  %v2818 = vmul.f32 1.0, %v2817
  %v2819 = vrcp.pop %v2577
  %v2820 = vmul.f32 %v2577, %v2819
  %v2821 = vsub.f32 1.0, %v2820
  %v2822 = vmul.f32 %v2819, %v2821
  %v2823 = vadd.f32 %v2819, %v2822
  %vm2824 = vweird.f32 %v2577
  %vm2825 = vweird.f32 %v2819
  %vm2826 = vmor %vm2824, %vm2825
  %v2827 = vsel %vm2826, %v2819, %v2823
  %v2828 = vand.u32 2147483647, %v2577
  %vm2829 = vcmp.eq.f32.partialorder %v2828, 8.507059e+37
  %v2830 = vand.u32 %v2577, 2147483648
  %v2831 = vor.u32 1.1754944e-38, %v2830
  %v2832 = vsel %vm2829, %v2831, %v2827
  %v2833 = vmul.f32 1.0, %v2832
  %v2834 = vrcp.pop %v2578
  %v2835 = vmul.f32 %v2578, %v2834
  %v2836 = vsub.f32 1.0, %v2835
  %v2837 = vmul.f32 %v2834, %v2836
  %v2838 = vadd.f32 %v2834, %v2837
  %vm2839 = vweird.f32 %v2578
  %vm2840 = vweird.f32 %v2834
  %vm2841 = vmor %vm2839, %vm2840
  %v2842 = vsel %vm2841, %v2834, %v2838
  %v2843 = vand.u32 2147483647, %v2578
  %vm2844 = vcmp.eq.f32.partialorder %v2843, 8.507059e+37
  %v2845 = vand.u32 %v2578, 2147483648
  %v2846 = vor.u32 1.1754944e-38, %v2845
  %v2847 = vsel %vm2844, %v2846, %v2842
  %v2848 = vmul.f32 1.0, %v2847
  %v2849 = vrcp.pop %v2579
  %v2850 = vmul.f32 %v2579, %v2849
  %v2851 = vsub.f32 1.0, %v2850
  %v2852 = vmul.f32 %v2849, %v2851
  %v2853 = vadd.f32 %v2849, %v2852
  %vm2854 = vweird.f32 %v2579
  %vm2855 = vweird.f32 %v2849
  %vm2856 = vmor %vm2854, %vm2855
  %v2857 = vsel %vm2856, %v2849, %v2853
  %v2858 = vand.u32 2147483647, %v2579
  %vm2859 = vcmp.eq.f32.partialorder %v2858, 8.507059e+37
  %v2860 = vand.u32 %v2579, 2147483648
  %v2861 = vor.u32 1.1754944e-38, %v2860
  %v2862 = vsel %vm2859, %v2861, %v2857
  %v2863 = vmul.f32 1.0, %v2862
  %v2864 = vrcp.pop %v2580
  %v2865 = vmul.f32 %v2580, %v2864
  %v2866 = vsub.f32 1.0, %v2865
  %v2867 = vmul.f32 %v2864, %v2866
  %v2868 = vadd.f32 %v2864, %v2867
  %vm2869 = vweird.f32 %v2580
  %vm2870 = vweird.f32 %v2864
  %vm2871 = vmor %vm2869, %vm2870
  %v2872 = vsel %vm2871, %v2864, %v2868
  %v2873 = vand.u32 2147483647, %v2580
  %vm2874 = vcmp.eq.f32.partialorder %v2873, 8.507059e+37
  %v2875 = vand.u32 %v2580, 2147483648
  %v2876 = vor.u32 1.1754944e-38, %v2875
  %v2877 = vsel %vm2874, %v2876, %v2872
  %v2878 = vmul.f32 1.0, %v2877
  %v2879 = vrcp.pop %v2581
  %v2880 = vmul.f32 %v2581, %v2879
  %v2881 = vsub.f32 1.0, %v2880
  %v2882 = vmul.f32 %v2879, %v2881
  %v2883 = vadd.f32 %v2879, %v2882
  %vm2884 = vweird.f32 %v2581
  %vm2885 = vweird.f32 %v2879
  %vm2886 = vmor %vm2884, %vm2885
  %v2887 = vsel %vm2886, %v2879, %v2883
  %v2888 = vand.u32 2147483647, %v2581
  %vm2889 = vcmp.eq.f32.partialorder %v2888, 8.507059e+37
  %v2890 = vand.u32 %v2581, 2147483648
  %v2891 = vor.u32 1.1754944e-38, %v2890
  %v2892 = vsel %vm2889, %v2891, %v2887
  %v2893 = vmul.f32 1.0, %v2892
  %v2894 = vrcp.pop %v2582
  %v2895 = vmul.f32 %v2582, %v2894
  %v2896 = vsub.f32 1.0, %v2895
  %v2897 = vmul.f32 %v2894, %v2896
  %v2898 = vadd.f32 %v2894, %v2897
  %vm2899 = vweird.f32 %v2582
  %vm2900 = vweird.f32 %v2894
  %vm2901 = vmor %vm2899, %vm2900
  %v2902 = vsel %vm2901, %v2894, %v2898
  %v2903 = vand.u32 2147483647, %v2582
  %vm2904 = vcmp.eq.f32.partialorder %v2903, 8.507059e+37
  %v2905 = vand.u32 %v2582, 2147483648
  %v2906 = vor.u32 1.1754944e-38, %v2905
  %v2907 = vsel %vm2904, %v2906, %v2902
  %v2908 = vmul.f32 1.0, %v2907
  %v2909 = vrcp.pop %v2583
  %v2910 = vmul.f32 %v2583, %v2909
  %v2911 = vsub.f32 1.0, %v2910
  %v2912 = vmul.f32 %v2909, %v2911
  %v2913 = vadd.f32 %v2909, %v2912
  %vm2914 = vweird.f32 %v2583
  %vm2915 = vweird.f32 %v2909
  %vm2916 = vmor %vm2914, %vm2915
  %v2917 = vsel %vm2916, %v2909, %v2913
  %v2918 = vand.u32 2147483647, %v2583
  %vm2919 = vcmp.eq.f32.partialorder %v2918, 8.507059e+37
  %v2920 = vand.u32 %v2583, 2147483648
  %v2921 = vor.u32 1.1754944e-38, %v2920
  %v2922 = vsel %vm2919, %v2921, %v2917
  %v2923 = vmul.f32 1.0, %v2922
  %v2924 = vrcp.pop %v2584
  %v2925 = vmul.f32 %v2584, %v2924
  %v2926 = vsub.f32 1.0, %v2925
  %v2927 = vmul.f32 %v2924, %v2926
  %v2928 = vadd.f32 %v2924, %v2927
  %vm2929 = vweird.f32 %v2584
  %vm2930 = vweird.f32 %v2924
  %vm2931 = vmor %vm2929, %vm2930
  %v2932 = vsel %vm2931, %v2924, %v2928
  %v2933 = vand.u32 2147483647, %v2584
  %vm2934 = vcmp.eq.f32.partialorder %v2933, 8.507059e+37
  %v2935 = vand.u32 %v2584, 2147483648
  %v2936 = vor.u32 1.1754944e-38, %v2935
  %v2937 = vsel %vm2934, %v2936, %v2932
  %v2938 = vmul.f32 1.0, %v2937
  %v2939 = vrcp.pop %v2585
  %v2940 = vmul.f32 %v2585, %v2939
  %v2941 = vsub.f32 1.0, %v2940
  %v2942 = vmul.f32 %v2939, %v2941
  %v2943 = vadd.f32 %v2939, %v2942
  %vm2944 = vweird.f32 %v2585
  %vm2945 = vweird.f32 %v2939
  %vm2946 = vmor %vm2944, %vm2945
  %v2947 = vsel %vm2946, %v2939, %v2943
  %v2948 = vand.u32 2147483647, %v2585
  %vm2949 = vcmp.eq.f32.partialorder %v2948, 8.507059e+37
  %v2950 = vand.u32 %v2585, 2147483648
  %v2951 = vor.u32 1.1754944e-38, %v2950
  %v2952 = vsel %vm2949, %v2951, %v2947
  %v2953 = vmul.f32 1.0, %v2952
  %v2954 = vrcp.pop %v2586
  %v2955 = vmul.f32 %v2586, %v2954
  %v2956 = vsub.f32 1.0, %v2955
  %v2957 = vmul.f32 %v2954, %v2956
  %v2958 = vadd.f32 %v2954, %v2957
  %vm2959 = vweird.f32 %v2586
  %vm2960 = vweird.f32 %v2954
  %vm2961 = vmor %vm2959, %vm2960
  %v2962 = vsel %vm2961, %v2954, %v2958
  %v2963 = vand.u32 2147483647, %v2586
  %vm2964 = vcmp.eq.f32.partialorder %v2963, 8.507059e+37
  %v2965 = vand.u32 %v2586, 2147483648
  %v2966 = vor.u32 1.1754944e-38, %v2965
  %v2967 = vsel %vm2964, %v2966, %v2962
  %v2968 = vmul.f32 1.0, %v2967
  %v2969 = vrcp.pop %v2587
  %v2970 = vmul.f32 %v2587, %v2969
  %v2971 = vsub.f32 1.0, %v2970
  %v2972 = vmul.f32 %v2969, %v2971
  %v2973 = vadd.f32 %v2969, %v2972
  %vm2974 = vweird.f32 %v2587
  %vm2975 = vweird.f32 %v2969
  %vm2976 = vmor %vm2974, %vm2975
  %v2977 = vsel %vm2976, %v2969, %v2973
  %v2978 = vand.u32 2147483647, %v2587
  %vm2979 = vcmp.eq.f32.partialorder %v2978, 8.507059e+37
  %v2980 = vand.u32 %v2587, 2147483648
  %v2981 = vor.u32 1.1754944e-38, %v2980
  %v2982 = vsel %vm2979, %v2981, %v2977
  %v2983 = vmul.f32 1.0, %v2982
  %v2984 = vrcp.pop %v2588
  %v2985 = vmul.f32 %v2588, %v2984
  %v2986 = vsub.f32 1.0, %v2985
  %v2987 = vmul.f32 %v2984, %v2986
  %v2988 = vadd.f32 %v2984, %v2987
  %vm2989 = vweird.f32 %v2588
  %vm2990 = vweird.f32 %v2984
  %vm2991 = vmor %vm2989, %vm2990
  %v2992 = vsel %vm2991, %v2984, %v2988
  %v2993 = vand.u32 2147483647, %v2588
  %vm2994 = vcmp.eq.f32.partialorder %v2993, 8.507059e+37
  %v2995 = vand.u32 %v2588, 2147483648
  %v2996 = vor.u32 1.1754944e-38, %v2995
  %v2997 = vsel %vm2994, %v2996, %v2992
  %v2998 = vmul.f32 1.0, %v2997
  %v2999 = vrcp.pop %v2589
  %v3000 = vmul.f32 %v2589, %v2999
  %v3001 = vsub.f32 1.0, %v3000
  %v3002 = vmul.f32 %v2999, %v3001
  %v3003 = vadd.f32 %v2999, %v3002
  %vm3004 = vweird.f32 %v2589
  %vm3005 = vweird.f32 %v2999
  %vm3006 = vmor %vm3004, %vm3005
  %v3007 = vsel %vm3006, %v2999, %v3003
  %v3008 = vand.u32 2147483647, %v2589
  %vm3009 = vcmp.eq.f32.partialorder %v3008, 8.507059e+37
  %v3010 = vand.u32 %v2589, 2147483648
  %v3011 = vor.u32 1.1754944e-38, %v3010
  %v3012 = vsel %vm3009, %v3011, %v3007
  %v3013 = vmul.f32 1.0, %v3012
  %v3014 = vrcp.pop %v2590
  %v3015 = vmul.f32 %v2590, %v3014
  %v3016 = vsub.f32 1.0, %v3015
  %v3017 = vmul.f32 %v3014, %v3016
  %v3018 = vadd.f32 %v3014, %v3017
  %vm3019 = vweird.f32 %v2590
  %vm3020 = vweird.f32 %v3014
  %vm3021 = vmor %vm3019, %vm3020
  %v3022 = vsel %vm3021, %v3014, %v3018
  %v3023 = vand.u32 2147483647, %v2590
  %vm3024 = vcmp.eq.f32.partialorder %v3023, 8.507059e+37
  %v3025 = vand.u32 %v2590, 2147483648
  %v3026 = vor.u32 1.1754944e-38, %v3025
  %v3027 = vsel %vm3024, %v3026, %v3022
  %v3028 = vmul.f32 1.0, %v3027
  %v3029 = vrcp.pop %v2591
  %v3030 = vmul.f32 %v2591, %v3029
  %v3031 = vsub.f32 1.0, %v3030
  %v3032 = vmul.f32 %v3029, %v3031
  %v3033 = vadd.f32 %v3029, %v3032
  %vm3034 = vweird.f32 %v2591
  %vm3035 = vweird.f32 %v3029
  %vm3036 = vmor %vm3034, %vm3035
  %v3037 = vsel %vm3036, %v3029, %v3033
  %v3038 = vand.u32 2147483647, %v2591
  %vm3039 = vcmp.eq.f32.partialorder %v3038, 8.507059e+37
  %v3040 = vand.u32 %v2591, 2147483648
  %v3041 = vor.u32 1.1754944e-38, %v3040
  %v3042 = vsel %vm3039, %v3041, %v3037
  %v3043 = vmul.f32 1.0, %v3042
  %v3044 = vrcp.pop %v2592
  %v3045 = vmul.f32 %v2592, %v3044
  %v3046 = vsub.f32 1.0, %v3045
  %v3047 = vmul.f32 %v3044, %v3046
  %v3048 = vadd.f32 %v3044, %v3047
  %vm3049 = vweird.f32 %v2592
  %vm3050 = vweird.f32 %v3044
  %vm3051 = vmor %vm3049, %vm3050
  %v3052 = vsel %vm3051, %v3044, %v3048
  %v3053 = vand.u32 2147483647, %v2592
  %vm3054 = vcmp.eq.f32.partialorder %v3053, 8.507059e+37
  %v3055 = vand.u32 %v2592, 2147483648
  %v3056 = vor.u32 1.1754944e-38, %v3055
  %v3057 = vsel %vm3054, %v3056, %v3052
  %v3058 = vmul.f32 1.0, %v3057
  %v3059 = vrcp.pop %v2593
  %v3060 = vmul.f32 %v2593, %v3059
  %v3061 = vsub.f32 1.0, %v3060
  %v3062 = vmul.f32 %v3059, %v3061
  %v3063 = vadd.f32 %v3059, %v3062
  %vm3064 = vweird.f32 %v2593
  %vm3065 = vweird.f32 %v3059
  %vm3066 = vmor %vm3064, %vm3065
  %v3067 = vsel %vm3066, %v3059, %v3063
  %v3068 = vand.u32 2147483647, %v2593
  %vm3069 = vcmp.eq.f32.partialorder %v3068, 8.507059e+37
  %v3070 = vand.u32 %v2593, 2147483648
  %v3071 = vor.u32 1.1754944e-38, %v3070
  %v3072 = vsel %vm3069, %v3071, %v3067
  %v3073 = vmul.f32 1.0, %v3072
  %v3074 = vmul.f32 %v1472, %v2608
  %v3075 = vmul.f32 %v1473, %v2623
  %v3076 = vmul.f32 %v1474, %v2638
  %v3077 = vmul.f32 %v1475, %v2653
  %v3078 = vmul.f32 %v1476, %v2668
  %v3079 = vmul.f32 %v1477, %v2683
  %v3080 = vmul.f32 %v1478, %v2698
  %v3081 = vmul.f32 %v1479, %v2713
  %v3082 = vmul.f32 %v1480, %v2728
  %v3083 = vmul.f32 %v1481, %v2743
  %v3084 = vmul.f32 %v1482, %v2758
  %v3085 = vmul.f32 %v1483, %v2773
  %v3086 = vmul.f32 %v1484, %v2788
  %v3087 = vmul.f32 %v1485, %v2803
  %v3088 = vmul.f32 %v1486, %v2818
  %v3089 = vmul.f32 %v1487, %v2833
  %v3090 = vmul.f32 %v1488, %v2848
  %v3091 = vmul.f32 %v1489, %v2863
  %v3092 = vmul.f32 %v1490, %v2878
  %v3093 = vmul.f32 %v1491, %v2893
  %v3094 = vmul.f32 %v1492, %v2908
  %v3095 = vmul.f32 %v1493, %v2923
  %v3096 = vmul.f32 %v1494, %v2938
  %v3097 = vmul.f32 %v1495, %v2953
  %v3098 = vmul.f32 %v1496, %v2968
  %v3099 = vmul.f32 %v1497, %v2983
  %v3100 = vmul.f32 %v1498, %v2998
  %v3101 = vmul.f32 %v1499, %v3013
  %v3102 = vmul.f32 %v1500, %v3028
  %v3103 = vmul.f32 %v1501, %v3043
  %v3104 = vmul.f32 %v1502, %v3058
  %v3105 = vmul.f32 %v1503, %v3073
  %v3106 = vpack.c.bf16 %v3075, %v3074
  %v3107 = vpack.c.bf16 %v3077, %v3076
  %v3108 = vpack.c.bf16 %v3079, %v3078
  %v3109 = vpack.c.bf16 %v3081, %v3080
  %v3110 = vpack.c.bf16 %v3083, %v3082
  %v3111 = vpack.c.bf16 %v3085, %v3084
  %v3112 = vpack.c.bf16 %v3087, %v3086
  %v3113 = vpack.c.bf16 %v3089, %v3088
  %v3114 = vpack.c.bf16 %v3091, %v3090
  %v3115 = vpack.c.bf16 %v3093, %v3092
  %v3116 = vpack.c.bf16 %v3095, %v3094
  %v3117 = vpack.c.bf16 %v3097, %v3096
  %v3118 = vpack.c.bf16 %v3099, %v3098
  %v3119 = vpack.c.bf16 %v3101, %v3100
  %v3120 = vpack.c.bf16 %v3103, %v3102
  %v3121 = vpack.c.bf16 %v3105, %v3104
  %v3122 = vld [vmem:[%s6] sm:$0xf]
  %v3123 = vld [vmem:[%s6 + $0x4] sm:$0xf]
  %v3124 = vld [vmem:[%s6 + $0x8] sm:$0xf]
  %v3125 = vld [vmem:[%s6 + $0xc] sm:$0xf]
  %v3126 = vld [vmem:[%s6 + $0x10] sm:$0xf]
  %v3127 = vld [vmem:[%s6 + $0x14] sm:$0xf]
  %v3128 = vld [vmem:[%s6 + $0x18] sm:$0xf]
  %v3129 = vld [vmem:[%s6 + $0x1c] sm:$0xf]
  %v3130 = vld [vmem:[%s6 + $0x20] sm:$0xf]
  %v3131 = vld [vmem:[%s6 + $0x24] sm:$0xf]
  %v3132 = vld [vmem:[%s6 + $0x28] sm:$0xf]
  %v3133 = vld [vmem:[%s6 + $0x2c] sm:$0xf]
  %v3134 = vld [vmem:[%s6 + $0x30] sm:$0xf]
  %v3135 = vld [vmem:[%s6 + $0x34] sm:$0xf]
  %v3136 = vld [vmem:[%s6 + $0x38] sm:$0xf]
  %v3137 = vld [vmem:[%s6 + $0x3c] sm:$0xf]
  %v3154 = vunpack.c.l.b16 %v3122
  %v3155 = vunpack.c.l.b16 %v3123
  %v3156 = vunpack.c.l.b16 %v3124
  %v3157 = vunpack.c.l.b16 %v3125
  %v3158 = vunpack.c.l.b16 %v3126
  %v3159 = vunpack.c.l.b16 %v3127
  %v3160 = vunpack.c.l.b16 %v3128
  %v3161 = vunpack.c.l.b16 %v3129
  %v3162 = vunpack.c.l.b16 %v3130
  %v3163 = vunpack.c.l.b16 %v3131
  %v3164 = vunpack.c.l.b16 %v3132
  %v3165 = vunpack.c.l.b16 %v3133
  %v3166 = vunpack.c.l.b16 %v3134
  %v3167 = vunpack.c.l.b16 %v3135
  %v3168 = vunpack.c.l.b16 %v3136
  %v3169 = vunpack.c.l.b16 %v3137
  %v3170 = vpack.c.b16 %v3155, %v3154
  %v3171 = vpack.c.b16 %v3157, %v3156
  %v3172 = vpack.c.b16 %v3159, %v3158
  %v3173 = vpack.c.b16 %v3161, %v3160
  %v3174 = vpack.c.b16 %v3163, %v3162
  %v3175 = vpack.c.b16 %v3165, %v3164
  %v3176 = vpack.c.b16 %v3167, %v3166
  %v3177 = vpack.c.b16 %v3169, %v3168
  %3186 = vmatpush.bf16.msra.mxu0 %v3177
  %3187 = vmatpush.bf16.msra.mxu0 %v3176
  %3188 = vmatpush.bf16.msra.mxu0 %v3175
  %3189 = vmatpush.bf16.msra.mxu0 %v3174
  %3190 = vmatpush.bf16.msra.mxu0 %v3173
  %3191 = vmatpush.bf16.msra.mxu0 %v3172
  %3192 = vmatpush.bf16.msra.mxu0 %v3171
  %3193 = vmatpush.bf16.msra.mxu0 %v3170
  %3194 = vmatmul.bf16.gmra.mxu0 %v3106
  %v3195 = vpop.f32.mrf.mxu0
  %v3196 = vadd.f32 0.0, %v3195
  %v3197 = vpop.f32.mrf.mxu0
  %v3198 = vadd.f32 0.0, %v3197
  %3199 = vmatmul.bf16.gmra.mxu0 %v3107
  %v3200 = vpop.f32.mrf.mxu0
  %v3201 = vadd.f32 0.0, %v3200
  %v3202 = vpop.f32.mrf.mxu0
  %v3203 = vadd.f32 0.0, %v3202
  %3204 = vmatmul.bf16.gmra.mxu0 %v3108
  %v3205 = vpop.f32.mrf.mxu0
  %v3206 = vadd.f32 0.0, %v3205
  %v3207 = vpop.f32.mrf.mxu0
  %v3208 = vadd.f32 0.0, %v3207
  %3209 = vmatmul.bf16.gmra.mxu0 %v3109
  %v3210 = vpop.f32.mrf.mxu0
  %v3211 = vadd.f32 0.0, %v3210
  %v3212 = vpop.f32.mrf.mxu0
  %v3213 = vadd.f32 0.0, %v3212
  %3214 = vmatmul.bf16.gmra.mxu0 %v3110
  %v3215 = vpop.f32.mrf.mxu0
  %v3216 = vadd.f32 0.0, %v3215
  %v3217 = vpop.f32.mrf.mxu0
  %v3218 = vadd.f32 0.0, %v3217
  %3219 = vmatmul.bf16.gmra.mxu0 %v3111
  %v3220 = vpop.f32.mrf.mxu0
  %v3221 = vadd.f32 0.0, %v3220
  %v3222 = vpop.f32.mrf.mxu0
  %v3223 = vadd.f32 0.0, %v3222
  %3224 = vmatmul.bf16.gmra.mxu0 %v3112
  %v3225 = vpop.f32.mrf.mxu0
  %v3226 = vadd.f32 0.0, %v3225
  %v3227 = vpop.f32.mrf.mxu0
  %v3228 = vadd.f32 0.0, %v3227
  %3229 = vmatmul.bf16.gmra.mxu0 %v3113
  %v3230 = vpop.f32.mrf.mxu0
  %v3231 = vadd.f32 0.0, %v3230
  %v3232 = vpop.f32.mrf.mxu0
  %v3233 = vadd.f32 0.0, %v3232
  %3234 = vmatmul.bf16.gmra.mxu0 %v3114
  %v3235 = vpop.f32.mrf.mxu0
  %v3236 = vadd.f32 0.0, %v3235
  %v3237 = vpop.f32.mrf.mxu0
  %v3238 = vadd.f32 0.0, %v3237
  %3239 = vmatmul.bf16.gmra.mxu0 %v3115
  %v3240 = vpop.f32.mrf.mxu0
  %v3241 = vadd.f32 0.0, %v3240
  %v3242 = vpop.f32.mrf.mxu0
  %v3243 = vadd.f32 0.0, %v3242
  %3244 = vmatmul.bf16.gmra.mxu0 %v3116
  %v3245 = vpop.f32.mrf.mxu0
  %v3246 = vadd.f32 0.0, %v3245
  %v3247 = vpop.f32.mrf.mxu0
  %v3248 = vadd.f32 0.0, %v3247
  %3249 = vmatmul.bf16.gmra.mxu0 %v3117
  %v3250 = vpop.f32.mrf.mxu0
  %v3251 = vadd.f32 0.0, %v3250
  %v3252 = vpop.f32.mrf.mxu0
  %v3253 = vadd.f32 0.0, %v3252
  %3254 = vmatmul.bf16.gmra.mxu0 %v3118
  %v3255 = vpop.f32.mrf.mxu0
  %v3256 = vadd.f32 0.0, %v3255
  %v3257 = vpop.f32.mrf.mxu0
  %v3258 = vadd.f32 0.0, %v3257
  %3259 = vmatmul.bf16.gmra.mxu0 %v3119
  %v3260 = vpop.f32.mrf.mxu0
  %v3261 = vadd.f32 0.0, %v3260
  %v3262 = vpop.f32.mrf.mxu0
  %v3263 = vadd.f32 0.0, %v3262
  %3264 = vmatmul.bf16.gmra.mxu0 %v3120
  %v3265 = vpop.f32.mrf.mxu0
  %v3266 = vadd.f32 0.0, %v3265
  %v3267 = vpop.f32.mrf.mxu0
  %v3268 = vadd.f32 0.0, %v3267
  %3269 = vmatmul.bf16.gmra.mxu0 %v3121
  %v3270 = vpop.f32.mrf.mxu0
  %v3271 = vadd.f32 0.0, %v3270
  %v3272 = vpop.f32.mrf.mxu0
  %v3273 = vadd.f32 0.0, %v3272
  %3274 = vdwg.mxu0
  %v3275 = vadd.f32 %v1378, %v3196
  %v3276 = vadd.f32 %v1381, %v3198
  %v3277 = vadd.f32 %v1384, %v3201
  %v3278 = vadd.f32 %v1387, %v3203
  %v3279 = vadd.f32 %v1390, %v3206
  %v3280 = vadd.f32 %v1393, %v3208
  %v3281 = vadd.f32 %v1396, %v3211
  %v3282 = vadd.f32 %v1399, %v3213
  %v3283 = vadd.f32 %v1402, %v3216
  %v3284 = vadd.f32 %v1405, %v3218
  %v3285 = vadd.f32 %v1408, %v3221
  %v3286 = vadd.f32 %v1411, %v3223
  %v3287 = vadd.f32 %v1414, %v3226
  %v3288 = vadd.f32 %v1417, %v3228
  %v3289 = vadd.f32 %v1420, %v3231
  %v3290 = vadd.f32 %v1423, %v3233
  %v3291 = vadd.f32 %v1426, %v3236
  %v3292 = vadd.f32 %v1429, %v3238
  %v3293 = vadd.f32 %v1432, %v3241
  %v3294 = vadd.f32 %v1435, %v3243
  %v3295 = vadd.f32 %v1438, %v3246
  %v3296 = vadd.f32 %v1441, %v3248
  %v3297 = vadd.f32 %v1444, %v3251
  %v3298 = vadd.f32 %v1447, %v3253
  %v3299 = vadd.f32 %v1450, %v3256
  %v3300 = vadd.f32 %v1453, %v3258
  %v3301 = vadd.f32 %v1456, %v3261
  %v3302 = vadd.f32 %v1459, %v3263
  %v3303 = vadd.f32 %v1462, %v3266
  %v3304 = vadd.f32 %v1465, %v3268
  %v3305 = vadd.f32 %v1468, %v3271
  %v3306 = vadd.f32 %v1471, %v3273
  %v3307 = vtanh.pop %v3275
  %v3308 = vtanh.pop %v3276
  %v3309 = vtanh.pop %v3277
  %v3310 = vtanh.pop %v3278
  %v3311 = vtanh.pop %v3279
  %v3312 = vtanh.pop %v3280
  %v3313 = vtanh.pop %v3281
  %v3314 = vtanh.pop %v3282
  %v3315 = vtanh.pop %v3283
  %v3316 = vtanh.pop %v3284
  %v3317 = vtanh.pop %v3285
  %v3318 = vtanh.pop %v3286
  %v3319 = vtanh.pop %v3287
  %v3320 = vtanh.pop %v3288
  %v3321 = vtanh.pop %v3289
  %v3322 = vtanh.pop %v3290
  %v3323 = vtanh.pop %v3291
  %v3324 = vtanh.pop %v3292
  %v3325 = vtanh.pop %v3293
  %v3326 = vtanh.pop %v3294
  %v3327 = vtanh.pop %v3295
  %v3328 = vtanh.pop %v3296
  %v3329 = vtanh.pop %v3297
  %v3330 = vtanh.pop %v3298
  %v3331 = vtanh.pop %v3299
  %v3332 = vtanh.pop %v3300
  %v3333 = vtanh.pop %v3301
  %v3334 = vtanh.pop %v3302
  %v3335 = vtanh.pop %v3303
  %v3336 = vtanh.pop %v3304
  %v3337 = vtanh.pop %v3305
  %v3338 = vtanh.pop %v3306
  %v3339 = vmul.f32 %v1968, %v1472
  %v3340 = vmul.f32 %v1983, %v1473
  %v3341 = vmul.f32 %v1998, %v1474
  %v3342 = vmul.f32 %v2013, %v1475
  %v3343 = vmul.f32 %v2028, %v1476
  %v3344 = vmul.f32 %v2043, %v1477
  %v3345 = vmul.f32 %v2058, %v1478
  %v3346 = vmul.f32 %v2073, %v1479
  %v3347 = vmul.f32 %v2088, %v1480
  %v3348 = vmul.f32 %v2103, %v1481
  %v3349 = vmul.f32 %v2118, %v1482
  %v3350 = vmul.f32 %v2133, %v1483
  %v3351 = vmul.f32 %v2148, %v1484
  %v3352 = vmul.f32 %v2163, %v1485
  %v3353 = vmul.f32 %v2178, %v1486
  %v3354 = vmul.f32 %v2193, %v1487
  %v3355 = vmul.f32 %v2208, %v1488
  %v3356 = vmul.f32 %v2223, %v1489
  %v3357 = vmul.f32 %v2238, %v1490
  %v3358 = vmul.f32 %v2253, %v1491
  %v3359 = vmul.f32 %v2268, %v1492
  %v3360 = vmul.f32 %v2283, %v1493
  %v3361 = vmul.f32 %v2298, %v1494
  %v3362 = vmul.f32 %v2313, %v1495
  %v3363 = vmul.f32 %v2328, %v1496
  %v3364 = vmul.f32 %v2343, %v1497
  %v3365 = vmul.f32 %v2358, %v1498
  %v3366 = vmul.f32 %v2373, %v1499
  %v3367 = vmul.f32 %v2388, %v1500
  %v3368 = vmul.f32 %v2403, %v1501
  %v3369 = vmul.f32 %v2418, %v1502
  %v3370 = vmul.f32 %v2433, %v1503
  %v3371 = vsub.f32 1.0, %v1968
  %v3372 = vsub.f32 1.0, %v1983
  %v3373 = vsub.f32 1.0, %v1998
  %v3374 = vsub.f32 1.0, %v2013
  %v3375 = vsub.f32 1.0, %v2028
  %v3376 = vsub.f32 1.0, %v2043
  %v3377 = vsub.f32 1.0, %v2058
  %v3378 = vsub.f32 1.0, %v2073
  %v3379 = vsub.f32 1.0, %v2088
  %v3380 = vsub.f32 1.0, %v2103
  %v3381 = vsub.f32 1.0, %v2118
  %v3382 = vsub.f32 1.0, %v2133
  %v3383 = vsub.f32 1.0, %v2148
  %v3384 = vsub.f32 1.0, %v2163
  %v3385 = vsub.f32 1.0, %v2178
  %v3386 = vsub.f32 1.0, %v2193
  %v3387 = vsub.f32 1.0, %v2208
  %v3388 = vsub.f32 1.0, %v2223
  %v3389 = vsub.f32 1.0, %v2238
  %v3390 = vsub.f32 1.0, %v2253
  %v3391 = vsub.f32 1.0, %v2268
  %v3392 = vsub.f32 1.0, %v2283
  %v3393 = vsub.f32 1.0, %v2298
  %v3394 = vsub.f32 1.0, %v2313
  %v3395 = vsub.f32 1.0, %v2328
  %v3396 = vsub.f32 1.0, %v2343
  %v3397 = vsub.f32 1.0, %v2358
  %v3398 = vsub.f32 1.0, %v2373
  %v3399 = vsub.f32 1.0, %v2388
  %v3400 = vsub.f32 1.0, %v2403
  %v3401 = vsub.f32 1.0, %v2418
  %v3402 = vsub.f32 1.0, %v2433
  %v3403 = vmul.f32 %v3371, %v3307
  %v3404 = vmul.f32 %v3372, %v3308
  %v3405 = vmul.f32 %v3373, %v3309
  %v3406 = vmul.f32 %v3374, %v3310
  %v3407 = vmul.f32 %v3375, %v3311
  %v3408 = vmul.f32 %v3376, %v3312
  %v3409 = vmul.f32 %v3377, %v3313
  %v3410 = vmul.f32 %v3378, %v3314
  %v3411 = vmul.f32 %v3379, %v3315
  %v3412 = vmul.f32 %v3380, %v3316
  %v3413 = vmul.f32 %v3381, %v3317
  %v3414 = vmul.f32 %v3382, %v3318
  %v3415 = vmul.f32 %v3383, %v3319
  %v3416 = vmul.f32 %v3384, %v3320
  %v3417 = vmul.f32 %v3385, %v3321
  %v3418 = vmul.f32 %v3386, %v3322
  %v3419 = vmul.f32 %v3387, %v3323
  %v3420 = vmul.f32 %v3388, %v3324
  %v3421 = vmul.f32 %v3389, %v3325
  %v3422 = vmul.f32 %v3390, %v3326
  %v3423 = vmul.f32 %v3391, %v3327
  %v3424 = vmul.f32 %v3392, %v3328
  %v3425 = vmul.f32 %v3393, %v3329
  %v3426 = vmul.f32 %v3394, %v3330
  %v3427 = vmul.f32 %v3395, %v3331
  %v3428 = vmul.f32 %v3396, %v3332
  %v3429 = vmul.f32 %v3397, %v3333
  %v3430 = vmul.f32 %v3398, %v3334
  %v3431 = vmul.f32 %v3399, %v3335
  %v3432 = vmul.f32 %v3400, %v3336
  %v3433 = vmul.f32 %v3401, %v3337
  %v3434 = vmul.f32 %v3402, %v3338
  %v3435 = vadd.f32 %v3339, %v3403
  %v3436 = vadd.f32 %v3340, %v3404
  %v3437 = vadd.f32 %v3341, %v3405
  %v3438 = vadd.f32 %v3342, %v3406
  %v3439 = vadd.f32 %v3343, %v3407
  %v3440 = vadd.f32 %v3344, %v3408
  %v3441 = vadd.f32 %v3345, %v3409
  %v3442 = vadd.f32 %v3346, %v3410
  %v3443 = vadd.f32 %v3347, %v3411
  %v3444 = vadd.f32 %v3348, %v3412
  %v3445 = vadd.f32 %v3349, %v3413
  %v3446 = vadd.f32 %v3350, %v3414
  %v3447 = vadd.f32 %v3351, %v3415
  %v3448 = vadd.f32 %v3352, %v3416
  %v3449 = vadd.f32 %v3353, %v3417
  %v3450 = vadd.f32 %v3354, %v3418
  %v3451 = vadd.f32 %v3355, %v3419
  %v3452 = vadd.f32 %v3356, %v3420
  %v3453 = vadd.f32 %v3357, %v3421
  %v3454 = vadd.f32 %v3358, %v3422
  %v3455 = vadd.f32 %v3359, %v3423
  %v3456 = vadd.f32 %v3360, %v3424
  %v3457 = vadd.f32 %v3361, %v3425
  %v3458 = vadd.f32 %v3362, %v3426
  %v3459 = vadd.f32 %v3363, %v3427
  %v3460 = vadd.f32 %v3364, %v3428
  %v3461 = vadd.f32 %v3365, %v3429
  %v3462 = vadd.f32 %v3366, %v3430
  %v3463 = vadd.f32 %v3367, %v3431
  %v3464 = vadd.f32 %v3368, %v3432
  %v3465 = vadd.f32 %v3369, %v3433
  %v3466 = vadd.f32 %v3370, %v3434
  %vm3467 = vcmp.gt.f32.partialorder %v3435, 0.0
  %vm3468 = vcmp.gt.f32.partialorder %v3436, 0.0
  %vm3469 = vcmp.gt.f32.partialorder %v3437, 0.0
  %vm3470 = vcmp.gt.f32.partialorder %v3438, 0.0
  %vm3471 = vcmp.gt.f32.partialorder %v3439, 0.0
  %vm3472 = vcmp.gt.f32.partialorder %v3440, 0.0
  %vm3473 = vcmp.gt.f32.partialorder %v3441, 0.0
  %vm3474 = vcmp.gt.f32.partialorder %v3442, 0.0
  %vm3475 = vcmp.gt.f32.partialorder %v3443, 0.0
  %vm3476 = vcmp.gt.f32.partialorder %v3444, 0.0
  %vm3477 = vcmp.gt.f32.partialorder %v3445, 0.0
  %vm3478 = vcmp.gt.f32.partialorder %v3446, 0.0
  %vm3479 = vcmp.gt.f32.partialorder %v3447, 0.0
  %vm3480 = vcmp.gt.f32.partialorder %v3448, 0.0
  %vm3481 = vcmp.gt.f32.partialorder %v3449, 0.0
  %vm3482 = vcmp.gt.f32.partialorder %v3450, 0.0
  %vm3483 = vcmp.gt.f32.partialorder %v3451, 0.0
  %vm3484 = vcmp.gt.f32.partialorder %v3452, 0.0
  %vm3485 = vcmp.gt.f32.partialorder %v3453, 0.0
  %vm3486 = vcmp.gt.f32.partialorder %v3454, 0.0
  %vm3487 = vcmp.gt.f32.partialorder %v3455, 0.0
  %vm3488 = vcmp.gt.f32.partialorder %v3456, 0.0
  %vm3489 = vcmp.gt.f32.partialorder %v3457, 0.0
  %vm3490 = vcmp.gt.f32.partialorder %v3458, 0.0
  %vm3491 = vcmp.gt.f32.partialorder %v3459, 0.0
  %vm3492 = vcmp.gt.f32.partialorder %v3460, 0.0
  %vm3493 = vcmp.gt.f32.partialorder %v3461, 0.0
  %vm3494 = vcmp.gt.f32.partialorder %v3462, 0.0
  %vm3495 = vcmp.gt.f32.partialorder %v3463, 0.0
  %vm3496 = vcmp.gt.f32.partialorder %v3464, 0.0
  %vm3497 = vcmp.gt.f32.partialorder %v3465, 0.0
  %vm3498 = vcmp.gt.f32.partialorder %v3466, 0.0
  %v3499 = vmin.f32 %v3435, 0.0
  %v3500 = vmin.f32 %v3436, 0.0
  %v3501 = vmin.f32 %v3437, 0.0
  %v3502 = vmin.f32 %v3438, 0.0
  %v3503 = vmin.f32 %v3439, 0.0
  %v3504 = vmin.f32 %v3440, 0.0
  %v3505 = vmin.f32 %v3441, 0.0
  %v3506 = vmin.f32 %v3442, 0.0
  %v3507 = vmin.f32 %v3443, 0.0
  %v3508 = vmin.f32 %v3444, 0.0
  %v3509 = vmin.f32 %v3445, 0.0
  %v3510 = vmin.f32 %v3446, 0.0
  %v3511 = vmin.f32 %v3447, 0.0
  %v3512 = vmin.f32 %v3448, 0.0
  %v3513 = vmin.f32 %v3449, 0.0
  %v3514 = vmin.f32 %v3450, 0.0
  %v3515 = vmin.f32 %v3451, 0.0
  %v3516 = vmin.f32 %v3452, 0.0
  %v3517 = vmin.f32 %v3453, 0.0
  %v3518 = vmin.f32 %v3454, 0.0
  %v3519 = vmin.f32 %v3455, 0.0
  %v3520 = vmin.f32 %v3456, 0.0
  %v3521 = vmin.f32 %v3457, 0.0
  %v3522 = vmin.f32 %v3458, 0.0
  %v3523 = vmin.f32 %v3459, 0.0
  %v3524 = vmin.f32 %v3460, 0.0
  %v3525 = vmin.f32 %v3461, 0.0
  %v3526 = vmin.f32 %v3462, 0.0
  %v3527 = vmin.f32 %v3463, 0.0
  %v3528 = vmin.f32 %v3464, 0.0
  %v3529 = vmin.f32 %v3465, 0.0
  %v3530 = vmin.f32 %v3466, 0.0
  %v3531 = vmul.f32 %v3499, 1.442695
  %v3532 = vpow.pop %v3531
  %v3533 = vmul.f32 %v3500, 1.442695
  %v3534 = vpow.pop %v3533
  %v3535 = vmul.f32 %v3501, 1.442695
  %v3536 = vpow.pop %v3535
  %v3537 = vmul.f32 %v3502, 1.442695
  %v3538 = vpow.pop %v3537
  %v3539 = vmul.f32 %v3503, 1.442695
  %v3540 = vpow.pop %v3539
  %v3541 = vmul.f32 %v3504, 1.442695
  %v3542 = vpow.pop %v3541
  %v3543 = vmul.f32 %v3505, 1.442695
  %v3544 = vpow.pop %v3543
  %v3545 = vmul.f32 %v3506, 1.442695
  %v3546 = vpow.pop %v3545
  %v3547 = vmul.f32 %v3507, 1.442695
  %v3548 = vpow.pop %v3547
  %v3549 = vmul.f32 %v3508, 1.442695
  %v3550 = vpow.pop %v3549
  %v3551 = vmul.f32 %v3509, 1.442695
  %v3552 = vpow.pop %v3551
  %v3553 = vmul.f32 %v3510, 1.442695
  %v3554 = vpow.pop %v3553
  %v3555 = vmul.f32 %v3511, 1.442695
  %v3556 = vpow.pop %v3555
  %v3557 = vmul.f32 %v3512, 1.442695
  %v3558 = vpow.pop %v3557
  %v3559 = vmul.f32 %v3513, 1.442695
  %v3560 = vpow.pop %v3559
  %v3561 = vmul.f32 %v3514, 1.442695
  %v3562 = vpow.pop %v3561
  %v3563 = vmul.f32 %v3515, 1.442695
  %v3564 = vpow.pop %v3563
  %v3565 = vmul.f32 %v3516, 1.442695
  %v3566 = vpow.pop %v3565
  %v3567 = vmul.f32 %v3517, 1.442695
  %v3568 = vpow.pop %v3567
  %v3569 = vmul.f32 %v3518, 1.442695
  %v3570 = vpow.pop %v3569
  %v3571 = vmul.f32 %v3519, 1.442695
  %v3572 = vpow.pop %v3571
  %v3573 = vmul.f32 %v3520, 1.442695
  %v3574 = vpow.pop %v3573
  %v3575 = vmul.f32 %v3521, 1.442695
  %v3576 = vpow.pop %v3575
  %v3577 = vmul.f32 %v3522, 1.442695
  %v3578 = vpow.pop %v3577
  %v3579 = vmul.f32 %v3523, 1.442695
  %v3580 = vpow.pop %v3579
  %v3581 = vmul.f32 %v3524, 1.442695
  %v3582 = vpow.pop %v3581
  %v3583 = vmul.f32 %v3525, 1.442695
  %v3584 = vpow.pop %v3583
  %v3585 = vmul.f32 %v3526, 1.442695
  %v3586 = vpow.pop %v3585
  %v3587 = vmul.f32 %v3527, 1.442695
  %v3588 = vpow.pop %v3587
  %v3589 = vmul.f32 %v3528, 1.442695
  %v3590 = vpow.pop %v3589
  %v3591 = vmul.f32 %v3529, 1.442695
  %v3592 = vpow.pop %v3591
  %v3593 = vmul.f32 %v3530, 1.442695
  %v3594 = vpow.pop %v3593
  %v3595 = vsub.f32 %v3532, 1.0
  %v3596 = vsub.f32 %v3534, 1.0
  %v3597 = vsub.f32 %v3536, 1.0
  %v3598 = vsub.f32 %v3538, 1.0
  %v3599 = vsub.f32 %v3540, 1.0
  %v3600 = vsub.f32 %v3542, 1.0
  %v3601 = vsub.f32 %v3544, 1.0
  %v3602 = vsub.f32 %v3546, 1.0
  %v3603 = vsub.f32 %v3548, 1.0
  %v3604 = vsub.f32 %v3550, 1.0
  %v3605 = vsub.f32 %v3552, 1.0
  %v3606 = vsub.f32 %v3554, 1.0
  %v3607 = vsub.f32 %v3556, 1.0
  %v3608 = vsub.f32 %v3558, 1.0
  %v3609 = vsub.f32 %v3560, 1.0
  %v3610 = vsub.f32 %v3562, 1.0
  %v3611 = vsub.f32 %v3564, 1.0
  %v3612 = vsub.f32 %v3566, 1.0
  %v3613 = vsub.f32 %v3568, 1.0
  %v3614 = vsub.f32 %v3570, 1.0
  %v3615 = vsub.f32 %v3572, 1.0
  %v3616 = vsub.f32 %v3574, 1.0
  %v3617 = vsub.f32 %v3576, 1.0
  %v3618 = vsub.f32 %v3578, 1.0
  %v3619 = vsub.f32 %v3580, 1.0
  %v3620 = vsub.f32 %v3582, 1.0
  %v3621 = vsub.f32 %v3584, 1.0
  %v3622 = vsub.f32 %v3586, 1.0
  %v3623 = vsub.f32 %v3588, 1.0
  %v3624 = vsub.f32 %v3590, 1.0
  %v3625 = vsub.f32 %v3592, 1.0
  %v3626 = vsub.f32 %v3594, 1.0
  %v3627 = vsel %vm3467, %v3435, %v3595
  %v3628 = vsel %vm3468, %v3436, %v3596
  %v3629 = vsel %vm3469, %v3437, %v3597
  %v3630 = vsel %vm3470, %v3438, %v3598
  %v3631 = vsel %vm3471, %v3439, %v3599
  %v3632 = vsel %vm3472, %v3440, %v3600
  %v3633 = vsel %vm3473, %v3441, %v3601
  %v3634 = vsel %vm3474, %v3442, %v3602
  %v3635 = vsel %vm3475, %v3443, %v3603
  %v3636 = vsel %vm3476, %v3444, %v3604
  %v3637 = vsel %vm3477, %v3445, %v3605
  %v3638 = vsel %vm3478, %v3446, %v3606
  %v3639 = vsel %vm3479, %v3447, %v3607
  %v3640 = vsel %vm3480, %v3448, %v3608
  %v3641 = vsel %vm3481, %v3449, %v3609
  %v3642 = vsel %vm3482, %v3450, %v3610
  %v3643 = vsel %vm3483, %v3451, %v3611
  %v3644 = vsel %vm3484, %v3452, %v3612
  %v3645 = vsel %vm3485, %v3453, %v3613
  %v3646 = vsel %vm3486, %v3454, %v3614
  %v3647 = vsel %vm3487, %v3455, %v3615
  %v3648 = vsel %vm3488, %v3456, %v3616
  %v3649 = vsel %vm3489, %v3457, %v3617
  %v3650 = vsel %vm3490, %v3458, %v3618
  %v3651 = vsel %vm3491, %v3459, %v3619
  %v3652 = vsel %vm3492, %v3460, %v3620
  %v3653 = vsel %vm3493, %v3461, %v3621
  %v3654 = vsel %vm3494, %v3462, %v3622
  %v3655 = vsel %vm3495, %v3463, %v3623
  %v3656 = vsel %vm3496, %v3464, %v3624
  %v3657 = vsel %vm3497, %v3465, %v3625
  %v3658 = vsel %vm3498, %v3466, %v3626
  %v3659 = vpack.c.bf16 %v3628, %v3627
  %v3660 = vpack.c.bf16 %v3630, %v3629
  %v3661 = vpack.c.bf16 %v3632, %v3631
  %v3662 = vpack.c.bf16 %v3634, %v3633
  %v3663 = vpack.c.bf16 %v3636, %v3635
  %v3664 = vpack.c.bf16 %v3638, %v3637
  %v3665 = vpack.c.bf16 %v3640, %v3639
  %v3666 = vpack.c.bf16 %v3642, %v3641
  %v3667 = vpack.c.bf16 %v3644, %v3643
  %v3668 = vpack.c.bf16 %v3646, %v3645
  %v3669 = vpack.c.bf16 %v3648, %v3647
  %v3670 = vpack.c.bf16 %v3650, %v3649
  %v3671 = vpack.c.bf16 %v3652, %v3651
  %v3672 = vpack.c.bf16 %v3654, %v3653
  %v3673 = vpack.c.bf16 %v3656, %v3655
  %v3674 = vpack.c.bf16 %v3658, %v3657
  %v3675 = vld [vmem:[%s7] sm:$0xf]
  %v3676 = vld [vmem:[%s7 + $0x4] sm:$0xf]
  %v3677 = vld [vmem:[%s7 + $0x8] sm:$0xf]
  %v3678 = vld [vmem:[%s7 + $0xc] sm:$0xf]
  %v3679 = vld [vmem:[%s7 + $0x10] sm:$0xf]
  %v3680 = vld [vmem:[%s7 + $0x14] sm:$0xf]
  %v3681 = vld [vmem:[%s7 + $0x18] sm:$0xf]
  %v3682 = vld [vmem:[%s7 + $0x1c] sm:$0xf]
  %v3683 = vld [vmem:[%s7 + $0x20] sm:$0xf]
  %v3684 = vld [vmem:[%s7 + $0x24] sm:$0xf]
  %v3685 = vld [vmem:[%s7 + $0x28] sm:$0xf]
  %v3686 = vld [vmem:[%s7 + $0x2c] sm:$0xf]
  %v3687 = vld [vmem:[%s7 + $0x30] sm:$0xf]
  %v3688 = vld [vmem:[%s7 + $0x34] sm:$0xf]
  %v3689 = vld [vmem:[%s7 + $0x38] sm:$0xf]
  %v3690 = vld [vmem:[%s7 + $0x3c] sm:$0xf]
  %v3691 = vld [vmem:[%s8] sm:$0x1]
  %v3693 = vperm.slane %v3691, 0
  %v3711 = vunpack.c.l.b16 %v3675
  %v3712 = vunpack.c.l.b16 %v3676
  %v3713 = vunpack.c.l.b16 %v3677
  %v3714 = vunpack.c.l.b16 %v3678
  %v3715 = vunpack.c.l.b16 %v3679
  %v3716 = vunpack.c.l.b16 %v3680
  %v3717 = vunpack.c.l.b16 %v3681
  %v3718 = vunpack.c.l.b16 %v3682
  %v3719 = vunpack.c.l.b16 %v3683
  %v3720 = vunpack.c.l.b16 %v3684
  %v3721 = vunpack.c.l.b16 %v3685
  %v3722 = vunpack.c.l.b16 %v3686
  %v3723 = vunpack.c.l.b16 %v3687
  %v3724 = vunpack.c.l.b16 %v3688
  %v3725 = vunpack.c.l.b16 %v3689
  %v3726 = vunpack.c.l.b16 %v3690
  %v3727 = vpack.c.b16 %v3712, %v3711
  %v3728 = vpack.c.b16 %v3714, %v3713
  %v3729 = vpack.c.b16 %v3716, %v3715
  %v3730 = vpack.c.b16 %v3718, %v3717
  %v3731 = vpack.c.b16 %v3720, %v3719
  %v3732 = vpack.c.b16 %v3722, %v3721
  %v3733 = vpack.c.b16 %v3724, %v3723
  %v3734 = vpack.c.b16 %v3726, %v3725
  %3743 = vmatpush.bf16.msra.mxu0 %v3734
  %3744 = vmatpush.bf16.msra.mxu0 %v3733
  %3745 = vmatpush.bf16.msra.mxu0 %v3732
  %3746 = vmatpush.bf16.msra.mxu0 %v3731
  %3747 = vmatpush.bf16.msra.mxu0 %v3730
  %3748 = vmatpush.bf16.msra.mxu0 %v3729
  %3749 = vmatpush.bf16.msra.mxu0 %v3728
  %3750 = vmatpush.bf16.msra.mxu0 %v3727
  %3751 = vmatmul.bf16.gmra.mxu0 %v3659
  %v3752 = vpop.f32.mrf.mxu0
  %v3753 = vadd.f32 %v3693, %v3752
  %v3754 = vpop.f32.mrf.mxu0
  %v3755 = vadd.f32 %v3693, %v3754
  %3756 = vmatmul.bf16.gmra.mxu0 %v3660
  %v3757 = vpop.f32.mrf.mxu0
  %v3758 = vadd.f32 %v3693, %v3757
  %v3759 = vpop.f32.mrf.mxu0
  %v3760 = vadd.f32 %v3693, %v3759
  %3761 = vmatmul.bf16.gmra.mxu0 %v3661
  %v3762 = vpop.f32.mrf.mxu0
  %v3763 = vadd.f32 %v3693, %v3762
  %v3764 = vpop.f32.mrf.mxu0
  %v3765 = vadd.f32 %v3693, %v3764
  %3766 = vmatmul.bf16.gmra.mxu0 %v3662
  %v3767 = vpop.f32.mrf.mxu0
  %v3768 = vadd.f32 %v3693, %v3767
  %v3769 = vpop.f32.mrf.mxu0
  %v3770 = vadd.f32 %v3693, %v3769
  %3771 = vmatmul.bf16.gmra.mxu0 %v3663
  %v3772 = vpop.f32.mrf.mxu0
  %v3773 = vadd.f32 %v3693, %v3772
  %v3774 = vpop.f32.mrf.mxu0
  %v3775 = vadd.f32 %v3693, %v3774
  %3776 = vmatmul.bf16.gmra.mxu0 %v3664
  %v3777 = vpop.f32.mrf.mxu0
  %v3778 = vadd.f32 %v3693, %v3777
  %v3779 = vpop.f32.mrf.mxu0
  %v3780 = vadd.f32 %v3693, %v3779
  %3781 = vmatmul.bf16.gmra.mxu0 %v3665
  %v3782 = vpop.f32.mrf.mxu0
  %v3783 = vadd.f32 %v3693, %v3782
  %v3784 = vpop.f32.mrf.mxu0
  %v3785 = vadd.f32 %v3693, %v3784
  %3786 = vmatmul.bf16.gmra.mxu0 %v3666
  %v3787 = vpop.f32.mrf.mxu0
  %v3788 = vadd.f32 %v3693, %v3787
  %v3789 = vpop.f32.mrf.mxu0
  %v3790 = vadd.f32 %v3693, %v3789
  %3791 = vmatmul.bf16.gmra.mxu0 %v3667
  %v3792 = vpop.f32.mrf.mxu0
  %v3793 = vadd.f32 %v3693, %v3792
  %v3794 = vpop.f32.mrf.mxu0
  %v3795 = vadd.f32 %v3693, %v3794
  %3796 = vmatmul.bf16.gmra.mxu0 %v3668
  %v3797 = vpop.f32.mrf.mxu0
  %v3798 = vadd.f32 %v3693, %v3797
  %v3799 = vpop.f32.mrf.mxu0
  %v3800 = vadd.f32 %v3693, %v3799
  %3801 = vmatmul.bf16.gmra.mxu0 %v3669
  %v3802 = vpop.f32.mrf.mxu0
  %v3803 = vadd.f32 %v3693, %v3802
  %v3804 = vpop.f32.mrf.mxu0
  %v3805 = vadd.f32 %v3693, %v3804
  %3806 = vmatmul.bf16.gmra.mxu0 %v3670
  %v3807 = vpop.f32.mrf.mxu0
  %v3808 = vadd.f32 %v3693, %v3807
  %v3809 = vpop.f32.mrf.mxu0
  %v3810 = vadd.f32 %v3693, %v3809
  %3811 = vmatmul.bf16.gmra.mxu0 %v3671
  %v3812 = vpop.f32.mrf.mxu0
  %v3813 = vadd.f32 %v3693, %v3812
  %v3814 = vpop.f32.mrf.mxu0
  %v3815 = vadd.f32 %v3693, %v3814
  %3816 = vmatmul.bf16.gmra.mxu0 %v3672
  %v3817 = vpop.f32.mrf.mxu0
  %v3818 = vadd.f32 %v3693, %v3817
  %v3819 = vpop.f32.mrf.mxu0
  %v3820 = vadd.f32 %v3693, %v3819
  %3821 = vmatmul.bf16.gmra.mxu0 %v3673
  %v3822 = vpop.f32.mrf.mxu0
  %v3823 = vadd.f32 %v3693, %v3822
  %v3824 = vpop.f32.mrf.mxu0
  %v3825 = vadd.f32 %v3693, %v3824
  %3826 = vmatmul.bf16.gmra.mxu0 %v3674
  %v3827 = vpop.f32.mrf.mxu0
  %v3828 = vadd.f32 %v3693, %v3827
  %v3829 = vpop.f32.mrf.mxu0
  %v3830 = vadd.f32 %v3693, %v3829
  %3831 = vdwg.mxu0
  %3832 = vst [vmem:[%s10] sm:$0xff] %v3435
  %3833 = vst [vmem:[%s10 + $0x8] sm:$0xff] %v3436
  %3834 = vst [vmem:[%s10 + $0x10] sm:$0xff] %v3437
  %3835 = vst [vmem:[%s10 + $0x18] sm:$0xff] %v3438
  %3836 = vst [vmem:[%s10 + $0x20] sm:$0xff] %v3439
  %3837 = vst [vmem:[%s10 + $0x28] sm:$0xff] %v3440
  %3838 = vst [vmem:[%s10 + $0x30] sm:$0xff] %v3441
  %3839 = vst [vmem:[%s10 + $0x38] sm:$0xff] %v3442
  %3840 = vst [vmem:[%s10 + $0x40] sm:$0xff] %v3443
  %3841 = vst [vmem:[%s10 + $0x48] sm:$0xff] %v3444
  %3842 = vst [vmem:[%s10 + $0x50] sm:$0xff] %v3445
  %3843 = vst [vmem:[%s10 + $0x58] sm:$0xff] %v3446
  %3844 = vst [vmem:[%s10 + $0x60] sm:$0xff] %v3447
  %3845 = vst [vmem:[%s10 + $0x68] sm:$0xff] %v3448
  %3846 = vst [vmem:[%s10 + $0x70] sm:$0xff] %v3449
  %3847 = vst [vmem:[%s10 + $0x78] sm:$0xff] %v3450
  %3848 = vst [vmem:[%s10 + $0x80] sm:$0xff] %v3451
  %3849 = vst [vmem:[%s10 + $0x88] sm:$0xff] %v3452
  %3850 = vst [vmem:[%s10 + $0x90] sm:$0xff] %v3453
  %3851 = vst [vmem:[%s10 + $0x98] sm:$0xff] %v3454
  %3852 = vst [vmem:[%s10 + $0xa0] sm:$0xff] %v3455
  %3853 = vst [vmem:[%s10 + $0xa8] sm:$0xff] %v3456
  %3854 = vst [vmem:[%s10 + $0xb0] sm:$0xff] %v3457
  %3855 = vst [vmem:[%s10 + $0xb8] sm:$0xff] %v3458
  %3856 = vst [vmem:[%s10 + $0xc0] sm:$0xff] %v3459
  %3857 = vst [vmem:[%s10 + $0xc8] sm:$0xff] %v3460
  %3858 = vst [vmem:[%s10 + $0xd0] sm:$0xff] %v3461
  %3859 = vst [vmem:[%s10 + $0xd8] sm:$0xff] %v3462
  %3860 = vst [vmem:[%s10 + $0xe0] sm:$0xff] %v3463
  %3861 = vst [vmem:[%s10 + $0xe8] sm:$0xff] %v3464
  %3862 = vst [vmem:[%s10 + $0xf0] sm:$0xff] %v3465
  %3863 = vst [vmem:[%s10 + $0xf8] sm:$0xff] %v3466
  %3864 = vst [vmem:[%s9] sm:$0xff] %v3753
  %3865 = vst [vmem:[%s9 + $0x8] sm:$0xff] %v3755
  %3866 = vst [vmem:[%s9 + $0x10] sm:$0xff] %v3758
  %3867 = vst [vmem:[%s9 + $0x18] sm:$0xff] %v3760
  %3868 = vst [vmem:[%s9 + $0x20] sm:$0xff] %v3763
  %3869 = vst [vmem:[%s9 + $0x28] sm:$0xff] %v3765
  %3870 = vst [vmem:[%s9 + $0x30] sm:$0xff] %v3768
  %3871 = vst [vmem:[%s9 + $0x38] sm:$0xff] %v3770
  %3872 = vst [vmem:[%s9 + $0x40] sm:$0xff] %v3773
  %3873 = vst [vmem:[%s9 + $0x48] sm:$0xff] %v3775
  %3874 = vst [vmem:[%s9 + $0x50] sm:$0xff] %v3778
  %3875 = vst [vmem:[%s9 + $0x58] sm:$0xff] %v3780
  %3876 = vst [vmem:[%s9 + $0x60] sm:$0xff] %v3783
  %3877 = vst [vmem:[%s9 + $0x68] sm:$0xff] %v3785
  %3878 = vst [vmem:[%s9 + $0x70] sm:$0xff] %v3788
  %3879 = vst [vmem:[%s9 + $0x78] sm:$0xff] %v3790
  %3880 = vst [vmem:[%s9 + $0x80] sm:$0xff] %v3793
  %3881 = vst [vmem:[%s9 + $0x88] sm:$0xff] %v3795
  %3882 = vst [vmem:[%s9 + $0x90] sm:$0xff] %v3798
  %3883 = vst [vmem:[%s9 + $0x98] sm:$0xff] %v3800
  %3884 = vst [vmem:[%s9 + $0xa0] sm:$0xff] %v3803
  %3885 = vst [vmem:[%s9 + $0xa8] sm:$0xff] %v3805
  %3886 = vst [vmem:[%s9 + $0xb0] sm:$0xff] %v3808
  %3887 = vst [vmem:[%s9 + $0xb8] sm:$0xff] %v3810
  %3888 = vst [vmem:[%s9 + $0xc0] sm:$0xff] %v3813
  %3889 = vst [vmem:[%s9 + $0xc8] sm:$0xff] %v3815
  %3890 = vst [vmem:[%s9 + $0xd0] sm:$0xff] %v3818
  %3891 = vst [vmem:[%s9 + $0xd8] sm:$0xff] %v3820
  %3892 = vst [vmem:[%s9 + $0xe0] sm:$0xff] %v3823
  %3893 = vst [vmem:[%s9 + $0xe8] sm:$0xff] %v3825
  %3894 = vst [vmem:[%s9 + $0xf0] sm:$0xff] %v3828
  %3895 = vst [vmem:[%s9 + $0xf8] sm:$0xff] %v3830
  // Predicated region
  $region38: #{recurrent_tgcn_forward.1} parent=0 // pred_check
    _
  $region39: #{recurrent_tgcn_forward.1} parent=0 // pred_check_branch
    %3897 = sbr.rel (0) target = $region41
  $region40: #{recurrent_tgcn_forward.1} parent=0 // pred_region
    _
  $region41: #{recurrent_tgcn_forward.1} parent=0 // pred_fallthru
    _
  // Predicated region
  $region42: #{recurrent_tgcn_forward.1} parent=0 // pred_check
    _
  $region43: #{recurrent_tgcn_forward.1} parent=0 // pred_check_branch
    %3899 = sbr.rel (0) target = $region45
  $region44: #{recurrent_tgcn_forward.1} parent=0 // pred_region
    _
  $region45: #{recurrent_tgcn_forward.1} parent=0 // pred_fallthru
    _
  // Predicated region
  $region46: #{recurrent_tgcn_forward.1} parent=0 // pred_check
    _
  $region47: #{recurrent_tgcn_forward.1} parent=0 // pred_check_branch
    %3901 = sbr.rel (0) target = $region49
  $region48: #{recurrent_tgcn_forward.1} parent=0 // pred_region
    _
  $region49: #{recurrent_tgcn_forward.1} parent=0 // pred_fallthru
    _
  // Predicated region
  $region50: #{recurrent_tgcn_forward.1} parent=0 // pred_check
    _
  $region51: #{recurrent_tgcn_forward.1} parent=0 // pred_check_branch
    %3903 = sbr.rel (0) target = $region53
  $region52: #{recurrent_tgcn_forward.1} parent=0 // pred_region
    _
  $region53: #{recurrent_tgcn_forward.1} parent=0 // pred_fallthru
    _

</llo_original>
